<compile_context>
chip_gen: v7x
topology: tpu7x:2x2x1
jax: 0.10.0
libtpu: 0.0.40
codegen_flags: <defaults>
</compile_context>

<pallas_src>
import functools

import jax
import jax.numpy as jnp
from jax import lax
from jax.experimental import pallas as pl
from jax.experimental.pallas import tpu as pltpu

EPS = 1e-5


# ----------------------------- Pallas kernel --------------------------------
def inverted_residual_kernel(x_ref, w1_ref, b1_ref, wd_ref, bd_ref,
                             wproj_ref, wsc_ref, bout_ref, o_ref, scr_ref,
                             *, H, W, Mid):
    """Fused: 1x1 conv+BN+ReLU -> dilated depthwise 3x3+BN+ReLU ->
    (1x1 projection+BN) + (1x1 shortcut+BN).  One lane-dense batch block/step."""
    NB = x_ref.shape[0]
    WCin = x_ref.shape[2]
    WMid = W * Mid
    WMid3 = 3 * WMid
    WCout = o_ref.shape[2]
    R = NB * H

    x2 = x_ref[...].reshape(R, WCin)                      # bf16 [NB*H, W*Cin]

    # --- 1x1 expansion conv (BN folded) + ReLU.  The block-shifted-diagonal
    #     weight emits all three dilation-2 column-shifted copies in one MXU
    #     pass, with exact zero fill at the W edges (empty shift column +
    #     masked bias => relu(0) == 0). ---
    h1 = jnp.dot(x2, w1_ref[...], preferred_element_type=jnp.float32)
    h1 = jnp.maximum(h1 + b1_ref[...], 0.0)               # f32 [NB*H, 3*W*Mid]

    # Stage rows in VMEM with a 2-row zero halo so the +-2 row taps of the
    # dilated depthwise conv become plain lane-aligned slices.  Only the 4 halo
    # rows are zeroed; the interior is fully overwritten.  (Not hoisted under
    # program_id == 0: with "parallel" grid sharding each core has its own
    # uninitialised scratch and only one core sees step 0.)
    scr_ref[:, 0:2, :] = jnp.zeros((NB, 2, WMid3), jnp.float32)
    scr_ref[:, H + 2:H + 4, :] = jnp.zeros((NB, 2, WMid3), jnp.float32)
    scr_ref[:, 2:2 + H, :] = h1.reshape(NB, H, WMid3)

    # --- depthwise 3x3, dilation=2, padding=2, stride=1 (BN folded) + ReLU ---
    wd = wd_ref[...]                                      # f32 [9, W*Mid]
    acc = None
    for di in range(3):
        for dj in range(3):
            t = di * 3 + dj
            # rows: output row i reads h1 row i + 2*(di-1) -> scratch row i + 2*di
            # cols: segment dj already holds the column shift 2*(dj-1)
            tap = scr_ref[:, 2 * di:2 * di + H, dj * WMid:(dj + 1) * WMid]
            term = tap * wd[t].reshape(1, 1, WMid)
            acc = term if acc is None else acc + term
    h2 = jnp.maximum(acc.reshape(R, WMid) + bd_ref[...], 0.0)   # f32 [NB*H, W*Mid]

    # --- 1x1 projection + 1x1 shortcut (two MXU dots, biases pre-summed) ---
    out = jnp.dot(h2.astype(wproj_ref.dtype), wproj_ref[...],
                  preferred_element_type=jnp.float32)
    out = out + jnp.dot(x2, wsc_ref[...], preferred_element_type=jnp.float32)
    out = out + bout_ref[...]
    o_ref[...] = out.reshape(NB, H, WCout)                # lane-dense (W*Cout lanes)


# ------------------------------ JAX wrapper ----------------------------------
def fold_bn(w, b, gamma, beta, mean, var, eps=EPS):
    """Fold eval-mode BN into a conv: w [O, ...], b [O]."""
    s = gamma / jnp.sqrt(var + eps)
    w_eff = w * s.reshape((-1,) + (1,) * (w.ndim - 1))
    b_eff = (b - mean) * s + beta
    return w_eff, b_eff


def _pick_batch_block(n):
    # Largest NB that divides N AND leaves >= 2 grid steps, so the "parallel"
    # axis shards across v7x's 2 TensorCores and the I/O DMAs pipeline.
    # Candidates up to 32 let M = NB*H reach 256 for the v6e/v7x MXU height.
    for nb in (32, 16, 8, 4, 2, 1):
        if n % nb == 0 and n // nb >= 2:
            return nb
    return 1   # n == 1: single step is all we can do


def inverted_residual_pallas(x_nchw, params):
    (W1, b1, bn1), (Wd, bd, bn2), (W3, b3, bn3), (Wsc, bsc, bnsc) = params
    N, Cin, H, W = x_nchw.shape
    Mid = W1.shape[0]
    Cout = W3.shape[0]
    f32, bf16 = jnp.float32, jnp.bfloat16

    # Fold eval-mode BN into the convs (f32), then quantise MXU weights to bf16.
    w1e, b1e = fold_bn(W1, b1, *bn1)          # [Mid, Cin], [Mid]
    wde, bde = fold_bn(Wd, bd, *bn2)          # [Mid, 1, 3, 3], [Mid]
    w3e, b3e = fold_bn(W3, b3, *bn3)          # [Cout, Mid], [Cout]
    wse, bse = fold_bn(Wsc, bsc, *bnsc)       # [Cout, Cin], [Cout]

    eyeW = jnp.eye(W, dtype=f32)

    # Expansion weight [W*Cin, 3*W*Mid]: segment dj produces the expansion output
    # shifted by dw = 2*(dj-1) pixel columns (zero-filled at the edges), so the
    # MXU does the dilated column taps for free.
    w1_segs, b1_segs = [], []
    for dj in range(3):
        dw = 2 * (dj - 1)
        S = jnp.eye(W, k=-dw, dtype=f32)                  # S[a, j] = 1 iff a == j + dw
        w1_segs.append(jnp.kron(S, w1e.T.astype(f32)))    # [W*Cin, W*Mid]
        b1_segs.append(jnp.kron(S.sum(axis=0), b1e))      # bias masked where col OOB
    w1_k = jnp.concatenate(w1_segs, axis=1).astype(bf16)  # [W*Cin, 3*W*Mid]
    b1_k = jnp.concatenate(b1_segs, axis=0).reshape(1, 3 * W * Mid).astype(f32)

    # Depthwise weights/bias tiled across the W pixel columns (f32 VPU taps).
    wd_k = jnp.tile(jnp.transpose(wde.reshape(Mid, 9)), (1, W)).astype(f32)  # [9, W*Mid]
    bd_k = jnp.tile(bde, W).reshape(1, W * Mid).astype(f32)

    # 1x1 projection and 1x1 shortcut: block-diagonal over pixel columns, kept as
    # two separate matmul weights (no runtime concat); biases pre-summed.
    wproj_k = jnp.kron(eyeW, w3e.T.astype(f32)).astype(bf16)   # [W*Mid, W*Cout]
    wsc_k = jnp.kron(eyeW, wse.T.astype(f32)).astype(bf16)     # [W*Cin, W*Cout]
    bout_k = jnp.tile(b3e + bse, W).reshape(1, W * Cout).astype(f32)

    # Lane-dense, bf16 input slab: [N, H, W*Cin].
    x_wide = (jnp.transpose(x_nchw, (0, 2, 3, 1))
              .reshape(N, H, W * Cin).astype(bf16))

    NB = _pick_batch_block(N)
    grid = (N // NB,)

    kern = functools.partial(inverted_residual_kernel, H=H, W=W, Mid=Mid)

    # Rough cost hint for XLA's scheduler around the custom call.
    flops = (2 * N * H * (W * Cin) * (3 * W * Mid)       # expansion matmul
             + 2 * 9 * N * H * W * Mid                    # depthwise taps
             + 2 * N * H * (W * Mid) * (W * Cout)         # projection matmul
             + 2 * N * H * (W * Cin) * (W * Cout))        # shortcut matmul
    bytes_accessed = (2 * (x_wide.size + w1_k.size + wproj_k.size + wsc_k.size)
                      + 4 * (b1_k.size + wd_k.size + bd_k.size + bout_k.size)
                      + 4 * N * H * W * Cout)
    cost = pl.CostEstimate(flops=flops, transcendentals=0,
                           bytes_accessed=bytes_accessed)

    def build_call(single_buffer_weights):
        def wspec(shape):
            if single_buffer_weights:
                # Constant-index weights are fetched once; no need to double-buffer.
                return pl.BlockSpec(shape, lambda b: (0, 0),
                                    pipeline_mode=pl.Buffered(1))
            return pl.BlockSpec(shape, lambda b: (0, 0))

        grid_spec = pltpu.PrefetchScalarGridSpec(
            num_scalar_prefetch=0,
            grid=grid,
            in_specs=[
                pl.BlockSpec((NB, H, W * Cin), lambda b: (b, 0, 0)),
                wspec((W * Cin, 3 * W * Mid)),
                wspec((1, 3 * W * Mid)),
                wspec((9, W * Mid)),
                wspec((1, W * Mid)),
                wspec((W * Mid, W * Cout)),
                wspec((W * Cin, W * Cout)),
                wspec((1, W * Cout)),
            ],
            out_specs=pl.BlockSpec((NB, H, W * Cout), lambda b: (b, 0, 0)),
            scratch_shapes=[pltpu.VMEM((NB, H + 4, 3 * W * Mid), jnp.float32)],
        )
        return pl.pallas_call(
            kern,
            out_shape=jax.ShapeDtypeStruct((N, H, W * Cout), f32),
            grid_spec=grid_spec,
            compiler_params=pltpu.CompilerParams(
                dimension_semantics=("parallel",)),
            cost_estimate=cost,
        )

    args = (x_wide, w1_k, b1_k, wd_k, bd_k, wproj_k, wsc_k, bout_k)
    try:
        out_wide = build_call(single_buffer_weights=True)(*args)
    except Exception:
        # pl.Buffered(1) not accepted on this jax build -> default double buffering.
        out_wide = build_call(single_buffer_weights=False)(*args)

    out = out_wide.reshape(N, H, W, Cout)
    return jnp.transpose(out, (0, 3, 1, 2))               # back to NCHW


# --------------------------- pure-JAX reference ------------------------------
def _bn(x, gamma, beta, mean, var, eps=EPS):   # x: NCHW
    s = (gamma / jnp.sqrt(var + eps))[None, :, None, None]
    return (x - mean[None, :, None, None]) * s + beta[None, :, None, None]


def _conv1x1(x, w, b):                          # w: [O, I]
    return (jnp.einsum('nihw,oi->nohw', x, w, precision=lax.Precision.HIGHEST)
            + b[None, :, None, None])


def inverted_residual_ref(x, params):
    (W1, b1, bn1), (Wd, bd, bn2), (W3, b3, bn3), (Wsc, bsc, bnsc) = params
    Mid = W1.shape[0]
    h = jax.nn.relu(_bn(_conv1x1(x, W1, b1), *bn1))
    dw = lax.conv_general_dilated(
        h, Wd, window_strides=(1, 1), padding=((2, 2), (2, 2)),
        rhs_dilation=(2, 2), feature_group_count=Mid,
        dimension_numbers=('NCHW', 'OIHW', 'NCHW'),
        precision=lax.Precision.HIGHEST) + bd[None, :, None, None]
    h = jax.nn.relu(_bn(dw, *bn2))
    out = _bn(_conv1x1(h, W3, b3), *bn3)
    sc = _bn(_conv1x1(x, Wsc, bsc), *bnsc)
    return out + sc


# --------------------------------- main ---------------------------------------
if __name__ == "__main__":
    N, Cin, H, W = 2, 4, 16, 16
    expansion = 4
    Cout = 8
    Mid = Cin * expansion            # stride = 1 -> shortcut branch is present

    key = jax.random.PRNGKey(0)
    ks = iter(jax.random.split(key, 32))

    def nrm(shape, scale=0.2):
        return scale * jax.random.normal(next(ks), shape, dtype=jnp.float32)

    def make_bn(c):
        gamma = 1.0 + 0.1 * jax.random.normal(next(ks), (c,), dtype=jnp.float32)
        beta = 0.1 * jax.random.normal(next(ks), (c,), dtype=jnp.float32)
        mean = 0.1 * jax.random.normal(next(ks), (c,), dtype=jnp.float32)
        var = 0.5 + jax.random.uniform(next(ks), (c,), dtype=jnp.float32)
        return (gamma, beta, mean, var)

    # Conv1x1BNReLU(in -> mid)
    W1 = nrm((Mid, Cin)); b1 = nrm((Mid,), 0.05); bn1 = make_bn(Mid)
    # Conv3x3BNReLU depthwise (mid -> mid, groups=mid, dilation=2, padding=2)
    Wd = nrm((Mid, 1, 3, 3)); bd = nrm((Mid,), 0.05); bn2 = make_bn(Mid)
    # Conv1x1BN(mid -> out)
    W3 = nrm((Cout, Mid)); b3 = nrm((Cout,), 0.05); bn3 = make_bn(Cout)
    # shortcut Conv1x1BN(in -> out)
    Wsc = nrm((Cout, Cin)); bsc = nrm((Cout,), 0.05); bnsc = make_bn(Cout)

    params = ((W1, b1, bn1), (Wd, bd, bn2), (W3, b3, bn3), (Wsc, bsc, bnsc))

    x = jax.random.normal(next(ks), (N, Cin, H, W), dtype=jnp.float32)

    out = jax.block_until_ready(inverted_residual_pallas(x, params))
    ref = jax.block_until_ready(inverted_residual_ref(x, params))

    assert out.shape == (N, Cout, H, W), out.shape
    # Error vs. the HIGHEST-precision f32 reference is dominated by the bf16
    # quantisation of the MXU operands (input slab + 1x1 conv weights).
    max_err = float(jnp.max(jnp.abs(out - ref)))
    assert max_err < 1e-1, f"max abs error {max_err}"
    print("KERNEL_OK")
</pallas_src>

<mosaic_0001>
module attributes {stable_mosaic.version = 11 : i64} {
  func.func @inverted_residual_kernel(%arg0: i32, %arg1: memref<1x16x64xbf16, #tpu.memory_space<vmem>>, %arg2: memref<64x768xbf16, #tpu.memory_space<vmem>>, %arg3: memref<1x768xf32, #tpu.memory_space<vmem>>, %arg4: memref<9x256xf32, #tpu.memory_space<vmem>>, %arg5: memref<1x256xf32, #tpu.memory_space<vmem>>, %arg6: memref<256x128xbf16, #tpu.memory_space<vmem>>, %arg7: memref<64x128xbf16, #tpu.memory_space<vmem>>, %arg8: memref<1x128xf32, #tpu.memory_space<vmem>>, %arg9: memref<1x16x128xf32, #tpu.memory_space<vmem>>, %arg10: memref<1x20x768xf32, #tpu.memory_space<vmem>>) attributes {dimension_semantics = [#tpu.dimension_semantics<parallel>], iteration_bounds = array<i64: 2>, scalar_prefetch = 0 : i64, scratch_operands = 1 : i64, tpu.core_type = #tpu.core_type<tc>, window_params = [{transform_indices = @transform_0, window_bounds = array<i64: 1, 16, 64>}, {pipeline_mode = #tpu.pipeline_mode<synchronous>, transform_indices = @transform_1, window_bounds = array<i64: 64, 768>}, {pipeline_mode = #tpu.pipeline_mode<synchronous>, transform_indices = @transform_2, window_bounds = array<i64: 1, 768>}, {pipeline_mode = #tpu.pipeline_mode<synchronous>, transform_indices = @transform_3, window_bounds = array<i64: 9, 256>}, {pipeline_mode = #tpu.pipeline_mode<synchronous>, transform_indices = @transform_4, window_bounds = array<i64: 1, 256>}, {pipeline_mode = #tpu.pipeline_mode<synchronous>, transform_indices = @transform_5, window_bounds = array<i64: 256, 128>}, {pipeline_mode = #tpu.pipeline_mode<synchronous>, transform_indices = @transform_6, window_bounds = array<i64: 64, 128>}, {pipeline_mode = #tpu.pipeline_mode<synchronous>, transform_indices = @transform_7, window_bounds = array<i64: 1, 128>}, {transform_indices = @transform_8, window_bounds = array<i64: 1, 16, 128>}]} {
    %c0 = arith.constant 0 : index
    %c0_0 = arith.constant 0 : index
    %c0_1 = arith.constant 0 : index
    %0 = vector.load %arg1[%c0, %c0_0, %c0_1] : memref<1x16x64xbf16, #tpu.memory_space<vmem>>, vector<1x16x64xbf16>
    %1 = vector.shape_cast %0 : vector<1x16x64xbf16> to vector<16x64xbf16>
    %c0_2 = arith.constant 0 : index
    %c0_3 = arith.constant 0 : index
    %2 = vector.load %arg2[%c0_2, %c0_3] : memref<64x768xbf16, #tpu.memory_space<vmem>>, vector<64x768xbf16>
    %cst = arith.constant dense<0.000000e+00> : vector<16x768xf32>
    %3 = tpu.matmul %1, %2, %cst {dimension_numbers = #tpu.dot_dimension_numbers<[1], [0], [0], [1], [0, 0, 1, 1], [], []>} : vector<16x64xbf16>, vector<64x768xbf16>, vector<16x768xf32> -> vector<16x768xf32>
    %c0_4 = arith.constant 0 : index
    %c0_5 = arith.constant 0 : index
    %4 = vector.load %arg3[%c0_4, %c0_5] : memref<1x768xf32, #tpu.memory_space<vmem>>, vector<1x768xf32>
    %5 = vector.broadcast %4 : vector<1x768xf32> to vector<16x768xf32>
    %6 = arith.addf %3, %5 : vector<16x768xf32>
    %cst_6 = arith.constant 0.000000e+00 : f32
    %7 = vector.broadcast %cst_6 : f32 to vector<16x768xf32>
    %8 = arith.maximumf %6, %7 : vector<16x768xf32>
    %cst_7 = arith.constant 0.000000e+00 : f32
    %9 = vector.broadcast %cst_7 : f32 to vector<1x2x768xf32>
    %c0_8 = arith.constant 0 : index
    %c0_9 = arith.constant 0 : index
    %c0_10 = arith.constant 0 : index
    %10 = vector.load %arg10[%c0_8, %c0_9, %c0_10] : memref<1x20x768xf32, #tpu.memory_space<vmem>>, vector<1x2x768xf32>
    tpu.vector_store %arg10[%c0_8, %c0_9, %c0_10], %9 {strides = array<i32>} : memref<1x20x768xf32, #tpu.memory_space<vmem>>, vector<1x2x768xf32>,
    %cst_11 = arith.constant 0.000000e+00 : f32
    %11 = vector.broadcast %cst_11 : f32 to vector<1x2x768xf32>
    %c0_12 = arith.constant 0 : index
    %c18 = arith.constant 18 : index
    %c0_13 = arith.constant 0 : index
    %12 = vector.load %arg10[%c0_12, %c18, %c0_13] : memref<1x20x768xf32, #tpu.memory_space<vmem>>, vector<1x2x768xf32>
    tpu.vector_store %arg10[%c0_12, %c18, %c0_13], %11 {strides = array<i32>} : memref<1x20x768xf32, #tpu.memory_space<vmem>>, vector<1x2x768xf32>,
    %13 = vector.shape_cast %8 : vector<16x768xf32> to vector<1x16x768xf32>
    %c0_14 = arith.constant 0 : index
    %c2 = arith.constant 2 : index
    %c0_15 = arith.constant 0 : index
    %14 = vector.load %arg10[%c0_14, %c2, %c0_15] : memref<1x20x768xf32, #tpu.memory_space<vmem>>, vector<1x16x768xf32>
    tpu.vector_store %arg10[%c0_14, %c2, %c0_15], %13 {strides = array<i32>} : memref<1x20x768xf32, #tpu.memory_space<vmem>>, vector<1x16x768xf32>,
    %c0_16 = arith.constant 0 : index
    %c0_17 = arith.constant 0 : index
    %15 = vector.load %arg4[%c0_16, %c0_17] : memref<9x256xf32, #tpu.memory_space<vmem>>, vector<9x256xf32>
    %c0_18 = arith.constant 0 : index
    %c0_19 = arith.constant 0 : index
    %c0_20 = arith.constant 0 : index
    %16 = vector.load %arg10[%c0_18, %c0_19, %c0_20] : memref<1x20x768xf32, #tpu.memory_space<vmem>>, vector<1x16x256xf32>
    %17 = vector.extract_strided_slice %15 {offsets = [0, 0], sizes = [1, 256], strides = [1, 1]} : vector<9x256xf32> to vector<1x256xf32>
    %18 = vector.shape_cast %17 : vector<1x256xf32> to vector<256xf32>
    %19 = vector.shape_cast %18 : vector<256xf32> to vector<1x1x256xf32>
    %20 = vector.broadcast %19 : vector<1x1x256xf32> to vector<1x16x256xf32>
    %21 = arith.mulf %16, %20 : vector<1x16x256xf32>
    %c0_21 = arith.constant 0 : index
    %c0_22 = arith.constant 0 : index
    %c256 = arith.constant 256 : index
    %22 = vector.load %arg10[%c0_21, %c0_22, %c256] : memref<1x20x768xf32, #tpu.memory_space<vmem>>, vector<1x16x256xf32>
    %23 = vector.extract_strided_slice %15 {offsets = [1, 0], sizes = [1, 256], strides = [1, 1]} : vector<9x256xf32> to vector<1x256xf32>
    %24 = vector.shape_cast %23 : vector<1x256xf32> to vector<256xf32>
    %25 = vector.shape_cast %24 : vector<256xf32> to vector<1x1x256xf32>
    %26 = vector.broadcast %25 : vector<1x1x256xf32> to vector<1x16x256xf32>
    %27 = arith.mulf %22, %26 : vector<1x16x256xf32>
    %28 = arith.addf %21, %27 : vector<1x16x256xf32>
    %c0_23 = arith.constant 0 : index
    %c0_24 = arith.constant 0 : index
    %c512 = arith.constant 512 : index
    %29 = vector.load %arg10[%c0_23, %c0_24, %c512] : memref<1x20x768xf32, #tpu.memory_space<vmem>>, vector<1x16x256xf32>
    %30 = vector.extract_strided_slice %15 {offsets = [2, 0], sizes = [1, 256], strides = [1, 1]} : vector<9x256xf32> to vector<1x256xf32>
    %31 = vector.shape_cast %30 : vector<1x256xf32> to vector<256xf32>
    %32 = vector.shape_cast %31 : vector<256xf32> to vector<1x1x256xf32>
    %33 = vector.broadcast %32 : vector<1x1x256xf32> to vector<1x16x256xf32>
    %34 = arith.mulf %29, %33 : vector<1x16x256xf32>
    %35 = arith.addf %28, %34 : vector<1x16x256xf32>
    %c0_25 = arith.constant 0 : index
    %c2_26 = arith.constant 2 : index
    %c0_27 = arith.constant 0 : index
    %36 = vector.load %arg10[%c0_25, %c2_26, %c0_27] : memref<1x20x768xf32, #tpu.memory_space<vmem>>, vector<1x16x256xf32>
    %37 = vector.extract_strided_slice %15 {offsets = [3, 0], sizes = [1, 256], strides = [1, 1]} : vector<9x256xf32> to vector<1x256xf32>
    %38 = vector.shape_cast %37 : vector<1x256xf32> to vector<256xf32>
    %39 = vector.shape_cast %38 : vector<256xf32> to vector<1x1x256xf32>
    %40 = vector.broadcast %39 : vector<1x1x256xf32> to vector<1x16x256xf32>
    %41 = arith.mulf %36, %40 : vector<1x16x256xf32>
    %42 = arith.addf %35, %41 : vector<1x16x256xf32>
    %c0_28 = arith.constant 0 : index
    %c2_29 = arith.constant 2 : index
    %c256_30 = arith.constant 256 : index
    %43 = vector.load %arg10[%c0_28, %c2_29, %c256_30] : memref<1x20x768xf32, #tpu.memory_space<vmem>>, vector<1x16x256xf32>
    %44 = vector.extract_strided_slice %15 {offsets = [4, 0], sizes = [1, 256], strides = [1, 1]} : vector<9x256xf32> to vector<1x256xf32>
    %45 = vector.shape_cast %44 : vector<1x256xf32> to vector<256xf32>
    %46 = vector.shape_cast %45 : vector<256xf32> to vector<1x1x256xf32>
    %47 = vector.broadcast %46 : vector<1x1x256xf32> to vector<1x16x256xf32>
    %48 = arith.mulf %43, %47 : vector<1x16x256xf32>
    %49 = arith.addf %42, %48 : vector<1x16x256xf32>
    %c0_31 = arith.constant 0 : index
    %c2_32 = arith.constant 2 : index
    %c512_33 = arith.constant 512 : index
    %50 = vector.load %arg10[%c0_31, %c2_32, %c512_33] : memref<1x20x768xf32, #tpu.memory_space<vmem>>, vector<1x16x256xf32>
    %51 = vector.extract_strided_slice %15 {offsets = [5, 0], sizes = [1, 256], strides = [1, 1]} : vector<9x256xf32> to vector<1x256xf32>
    %52 = vector.shape_cast %51 : vector<1x256xf32> to vector<256xf32>
    %53 = vector.shape_cast %52 : vector<256xf32> to vector<1x1x256xf32>
    %54 = vector.broadcast %53 : vector<1x1x256xf32> to vector<1x16x256xf32>
    %55 = arith.mulf %50, %54 : vector<1x16x256xf32>
    %56 = arith.addf %49, %55 : vector<1x16x256xf32>
    %c0_34 = arith.constant 0 : index
    %c4 = arith.constant 4 : index
    %c0_35 = arith.constant 0 : index
    %57 = vector.load %arg10[%c0_34, %c4, %c0_35] : memref<1x20x768xf32, #tpu.memory_space<vmem>>, vector<1x16x256xf32>
    %58 = vector.extract_strided_slice %15 {offsets = [6, 0], sizes = [1, 256], strides = [1, 1]} : vector<9x256xf32> to vector<1x256xf32>
    %59 = vector.shape_cast %58 : vector<1x256xf32> to vector<256xf32>
    %60 = vector.shape_cast %59 : vector<256xf32> to vector<1x1x256xf32>
    %61 = vector.broadcast %60 : vector<1x1x256xf32> to vector<1x16x256xf32>
    %62 = arith.mulf %57, %61 : vector<1x16x256xf32>
    %63 = arith.addf %56, %62 : vector<1x16x256xf32>
    %c0_36 = arith.constant 0 : index
    %c4_37 = arith.constant 4 : index
    %c256_38 = arith.constant 256 : index
    %64 = vector.load %arg10[%c0_36, %c4_37, %c256_38] : memref<1x20x768xf32, #tpu.memory_space<vmem>>, vector<1x16x256xf32>
    %65 = vector.extract_strided_slice %15 {offsets = [7, 0], sizes = [1, 256], strides = [1, 1]} : vector<9x256xf32> to vector<1x256xf32>
    %66 = vector.shape_cast %65 : vector<1x256xf32> to vector<256xf32>
    %67 = vector.shape_cast %66 : vector<256xf32> to vector<1x1x256xf32>
    %68 = vector.broadcast %67 : vector<1x1x256xf32> to vector<1x16x256xf32>
    %69 = arith.mulf %64, %68 : vector<1x16x256xf32>
    %70 = arith.addf %63, %69 : vector<1x16x256xf32>
    %c0_39 = arith.constant 0 : index
    %c4_40 = arith.constant 4 : index
    %c512_41 = arith.constant 512 : index
    %71 = vector.load %arg10[%c0_39, %c4_40, %c512_41] : memref<1x20x768xf32, #tpu.memory_space<vmem>>, vector<1x16x256xf32>
    %72 = vector.extract_strided_slice %15 {offsets = [8, 0], sizes = [1, 256], strides = [1, 1]} : vector<9x256xf32> to vector<1x256xf32>
    %73 = vector.shape_cast %72 : vector<1x256xf32> to vector<256xf32>
    %74 = vector.shape_cast %73 : vector<256xf32> to vector<1x1x256xf32>
    %75 = vector.broadcast %74 : vector<1x1x256xf32> to vector<1x16x256xf32>
    %76 = arith.mulf %71, %75 : vector<1x16x256xf32>
    %77 = arith.addf %70, %76 : vector<1x16x256xf32>
    %78 = vector.shape_cast %77 : vector<1x16x256xf32> to vector<16x256xf32>
    %c0_42 = arith.constant 0 : index
    %c0_43 = arith.constant 0 : index
    %79 = vector.load %arg5[%c0_42, %c0_43] : memref<1x256xf32, #tpu.memory_space<vmem>>, vector<1x256xf32>
    %80 = vector.broadcast %79 : vector<1x256xf32> to vector<16x256xf32>
    %81 = arith.addf %78, %80 : vector<16x256xf32>
    %cst_44 = arith.constant 0.000000e+00 : f32
    %82 = vector.broadcast %cst_44 : f32 to vector<16x256xf32>
    %83 = arith.maximumf %81, %82 : vector<16x256xf32>
    %84 = arith.truncf %83 : vector<16x256xf32> to vector<16x256xbf16>
    %c0_45 = arith.constant 0 : index
    %c0_46 = arith.constant 0 : index
    %85 = vector.load %arg6[%c0_45, %c0_46] : memref<256x128xbf16, #tpu.memory_space<vmem>>, vector<256x128xbf16>
    %cst_47 = arith.constant dense<0.000000e+00> : vector<16x128xf32>
    %86 = tpu.matmul %84, %85, %cst_47 {dimension_numbers = #tpu.dot_dimension_numbers<[1], [0], [0], [1], [0, 0, 1, 1], [], []>} : vector<16x256xbf16>, vector<256x128xbf16>, vector<16x128xf32> -> vector<16x128xf32>
    %c0_48 = arith.constant 0 : index
    %c0_49 = arith.constant 0 : index
    %87 = vector.load %arg7[%c0_48, %c0_49] : memref<64x128xbf16, #tpu.memory_space<vmem>>, vector<64x128xbf16>
    %cst_50 = arith.constant dense<0.000000e+00> : vector<16x128xf32>
    %88 = tpu.matmul %1, %87, %cst_50 {dimension_numbers = #tpu.dot_dimension_numbers<[1], [0], [0], [1], [0, 0, 1, 1], [], []>} : vector<16x64xbf16>, vector<64x128xbf16>, vector<16x128xf32> -> vector<16x128xf32>
    %89 = arith.addf %86, %88 : vector<16x128xf32>
    %c0_51 = arith.constant 0 : index
    %c0_52 = arith.constant 0 : index
    %90 = vector.load %arg8[%c0_51, %c0_52] : memref<1x128xf32, #tpu.memory_space<vmem>>, vector<1x128xf32>
    %91 = vector.broadcast %90 : vector<1x128xf32> to vector<16x128xf32>
    %92 = arith.addf %89, %91 : vector<16x128xf32>
    %93 = vector.shape_cast %92 : vector<16x128xf32> to vector<1x16x128xf32>
    %c0_53 = arith.constant 0 : index
    %c0_54 = arith.constant 0 : index
    %c0_55 = arith.constant 0 : index
    %94 = vector.load %arg9[%c0_53, %c0_54, %c0_55] : memref<1x16x128xf32, #tpu.memory_space<vmem>>, vector<1x16x128xf32>
    tpu.vector_store %arg9[%c0_53, %c0_54, %c0_55], %93 {strides = array<i32>} : memref<1x16x128xf32, #tpu.memory_space<vmem>>, vector<1x16x128xf32>,
    return
  }
  func.func @transform_0(%arg0: i32) -> (i32, i32, i32) {
    %c0_i32 = arith.constant 0 : i32
    %c0_i32_0 = arith.constant 0 : i32
    %c0_i32_1 = arith.constant 0 : i32
    return %arg0, %c0_i32, %c0_i32_0 : i32, i32, i32
  }
  func.func @transform_1(%arg0: i32) -> (i32, i32) {
    %c0_i32 = arith.constant 0 : i32
    %c0_i32_0 = arith.constant 0 : i32
    %c0_i32_1 = arith.constant 0 : i32
    return %c0_i32, %c0_i32_0 : i32, i32
  }
  func.func @transform_2(%arg0: i32) -> (i32, i32) {
    %c0_i32 = arith.constant 0 : i32
    %c0_i32_0 = arith.constant 0 : i32
    %c0_i32_1 = arith.constant 0 : i32
    return %c0_i32, %c0_i32_0 : i32, i32
  }
  func.func @transform_3(%arg0: i32) -> (i32, i32) {
    %c0_i32 = arith.constant 0 : i32
    %c0_i32_0 = arith.constant 0 : i32
    %c0_i32_1 = arith.constant 0 : i32
    return %c0_i32, %c0_i32_0 : i32, i32
  }
  func.func @transform_4(%arg0: i32) -> (i32, i32) {
    %c0_i32 = arith.constant 0 : i32
    %c0_i32_0 = arith.constant 0 : i32
    %c0_i32_1 = arith.constant 0 : i32
    return %c0_i32, %c0_i32_0 : i32, i32
  }
  func.func @transform_5(%arg0: i32) -> (i32, i32) {
    %c0_i32 = arith.constant 0 : i32
    %c0_i32_0 = arith.constant 0 : i32
    %c0_i32_1 = arith.constant 0 : i32
    return %c0_i32, %c0_i32_0 : i32, i32
  }
  func.func @transform_6(%arg0: i32) -> (i32, i32) {
    %c0_i32 = arith.constant 0 : i32
    %c0_i32_0 = arith.constant 0 : i32
    %c0_i32_1 = arith.constant 0 : i32
    return %c0_i32, %c0_i32_0 : i32, i32
  }
  func.func @transform_7(%arg0: i32) -> (i32, i32) {
    %c0_i32 = arith.constant 0 : i32
    %c0_i32_0 = arith.constant 0 : i32
    %c0_i32_1 = arith.constant 0 : i32
    return %c0_i32, %c0_i32_0 : i32, i32
  }
  func.func @transform_8(%arg0: i32) -> (i32, i32, i32) {
    %c0_i32 = arith.constant 0 : i32
    %c0_i32_0 = arith.constant 0 : i32
    %c0_i32_1 = arith.constant 0 : i32
    return %arg0, %c0_i32, %c0_i32_0 : i32, i32, i32
  }
}

module attributes {stable_mosaic.version = 11 : i64} {
  func.func @inverted_residual_kernel(%arg0: i32, %arg1: memref<1x16x64xbf16, #tpu.memory_space<vmem>>, %arg2: memref<64x768xbf16, #tpu.memory_space<vmem>>, %arg3: memref<1x768xf32, #tpu.memory_space<vmem>>, %arg4: memref<9x256xf32, #tpu.memory_space<vmem>>, %arg5: memref<1x256xf32, #tpu.memory_space<vmem>>, %arg6: memref<256x128xbf16, #tpu.memory_space<vmem>>, %arg7: memref<64x128xbf16, #tpu.memory_space<vmem>>, %arg8: memref<1x128xf32, #tpu.memory_space<vmem>>, %arg9: memref<1x16x128xf32, #tpu.memory_space<vmem>>, %arg10: memref<1x20x768xf32, #tpu.memory_space<vmem>>) attributes {dimension_semantics = [#tpu.dimension_semantics<parallel>], iteration_bounds = array<i64: 2>, scalar_prefetch = 0 : i64, scratch_operands = 1 : i64, tpu.core_type = #tpu.core_type<tc>, window_params = [{transform_indices = @transform_0, window_bounds = array<i64: 1, 16, 64>}, {pipeline_mode = #tpu.pipeline_mode<synchronous>, transform_indices = @transform_1, window_bounds = array<i64: 64, 768>}, {pipeline_mode = #tpu.pipeline_mode<synchronous>, transform_indices = @transform_2, window_bounds = array<i64: 1, 768>}, {pipeline_mode = #tpu.pipeline_mode<synchronous>, transform_indices = @transform_3, window_bounds = array<i64: 9, 256>}, {pipeline_mode = #tpu.pipeline_mode<synchronous>, transform_indices = @transform_4, window_bounds = array<i64: 1, 256>}, {pipeline_mode = #tpu.pipeline_mode<synchronous>, transform_indices = @transform_5, window_bounds = array<i64: 256, 128>}, {pipeline_mode = #tpu.pipeline_mode<synchronous>, transform_indices = @transform_6, window_bounds = array<i64: 64, 128>}, {pipeline_mode = #tpu.pipeline_mode<synchronous>, transform_indices = @transform_7, window_bounds = array<i64: 1, 128>}, {transform_indices = @transform_8, window_bounds = array<i64: 1, 16, 128>}]} {
    %c0 = arith.constant 0 : index
    %c0_0 = arith.constant 0 : index
    %c0_1 = arith.constant 0 : index
    %0 = vector.load %arg1[%c0, %c0_0, %c0_1] : memref<1x16x64xbf16, #tpu.memory_space<vmem>>, vector<1x16x64xbf16>
    %1 = vector.shape_cast %0 : vector<1x16x64xbf16> to vector<16x64xbf16>
    %c0_2 = arith.constant 0 : index
    %c0_3 = arith.constant 0 : index
    %2 = vector.load %arg2[%c0_2, %c0_3] : memref<64x768xbf16, #tpu.memory_space<vmem>>, vector<64x768xbf16>
    %cst = arith.constant dense<0.000000e+00> : vector<16x768xf32>
    %3 = tpu.matmul %1, %2, %cst {dimension_numbers = #tpu.dot_dimension_numbers<[1], [0], [0], [1], [0, 0, 1, 1], [], []>} : vector<16x64xbf16>, vector<64x768xbf16>, vector<16x768xf32> -> vector<16x768xf32>
    %c0_4 = arith.constant 0 : index
    %c0_5 = arith.constant 0 : index
    %4 = vector.load %arg3[%c0_4, %c0_5] : memref<1x768xf32, #tpu.memory_space<vmem>>, vector<1x768xf32>
    %5 = vector.broadcast %4 : vector<1x768xf32> to vector<16x768xf32>
    %6 = arith.addf %3, %5 : vector<16x768xf32>
    %cst_6 = arith.constant 0.000000e+00 : f32
    %7 = vector.broadcast %cst_6 : f32 to vector<16x768xf32>
    %8 = arith.maximumf %6, %7 : vector<16x768xf32>
    %cst_7 = arith.constant 0.000000e+00 : f32
    %9 = vector.broadcast %cst_7 : f32 to vector<1x2x768xf32>
    %c0_8 = arith.constant 0 : index
    %c0_9 = arith.constant 0 : index
    %c0_10 = arith.constant 0 : index
    %10 = vector.load %arg10[%c0_8, %c0_9, %c0_10] : memref<1x20x768xf32, #tpu.memory_space<vmem>>, vector<1x2x768xf32>
    tpu.vector_store %arg10[%c0_8, %c0_9, %c0_10], %9 {strides = array<i32>} : memref<1x20x768xf32, #tpu.memory_space<vmem>>, vector<1x2x768xf32>,
    %cst_11 = arith.constant 0.000000e+00 : f32
    %11 = vector.broadcast %cst_11 : f32 to vector<1x2x768xf32>
    %c0_12 = arith.constant 0 : index
    %c18 = arith.constant 18 : index
    %c0_13 = arith.constant 0 : index
    %12 = vector.load %arg10[%c0_12, %c18, %c0_13] : memref<1x20x768xf32, #tpu.memory_space<vmem>>, vector<1x2x768xf32>
    tpu.vector_store %arg10[%c0_12, %c18, %c0_13], %11 {strides = array<i32>} : memref<1x20x768xf32, #tpu.memory_space<vmem>>, vector<1x2x768xf32>,
    %13 = vector.shape_cast %8 : vector<16x768xf32> to vector<1x16x768xf32>
    %c0_14 = arith.constant 0 : index
    %c2 = arith.constant 2 : index
    %c0_15 = arith.constant 0 : index
    %14 = vector.load %arg10[%c0_14, %c2, %c0_15] : memref<1x20x768xf32, #tpu.memory_space<vmem>>, vector<1x16x768xf32>
    tpu.vector_store %arg10[%c0_14, %c2, %c0_15], %13 {strides = array<i32>} : memref<1x20x768xf32, #tpu.memory_space<vmem>>, vector<1x16x768xf32>,
    %c0_16 = arith.constant 0 : index
    %c0_17 = arith.constant 0 : index
    %15 = vector.load %arg4[%c0_16, %c0_17] : memref<9x256xf32, #tpu.memory_space<vmem>>, vector<9x256xf32>
    %c0_18 = arith.constant 0 : index
    %c0_19 = arith.constant 0 : index
    %c0_20 = arith.constant 0 : index
    %16 = vector.load %arg10[%c0_18, %c0_19, %c0_20] : memref<1x20x768xf32, #tpu.memory_space<vmem>>, vector<1x16x256xf32>
    %17 = vector.extract_strided_slice %15 {offsets = [0, 0], sizes = [1, 256], strides = [1, 1]} : vector<9x256xf32> to vector<1x256xf32>
    %18 = vector.shape_cast %17 : vector<1x256xf32> to vector<256xf32>
    %19 = vector.shape_cast %18 : vector<256xf32> to vector<1x1x256xf32>
    %20 = vector.broadcast %19 : vector<1x1x256xf32> to vector<1x16x256xf32>
    %21 = arith.mulf %16, %20 : vector<1x16x256xf32>
    %c0_21 = arith.constant 0 : index
    %c0_22 = arith.constant 0 : index
    %c256 = arith.constant 256 : index
    %22 = vector.load %arg10[%c0_21, %c0_22, %c256] : memref<1x20x768xf32, #tpu.memory_space<vmem>>, vector<1x16x256xf32>
    %23 = vector.extract_strided_slice %15 {offsets = [1, 0], sizes = [1, 256], strides = [1, 1]} : vector<9x256xf32> to vector<1x256xf32>
    %24 = vector.shape_cast %23 : vector<1x256xf32> to vector<256xf32>
    %25 = vector.shape_cast %24 : vector<256xf32> to vector<1x1x256xf32>
    %26 = vector.broadcast %25 : vector<1x1x256xf32> to vector<1x16x256xf32>
    %27 = arith.mulf %22, %26 : vector<1x16x256xf32>
    %28 = arith.addf %21, %27 : vector<1x16x256xf32>
    %c0_23 = arith.constant 0 : index
    %c0_24 = arith.constant 0 : index
    %c512 = arith.constant 512 : index
    %29 = vector.load %arg10[%c0_23, %c0_24, %c512] : memref<1x20x768xf32, #tpu.memory_space<vmem>>, vector<1x16x256xf32>
    %30 = vector.extract_strided_slice %15 {offsets = [2, 0], sizes = [1, 256], strides = [1, 1]} : vector<9x256xf32> to vector<1x256xf32>
    %31 = vector.shape_cast %30 : vector<1x256xf32> to vector<256xf32>
    %32 = vector.shape_cast %31 : vector<256xf32> to vector<1x1x256xf32>
    %33 = vector.broadcast %32 : vector<1x1x256xf32> to vector<1x16x256xf32>
    %34 = arith.mulf %29, %33 : vector<1x16x256xf32>
    %35 = arith.addf %28, %34 : vector<1x16x256xf32>
    %c0_25 = arith.constant 0 : index
    %c2_26 = arith.constant 2 : index
    %c0_27 = arith.constant 0 : index
    %36 = vector.load %arg10[%c0_25, %c2_26, %c0_27] : memref<1x20x768xf32, #tpu.memory_space<vmem>>, vector<1x16x256xf32>
    %37 = vector.extract_strided_slice %15 {offsets = [3, 0], sizes = [1, 256], strides = [1, 1]} : vector<9x256xf32> to vector<1x256xf32>
    %38 = vector.shape_cast %37 : vector<1x256xf32> to vector<256xf32>
    %39 = vector.shape_cast %38 : vector<256xf32> to vector<1x1x256xf32>
    %40 = vector.broadcast %39 : vector<1x1x256xf32> to vector<1x16x256xf32>
    %41 = arith.mulf %36, %40 : vector<1x16x256xf32>
    %42 = arith.addf %35, %41 : vector<1x16x256xf32>
    %c0_28 = arith.constant 0 : index
    %c2_29 = arith.constant 2 : index
    %c256_30 = arith.constant 256 : index
    %43 = vector.load %arg10[%c0_28, %c2_29, %c256_30] : memref<1x20x768xf32, #tpu.memory_space<vmem>>, vector<1x16x256xf32>
    %44 = vector.extract_strided_slice %15 {offsets = [4, 0], sizes = [1, 256], strides = [1, 1]} : vector<9x256xf32> to vector<1x256xf32>
    %45 = vector.shape_cast %44 : vector<1x256xf32> to vector<256xf32>
    %46 = vector.shape_cast %45 : vector<256xf32> to vector<1x1x256xf32>
    %47 = vector.broadcast %46 : vector<1x1x256xf32> to vector<1x16x256xf32>
    %48 = arith.mulf %43, %47 : vector<1x16x256xf32>
    %49 = arith.addf %42, %48 : vector<1x16x256xf32>
    %c0_31 = arith.constant 0 : index
    %c2_32 = arith.constant 2 : index
    %c512_33 = arith.constant 512 : index
    %50 = vector.load %arg10[%c0_31, %c2_32, %c512_33] : memref<1x20x768xf32, #tpu.memory_space<vmem>>, vector<1x16x256xf32>
    %51 = vector.extract_strided_slice %15 {offsets = [5, 0], sizes = [1, 256], strides = [1, 1]} : vector<9x256xf32> to vector<1x256xf32>
    %52 = vector.shape_cast %51 : vector<1x256xf32> to vector<256xf32>
    %53 = vector.shape_cast %52 : vector<256xf32> to vector<1x1x256xf32>
    %54 = vector.broadcast %53 : vector<1x1x256xf32> to vector<1x16x256xf32>
    %55 = arith.mulf %50, %54 : vector<1x16x256xf32>
    %56 = arith.addf %49, %55 : vector<1x16x256xf32>
    %c0_34 = arith.constant 0 : index
    %c4 = arith.constant 4 : index
    %c0_35 = arith.constant 0 : index
    %57 = vector.load %arg10[%c0_34, %c4, %c0_35] : memref<1x20x768xf32, #tpu.memory_space<vmem>>, vector<1x16x256xf32>
    %58 = vector.extract_strided_slice %15 {offsets = [6, 0], sizes = [1, 256], strides = [1, 1]} : vector<9x256xf32> to vector<1x256xf32>
    %59 = vector.shape_cast %58 : vector<1x256xf32> to vector<256xf32>
    %60 = vector.shape_cast %59 : vector<256xf32> to vector<1x1x256xf32>
    %61 = vector.broadcast %60 : vector<1x1x256xf32> to vector<1x16x256xf32>
    %62 = arith.mulf %57, %61 : vector<1x16x256xf32>
    %63 = arith.addf %56, %62 : vector<1x16x256xf32>
    %c0_36 = arith.constant 0 : index
    %c4_37 = arith.constant 4 : index
    %c256_38 = arith.constant 256 : index
    %64 = vector.load %arg10[%c0_36, %c4_37, %c256_38] : memref<1x20x768xf32, #tpu.memory_space<vmem>>, vector<1x16x256xf32>
    %65 = vector.extract_strided_slice %15 {offsets = [7, 0], sizes = [1, 256], strides = [1, 1]} : vector<9x256xf32> to vector<1x256xf32>
    %66 = vector.shape_cast %65 : vector<1x256xf32> to vector<256xf32>
    %67 = vector.shape_cast %66 : vector<256xf32> to vector<1x1x256xf32>
    %68 = vector.broadcast %67 : vector<1x1x256xf32> to vector<1x16x256xf32>
    %69 = arith.mulf %64, %68 : vector<1x16x256xf32>
    %70 = arith.addf %63, %69 : vector<1x16x256xf32>
    %c0_39 = arith.constant 0 : index
    %c4_40 = arith.constant 4 : index
    %c512_41 = arith.constant 512 : index
    %71 = vector.load %arg10[%c0_39, %c4_40, %c512_41] : memref<1x20x768xf32, #tpu.memory_space<vmem>>, vector<1x16x256xf32>
    %72 = vector.extract_strided_slice %15 {offsets = [8, 0], sizes = [1, 256], strides = [1, 1]} : vector<9x256xf32> to vector<1x256xf32>
    %73 = vector.shape_cast %72 : vector<1x256xf32> to vector<256xf32>
    %74 = vector.shape_cast %73 : vector<256xf32> to vector<1x1x256xf32>
    %75 = vector.broadcast %74 : vector<1x1x256xf32> to vector<1x16x256xf32>
    %76 = arith.mulf %71, %75 : vector<1x16x256xf32>
    %77 = arith.addf %70, %76 : vector<1x16x256xf32>
    %78 = vector.shape_cast %77 : vector<1x16x256xf32> to vector<16x256xf32>
    %c0_42 = arith.constant 0 : index
    %c0_43 = arith.constant 0 : index
    %79 = vector.load %arg5[%c0_42, %c0_43] : memref<1x256xf32, #tpu.memory_space<vmem>>, vector<1x256xf32>
    %80 = vector.broadcast %79 : vector<1x256xf32> to vector<16x256xf32>
    %81 = arith.addf %78, %80 : vector<16x256xf32>
    %cst_44 = arith.constant 0.000000e+00 : f32
    %82 = vector.broadcast %cst_44 : f32 to vector<16x256xf32>
    %83 = arith.maximumf %81, %82 : vector<16x256xf32>
    %84 = arith.truncf %83 : vector<16x256xf32> to vector<16x256xbf16>
    %c0_45 = arith.constant 0 : index
    %c0_46 = arith.constant 0 : index
    %85 = vector.load %arg6[%c0_45, %c0_46] : memref<256x128xbf16, #tpu.memory_space<vmem>>, vector<256x128xbf16>
    %cst_47 = arith.constant dense<0.000000e+00> : vector<16x128xf32>
    %86 = tpu.matmul %84, %85, %cst_47 {dimension_numbers = #tpu.dot_dimension_numbers<[1], [0], [0], [1], [0, 0, 1, 1], [], []>} : vector<16x256xbf16>, vector<256x128xbf16>, vector<16x128xf32> -> vector<16x128xf32>
    %c0_48 = arith.constant 0 : index
    %c0_49 = arith.constant 0 : index
    %87 = vector.load %arg7[%c0_48, %c0_49] : memref<64x128xbf16, #tpu.memory_space<vmem>>, vector<64x128xbf16>
    %cst_50 = arith.constant dense<0.000000e+00> : vector<16x128xf32>
    %88 = tpu.matmul %1, %87, %cst_50 {dimension_numbers = #tpu.dot_dimension_numbers<[1], [0], [0], [1], [0, 0, 1, 1], [], []>} : vector<16x64xbf16>, vector<64x128xbf16>, vector<16x128xf32> -> vector<16x128xf32>
    %89 = arith.addf %86, %88 : vector<16x128xf32>
    %c0_51 = arith.constant 0 : index
    %c0_52 = arith.constant 0 : index
    %90 = vector.load %arg8[%c0_51, %c0_52] : memref<1x128xf32, #tpu.memory_space<vmem>>, vector<1x128xf32>
    %91 = vector.broadcast %90 : vector<1x128xf32> to vector<16x128xf32>
    %92 = arith.addf %89, %91 : vector<16x128xf32>
    %93 = vector.shape_cast %92 : vector<16x128xf32> to vector<1x16x128xf32>
    %c0_53 = arith.constant 0 : index
    %c0_54 = arith.constant 0 : index
    %c0_55 = arith.constant 0 : index
    %94 = vector.load %arg9[%c0_53, %c0_54, %c0_55] : memref<1x16x128xf32, #tpu.memory_space<vmem>>, vector<1x16x128xf32>
    tpu.vector_store %arg9[%c0_53, %c0_54, %c0_55], %93 {strides = array<i32>} : memref<1x16x128xf32, #tpu.memory_space<vmem>>, vector<1x16x128xf32>,
    return
  }
  func.func @transform_0(%arg0: i32) -> (i32, i32, i32) {
    %c0_i32 = arith.constant 0 : i32
    %c0_i32_0 = arith.constant 0 : i32
    %c0_i32_1 = arith.constant 0 : i32
    return %arg0, %c0_i32, %c0_i32_0 : i32, i32, i32
  }
  func.func @transform_1(%arg0: i32) -> (i32, i32) {
    %c0_i32 = arith.constant 0 : i32
    %c0_i32_0 = arith.constant 0 : i32
    %c0_i32_1 = arith.constant 0 : i32
    return %c0_i32, %c0_i32_0 : i32, i32
  }
  func.func @transform_2(%arg0: i32) -> (i32, i32) {
    %c0_i32 = arith.constant 0 : i32
    %c0_i32_0 = arith.constant 0 : i32
    %c0_i32_1 = arith.constant 0 : i32
    return %c0_i32, %c0_i32_0 : i32, i32
  }
  func.func @transform_3(%arg0: i32) -> (i32, i32) {
    %c0_i32 = arith.constant 0 : i32
    %c0_i32_0 = arith.constant 0 : i32
    %c0_i32_1 = arith.constant 0 : i32
    return %c0_i32, %c0_i32_0 : i32, i32
  }
  func.func @transform_4(%arg0: i32) -> (i32, i32) {
    %c0_i32 = arith.constant 0 : i32
    %c0_i32_0 = arith.constant 0 : i32
    %c0_i32_1 = arith.constant 0 : i32
    return %c0_i32, %c0_i32_0 : i32, i32
  }
  func.func @transform_5(%arg0: i32) -> (i32, i32) {
    %c0_i32 = arith.constant 0 : i32
    %c0_i32_0 = arith.constant 0 : i32
    %c0_i32_1 = arith.constant 0 : i32
    return %c0_i32, %c0_i32_0 : i32, i32
  }
  func.func @transform_6(%arg0: i32) -> (i32, i32) {
    %c0_i32 = arith.constant 0 : i32
    %c0_i32_0 = arith.constant 0 : i32
    %c0_i32_1 = arith.constant 0 : i32
    return %c0_i32, %c0_i32_0 : i32, i32
  }
  func.func @transform_7(%arg0: i32) -> (i32, i32) {
    %c0_i32 = arith.constant 0 : i32
    %c0_i32_0 = arith.constant 0 : i32
    %c0_i32_1 = arith.constant 0 : i32
    return %c0_i32, %c0_i32_0 : i32, i32
  }
  func.func @transform_8(%arg0: i32) -> (i32, i32, i32) {
    %c0_i32 = arith.constant 0 : i32
    %c0_i32_0 = arith.constant 0 : i32
    %c0_i32_1 = arith.constant 0 : i32
    return %arg0, %c0_i32, %c0_i32_0 : i32, i32, i32
  }
}

</mosaic_0001>

<llo_original>
// kernel: tpu_custom_call.1
$region0: #{tpu_custom_call.1}
  #allocation0 [shape = 'u32[]', space=smem, size = 0x4, offset = 0x4, fixed_abs, tag = 'smem constant byte address 0x4 - core index']
  #allocation1 [shape = 'u32[144,128]{1,0:T(1,128)}', space=vmem, size = 0x12000, scoped, tag = 'internal scratch']
  #allocation2 [shape = 'f32[1,20,768]{2,1,0:T(8,128)}', space=vmem, size = 0x12000, scoped, tag = 'scratch operand']
  %s0 = inlined_call_operand.hbm [shape: bf16[2,16,64], index: 0, kind: input, shape index: {}]
  %s1 = inlined_call_operand.hbm [shape: bf16[64,768], index: 1, kind: input, shape index: {}]
  %s2 = inlined_call_operand.vmem [shape: f32[1,768], index: 2, kind: input, shape index: {}]
  %s3 = inlined_call_operand.hbm [shape: f32[9,256], index: 3, kind: input, shape index: {}]
  %s4 = inlined_call_operand.vmem [shape: f32[1,256], index: 4, kind: input, shape index: {}]
  %s5 = inlined_call_operand.hbm [shape: bf16[256,128], index: 5, kind: input, shape index: {}]
  %s6 = inlined_call_operand.hbm [shape: bf16[64,128], index: 6, kind: input, shape index: {}]
  %s7 = inlined_call_operand.vmem [shape: f32[1,128], index: 7, kind: input, shape index: {}]
  %s8 = inlined_call_operand.hbm [shape: f32[2,16,128], index: 8, kind: output, shape index: {}]
  %s9 = sld [smem:[#allocation0]]
  $region85: #{tpu_custom_call.1} parent=0
    _
  %s11 = ssub.s32 1, %s9
  %s12 = scalar_select 0, %s11, %s9
  $region1: #{tpu_custom_call.1} parent=0
    #allocation3 [shape = 'u8[8192]{0}', space=vmem, size = 0x2000, scoped, tag = 'input window, operand 0']
    #allocation4 [shape = 's32[2]{0}', space=sflag, size = 0x8, scoped, tag = 'scoped memory for tpu_custom_call.1']
    #allocation5 [shape = 's32[2]{0}', space=sflag, size = 0x8, scoped, tag = 'scoped memory for tpu_custom_call.1']
    #allocation6 [shape = 'u8[98304]{0}', space=vmem, size = 0x18000, scoped, tag = 'input window, operand 1, single buffered']
    #allocation7 [shape = 's32[1]{0}', space=sflag, size = 0x4, scoped, tag = 'scoped memory for tpu_custom_call.1']
    #allocation8 [shape = 'u8[16384]{0}', space=vmem, size = 0x4000, scoped, tag = 'input window, operand 3, single buffered']
    #allocation9 [shape = 'u8[65536]{0}', space=vmem, size = 0x10000, scoped, tag = 'input window, operand 5, single buffered']
    #allocation10 [shape = 's32[1]{0}', space=sflag, size = 0x4, scoped, tag = 'scoped memory for tpu_custom_call.1']
    #allocation11 [shape = 'u8[16384]{0}', space=vmem, size = 0x4000, scoped, tag = 'input window, operand 6, single buffered']
    #allocation12 [shape = 'u8[16384]{0}', space=vmem, size = 0x4000, scoped, tag = 'output window, operand 0']
    %13 = vsyncpa [#allocation4], 0
    %s14 = scalar_lea.sflag [#allocation4], 1
    %15 = vsyncpa %s14, 0
    %16 = vsyncpa [#allocation7], 0
    %17 = vsyncpa [#allocation10], 0
    %18 = vsyncpa [#allocation5], 0
    %s19 = scalar_lea.sflag [#allocation5], 1
    %20 = vsyncpa %s19, 0
    loop: start=0, step=1, limit=4
    $region2: #{tpu_custom_call.1} parent=1 // loop_pre_header
      _
    $region3: #{tpu_custom_call.1} parent=1 // loop_header
      %s22 = sphi 0, %s26
      %p23 = scmp.ge.s32.totalorder %s22, 4
      %s32 = sphi 0, %s34
      %s35 = sphi 0, %s32
      %s36 = sphi 0, %s35
      %s52 = sphi 0, %s36
      %s56 = sphi 0, %s56
      %s58 = sphi 0, %s56
      %s59 = sphi 0, %s58
      %s73 = sphi 0, %s59
      %s77 = sphi 0, %s77
      %s79 = sphi 0, %s77
      %s80 = sphi 0, %s79
      %s94 = sphi 0, %s80
      %s98 = sphi 0, %s98
      %s100 = sphi 0, %s98
      %s101 = sphi 0, %s100
      %s115 = sphi 0, %s101
      %s119 = sphi 0, %s119
      %s121 = sphi 0, %s119
      %s122 = sphi 0, %s121
      %s136 = sphi 0, %s122
      %s140 = sphi 0, %s140
      %s142 = sphi 0, %s140
      %s143 = sphi 0, %s142
      %s157 = sphi 0, %s143
      %s161 = sphi 0, %s161
      %s163 = sphi 0, %s161
      %s164 = sphi 0, %s163
      %s178 = sphi 0, %s164
      %s182 = sphi 0, %s182
      %s184 = sphi 0, %s182
      %s185 = sphi 0, %s184
      %s199 = sphi 0, %s185
      %s205 = sphi 0, %s207
      %s208 = sphi 0, %s205
      %s209 = sphi 0, %s208
      %s225 = sphi 0, %s209
    $region4: #{tpu_custom_call.1} parent=1 // loop_header_branch
      %25 = sbr.rel (%p23) target = $region8
    $region5: #{tpu_custom_call.1} parent=1 // loop_body
      %s27 = ssub.s32 %s22, 1
      %s28 = ssub.s32 %s22, 2
      %s29 = sadd.s32 %s22, 1
      %s30 = ssub.s32 %s22, %s29
      %p31 = scmp.eq.s32.totalorder %s30, 0
      %s33 = sadd.s32 %s32, 1
      %s34 = scalar_select %p31, %s32, %s33
      %p37 = pneg %p31
      %p38 = scmp.eq.s32.totalorder %s22, 1
      %p39 = por %p37, %p38
      %p40 = scmp.ne.s32.totalorder %s32, %s35
      %p41 = scmp.eq.s32.totalorder %s22, 0
      %p42 = por %p40, %p41
      %p43 = scmp.ne.s32.totalorder %s32, %s35
      %p44 = scmp.eq.s32.totalorder %s27, 1
      %p45 = por %p43, %p44
      %p46 = scmp.ne.s32.totalorder %s35, %s36
      %p47 = scmp.eq.s32.totalorder %s27, 0
      %p48 = por %p46, %p47
      %p49 = scmp.ne.s32.totalorder %s35, %s36
      %p50 = scmp.eq.s32.totalorder %s28, 1
      %p51 = por %p49, %p50
      %p53 = scmp.ne.s32.totalorder %s36, %s52
      %p54 = scmp.eq.s32.totalorder %s28, 0
      %p55 = por %p53, %p54
      %s57 = sadd.s32 %s56, 1
      %p60 = scmp.eq.s32.totalorder %s22, 1
      %p61 = scmp.ne.s32.totalorder %s56, %s58
      %p62 = scmp.eq.s32.totalorder %s22, 0
      %p63 = por %p61, %p62
      %p64 = scmp.ne.s32.totalorder %s56, %s58
      %p65 = scmp.eq.s32.totalorder %s27, 1
      %p66 = por %p64, %p65
      %p67 = scmp.ne.s32.totalorder %s58, %s59
      %p68 = scmp.eq.s32.totalorder %s27, 0
      %p69 = por %p67, %p68
      %p70 = scmp.ne.s32.totalorder %s58, %s59
      %p71 = scmp.eq.s32.totalorder %s28, 1
      %p72 = por %p70, %p71
      %p74 = scmp.ne.s32.totalorder %s59, %s73
      %p75 = scmp.eq.s32.totalorder %s28, 0
      %p76 = por %p74, %p75
      %s78 = sadd.s32 %s77, 1
      %p81 = scmp.eq.s32.totalorder %s22, 1
      %p82 = scmp.ne.s32.totalorder %s77, %s79
      %p83 = scmp.eq.s32.totalorder %s22, 0
      %p84 = por %p82, %p83
      %p85 = scmp.ne.s32.totalorder %s77, %s79
      %p86 = scmp.eq.s32.totalorder %s27, 1
      %p87 = por %p85, %p86
      %p88 = scmp.ne.s32.totalorder %s79, %s80
      %p89 = scmp.eq.s32.totalorder %s27, 0
      %p90 = por %p88, %p89
      %p91 = scmp.ne.s32.totalorder %s79, %s80
      %p92 = scmp.eq.s32.totalorder %s28, 1
      %p93 = por %p91, %p92
      %p95 = scmp.ne.s32.totalorder %s80, %s94
      %p96 = scmp.eq.s32.totalorder %s28, 0
      %p97 = por %p95, %p96
      %s99 = sadd.s32 %s98, 1
      %p102 = scmp.eq.s32.totalorder %s22, 1
      %p103 = scmp.ne.s32.totalorder %s98, %s100
      %p104 = scmp.eq.s32.totalorder %s22, 0
      %p105 = por %p103, %p104
      %p106 = scmp.ne.s32.totalorder %s98, %s100
      %p107 = scmp.eq.s32.totalorder %s27, 1
      %p108 = por %p106, %p107
      %p109 = scmp.ne.s32.totalorder %s100, %s101
      %p110 = scmp.eq.s32.totalorder %s27, 0
      %p111 = por %p109, %p110
      %p112 = scmp.ne.s32.totalorder %s100, %s101
      %p113 = scmp.eq.s32.totalorder %s28, 1
      %p114 = por %p112, %p113
      %p116 = scmp.ne.s32.totalorder %s101, %s115
      %p117 = scmp.eq.s32.totalorder %s28, 0
      %p118 = por %p116, %p117
      %s120 = sadd.s32 %s119, 1
      %p123 = scmp.eq.s32.totalorder %s22, 1
      %p124 = scmp.ne.s32.totalorder %s119, %s121
      %p125 = scmp.eq.s32.totalorder %s22, 0
      %p126 = por %p124, %p125
      %p127 = scmp.ne.s32.totalorder %s119, %s121
      %p128 = scmp.eq.s32.totalorder %s27, 1
      %p129 = por %p127, %p128
      %p130 = scmp.ne.s32.totalorder %s121, %s122
      %p131 = scmp.eq.s32.totalorder %s27, 0
      %p132 = por %p130, %p131
      %p133 = scmp.ne.s32.totalorder %s121, %s122
      %p134 = scmp.eq.s32.totalorder %s28, 1
      %p135 = por %p133, %p134
      %p137 = scmp.ne.s32.totalorder %s122, %s136
      %p138 = scmp.eq.s32.totalorder %s28, 0
      %p139 = por %p137, %p138
      %s141 = sadd.s32 %s140, 1
      %p144 = scmp.eq.s32.totalorder %s22, 1
      %p145 = scmp.ne.s32.totalorder %s140, %s142
      %p146 = scmp.eq.s32.totalorder %s22, 0
      %p147 = por %p145, %p146
      %p148 = scmp.ne.s32.totalorder %s140, %s142
      %p149 = scmp.eq.s32.totalorder %s27, 1
      %p150 = por %p148, %p149
      %p151 = scmp.ne.s32.totalorder %s142, %s143
      %p152 = scmp.eq.s32.totalorder %s27, 0
      %p153 = por %p151, %p152
      %p154 = scmp.ne.s32.totalorder %s142, %s143
      %p155 = scmp.eq.s32.totalorder %s28, 1
      %p156 = por %p154, %p155
      %p158 = scmp.ne.s32.totalorder %s143, %s157
      %p159 = scmp.eq.s32.totalorder %s28, 0
      %p160 = por %p158, %p159
      %s162 = sadd.s32 %s161, 1
      %p165 = scmp.eq.s32.totalorder %s22, 1
      %p166 = scmp.ne.s32.totalorder %s161, %s163
      %p167 = scmp.eq.s32.totalorder %s22, 0
      %p168 = por %p166, %p167
      %p169 = scmp.ne.s32.totalorder %s161, %s163
      %p170 = scmp.eq.s32.totalorder %s27, 1
      %p171 = por %p169, %p170
      %p172 = scmp.ne.s32.totalorder %s163, %s164
      %p173 = scmp.eq.s32.totalorder %s27, 0
      %p174 = por %p172, %p173
      %p175 = scmp.ne.s32.totalorder %s163, %s164
      %p176 = scmp.eq.s32.totalorder %s28, 1
      %p177 = por %p175, %p176
      %p179 = scmp.ne.s32.totalorder %s164, %s178
      %p180 = scmp.eq.s32.totalorder %s28, 0
      %p181 = por %p179, %p180
      %s183 = sadd.s32 %s182, 1
      %p186 = scmp.eq.s32.totalorder %s22, 1
      %p187 = scmp.ne.s32.totalorder %s182, %s184
      %p188 = scmp.eq.s32.totalorder %s22, 0
      %p189 = por %p187, %p188
      %p190 = scmp.ne.s32.totalorder %s182, %s184
      %p191 = scmp.eq.s32.totalorder %s27, 1
      %p192 = por %p190, %p191
      %p193 = scmp.ne.s32.totalorder %s184, %s185
      %p194 = scmp.eq.s32.totalorder %s27, 0
      %p195 = por %p193, %p194
      %p196 = scmp.ne.s32.totalorder %s184, %s185
      %p197 = scmp.eq.s32.totalorder %s28, 1
      %p198 = por %p196, %p197
      %p200 = scmp.ne.s32.totalorder %s185, %s199
      %p201 = scmp.eq.s32.totalorder %s28, 0
      %p202 = por %p200, %p201
      %s203 = ssub.s32 %s22, %s29
      %p204 = scmp.eq.s32.totalorder %s203, 0
      %s206 = sadd.s32 %s205, 1
      %s207 = scalar_select %p204, %s205, %s206
      %p210 = pneg %p204
      %p211 = scmp.eq.s32.totalorder %s22, 1
      %p212 = por %p210, %p211
      %p213 = scmp.ne.s32.totalorder %s205, %s208
      %p214 = scmp.eq.s32.totalorder %s22, 0
      %p215 = por %p213, %p214
      %p216 = scmp.ne.s32.totalorder %s205, %s208
      %p217 = scmp.eq.s32.totalorder %s27, 1
      %p218 = por %p216, %p217
      %p219 = scmp.ne.s32.totalorder %s208, %s209
      %p220 = scmp.eq.s32.totalorder %s27, 0
      %p221 = por %p219, %p220
      %p222 = scmp.ne.s32.totalorder %s208, %s209
      %p223 = scmp.eq.s32.totalorder %s28, 1
      %p224 = por %p222, %p223
      %p226 = scmp.ne.s32.totalorder %s209, %s225
      %p227 = scmp.eq.s32.totalorder %s28, 0
      %p228 = por %p226, %p227
      %p229 = scmp.le.s32.totalorder 1, %s22
      %p230 = scmp.lt.s32.totalorder %s22, 3
      %p231 = pnand %p229, %p230
      %p232 = pneg %p231
      // Predicated region
      $region9: #{tpu_custom_call.1} parent=5 // pred_check
        _
      $region10: #{tpu_custom_call.1} parent=5 // pred_check_branch
        %234 = sbr.rel (%p231) target = $region12
      $region11: #{tpu_custom_call.1} parent=5 // pred_region
        %s235 = ssub.s32 %s22, 1
        // Predicated region
        $region13: #{tpu_custom_call.1} parent=11 // pred_check
          %p236 = pneg %p69
        $region14: #{tpu_custom_call.1} parent=11 // pred_check_branch
          %238 = sbr.rel (%p236) target = $region16
        $region15: #{tpu_custom_call.1} parent=11 // pred_region
          %s240 = ssub.s32 3072, 3072
          %241 = vsyncadd [#allocation7], %s240
          %s242 = sshll.u32 [#allocation6], 4
          %s243 = int_to_ptr.vmem [resolvable:$true] %s242
          %248 = dma.hbm_to_vmem [thread:$0]  %s1, 3072, %s243, [#allocation7], 384, 384, 24
        $region16: #{tpu_custom_call.1} parent=11 // pred_fallthru
          _
        // Predicated region
        $region17: #{tpu_custom_call.1} parent=11 // pred_check
          %p249 = pneg %p90
        $region18: #{tpu_custom_call.1} parent=11 // pred_check_branch
          %251 = sbr.rel (%p249) target = $region20
        $region19: #{tpu_custom_call.1} parent=11 // pred_region
          _
        $region20: #{tpu_custom_call.1} parent=11 // pred_fallthru
          _
        // Predicated region
        $region21: #{tpu_custom_call.1} parent=11 // pred_check
          %p252 = pneg %p111
        $region22: #{tpu_custom_call.1} parent=11 // pred_check_branch
          %254 = sbr.rel (%p252) target = $region24
        $region23: #{tpu_custom_call.1} parent=11 // pred_region
          %s256 = ssub.s32 512, 512
          %257 = vsyncadd [#allocation7], %s256
          %s258 = sshll.u32 [#allocation8], 4
          %s259 = int_to_ptr.vmem [resolvable:$true] %s258
          %264 = dma.hbm_to_vmem [thread:$0]  %s3, 512, %s259, [#allocation7], 256, 256, 16
        $region24: #{tpu_custom_call.1} parent=11 // pred_fallthru
          _
        // Predicated region
        $region25: #{tpu_custom_call.1} parent=11 // pred_check
          %p265 = pneg %p132
        $region26: #{tpu_custom_call.1} parent=11 // pred_check_branch
          %267 = sbr.rel (%p265) target = $region28
        $region27: #{tpu_custom_call.1} parent=11 // pred_region
          _
        $region28: #{tpu_custom_call.1} parent=11 // pred_fallthru
          _
        // Predicated region
        $region29: #{tpu_custom_call.1} parent=11 // pred_check
          %p268 = pneg %p153
        $region30: #{tpu_custom_call.1} parent=11 // pred_check_branch
          %270 = sbr.rel (%p268) target = $region32
        $region31: #{tpu_custom_call.1} parent=11 // pred_region
          %s272 = ssub.s32 2048, 2048
          %273 = vsyncadd [#allocation10], %s272
          %s274 = sshll.u32 [#allocation9], 4
          %s275 = int_to_ptr.vmem [resolvable:$true] %s274
          %280 = dma.hbm_to_vmem [thread:$0]  %s5, 2048, %s275, [#allocation10], 64, 64, 4
        $region32: #{tpu_custom_call.1} parent=11 // pred_fallthru
          _
        // Predicated region
        $region33: #{tpu_custom_call.1} parent=11 // pred_check
          %p281 = pneg %p174
        $region34: #{tpu_custom_call.1} parent=11 // pred_check_branch
          %283 = sbr.rel (%p281) target = $region36
        $region35: #{tpu_custom_call.1} parent=11 // pred_region
          %s285 = ssub.s32 512, 512
          %286 = vsyncadd [#allocation10], %s285
          %s287 = sshll.u32 [#allocation11], 4
          %s288 = int_to_ptr.vmem [resolvable:$true] %s287
          %293 = dma.hbm_to_vmem [thread:$0]  %s6, 512, %s288, [#allocation10], 64, 64, 4
        $region36: #{tpu_custom_call.1} parent=11 // pred_fallthru
          _
        // Predicated region
        $region37: #{tpu_custom_call.1} parent=11 // pred_check
          %p294 = pneg %p195
        $region38: #{tpu_custom_call.1} parent=11 // pred_check_branch
          %296 = sbr.rel (%p294) target = $region40
        $region39: #{tpu_custom_call.1} parent=11 // pred_region
          _
        $region40: #{tpu_custom_call.1} parent=11 // pred_fallthru
          _
      $region12: #{tpu_custom_call.1} parent=5 // pred_fallthru
        _
      %p297 = scmp.lt.s32.totalorder %s22, 2
      // Predicated region
      $region41: #{tpu_custom_call.1} parent=5 // pred_check
        %p298 = pneg %p297
      $region42: #{tpu_custom_call.1} parent=5 // pred_check_branch
        %300 = sbr.rel (%p298) target = $region44
      $region43: #{tpu_custom_call.1} parent=5 // pred_region
        // Predicated region
        $region45: #{tpu_custom_call.1} parent=43 // pred_check
          %p301 = pneg %p42
        $region46: #{tpu_custom_call.1} parent=43 // pred_check_branch
          %303 = sbr.rel (%p301) target = $region48
        $region47: #{tpu_custom_call.1} parent=43 // pred_region
          %s304 = sand.u32 %s32, 1
          %s305 = scalar_lea.sflag [#allocation4], %s304
          %s306 = sand.u32 %s32, 1
          %s307 = smul.addr %s306, 8
          %s308 = scalar_lea.vmem [#allocation3], %s307
          %s310 = ssub.s32 128, 128
          %311 = vsyncadd %s305, %s310
          %s312 = smul.addr %s22, 2
          %s313 = smul.addr %s312, 64
          %s314 = scalar_lea.hbm %s0, %s313
          %s315 = sshll.u32 %s308, 4
          %s316 = int_to_ptr.vmem [resolvable:$true] %s315
          %321 = dma.hbm_to_vmem [thread:$0]  %s314, 128, %s316, %s305, 64, 64, 4
        $region48: #{tpu_custom_call.1} parent=43 // pred_fallthru
          _
      $region44: #{tpu_custom_call.1} parent=5 // pred_fallthru
        _
      %p322 = scmp.le.s32.totalorder 1, %s22
      %p323 = scmp.lt.s32.totalorder %s22, 3
      %p324 = pnand %p322, %p323
      %p325 = pneg %p324
      // Predicated region
      $region49: #{tpu_custom_call.1} parent=5 // pred_check
        _
      $region50: #{tpu_custom_call.1} parent=5 // pred_check_branch
        %327 = sbr.rel (%p324) target = $region52
      $region51: #{tpu_custom_call.1} parent=5 // pred_region
        %s328 = ssub.s32 %s22, 1
        %s329 = sand.u32 %s35, 1
        %s330 = scalar_lea.sflag [#allocation4], %s329
        %s331 = sand.u32 %s35, 1
        %s332 = smul.addr %s331, 8
        %s333 = scalar_lea.vmem [#allocation3], %s332
        // Predicated region
        $region53: #{tpu_custom_call.1} parent=51 // pred_check
          %p334 = pneg %p48
        $region54: #{tpu_custom_call.1} parent=51 // pred_check_branch
          %336 = sbr.rel (%p334) target = $region56
        $region55: #{tpu_custom_call.1} parent=51 // pred_region
          %337 = dma.done %s330, 128
        $region56: #{tpu_custom_call.1} parent=51 // pred_fallthru
          _
        // Predicated region
        $region57: #{tpu_custom_call.1} parent=51 // pred_check
          %p338 = pneg %p69
        $region58: #{tpu_custom_call.1} parent=51 // pred_check_branch
          %340 = sbr.rel (%p338) target = $region60
        $region59: #{tpu_custom_call.1} parent=51 // pred_region
          %341 = dma.done [#allocation7], 3072
        $region60: #{tpu_custom_call.1} parent=51 // pred_fallthru
          _
        // Predicated region
        $region61: #{tpu_custom_call.1} parent=51 // pred_check
          %p342 = pneg %p111
        $region62: #{tpu_custom_call.1} parent=51 // pred_check_branch
          %344 = sbr.rel (%p342) target = $region64
        $region63: #{tpu_custom_call.1} parent=51 // pred_region
          %345 = dma.done [#allocation7], 512
        $region64: #{tpu_custom_call.1} parent=51 // pred_fallthru
          _
        // Predicated region
        $region65: #{tpu_custom_call.1} parent=51 // pred_check
          %p346 = pneg %p153
        $region66: #{tpu_custom_call.1} parent=51 // pred_check_branch
          %348 = sbr.rel (%p346) target = $region68
        $region67: #{tpu_custom_call.1} parent=51 // pred_region
          %349 = dma.done [#allocation10], 2048
        $region68: #{tpu_custom_call.1} parent=51 // pred_fallthru
          _
        // Predicated region
        $region69: #{tpu_custom_call.1} parent=51 // pred_check
          %p350 = pneg %p174
        $region70: #{tpu_custom_call.1} parent=51 // pred_check_branch
          %352 = sbr.rel (%p350) target = $region72
        $region71: #{tpu_custom_call.1} parent=51 // pred_region
          %353 = dma.done [#allocation10], 512
        $region72: #{tpu_custom_call.1} parent=51 // pred_fallthru
          _
        %s354 = sand.u32 %s35, 1
        %s355 = scalar_lea.sflag [#allocation4], %s354
        %s356 = sand.u32 %s35, 1
        %s357 = smul.addr %s356, 8
        %s358 = scalar_lea.vmem [#allocation3], %s357
        %p359 = pneg %p48
        %p360 = pneg %p45
        %p361 = pneg %p69
        %p362 = pneg %p66
        %p363 = pneg %p90
        %p364 = pneg %p87
        %p365 = pneg %p111
        %p366 = pneg %p108
        %p367 = pneg %p132
        %p368 = pneg %p129
        %p369 = pneg %p153
        %p370 = pneg %p150
        %p371 = pneg %p174
        %p372 = pneg %p171
        %p373 = pneg %p195
        %p374 = pneg %p192
        %p375 = pneg %p221
        %p376 = pneg %p218
        %s377 = sand.u32 %s208, 1
        %s378 = scalar_lea.sflag [#allocation5], %s377
        %s379 = sand.u32 %s208, 1
        %s380 = smul.addr %s379, 16
        %s381 = scalar_lea.vmem [#allocation12], %s380
        %v383 = vld [vmem:[%s333] sm:$0xf]
        %v384 = vld [vmem:[%s333 + $0x4] sm:$0xf]
        %v385 = vld [vmem:[#allocation6] sm:$0xff]
        %v386 = vld [vmem:[#allocation6 + $0x8] sm:$0xff]
        %v387 = vld [vmem:[#allocation6 + $0x10] sm:$0xff]
        %v388 = vld [vmem:[#allocation6 + $0x18] sm:$0xff]
        %v389 = vld [vmem:[#allocation6 + $0x20] sm:$0xff]
        %v390 = vld [vmem:[#allocation6 + $0x28] sm:$0xff]
        %v391 = vld [vmem:[#allocation6 + $0x30] sm:$0xff]
        %v392 = vld [vmem:[#allocation6 + $0x38] sm:$0xff]
        %v393 = vld [vmem:[#allocation6 + $0x40] sm:$0xff]
        %v394 = vld [vmem:[#allocation6 + $0x48] sm:$0xff]
        %v395 = vld [vmem:[#allocation6 + $0x50] sm:$0xff]
        %v396 = vld [vmem:[#allocation6 + $0x58] sm:$0xff]
        %v397 = vld [vmem:[#allocation6 + $0x60] sm:$0xff]
        %v398 = vld [vmem:[#allocation6 + $0x68] sm:$0xff]
        %v399 = vld [vmem:[#allocation6 + $0x70] sm:$0xff]
        %v400 = vld [vmem:[#allocation6 + $0x78] sm:$0xff]
        %v401 = vld [vmem:[#allocation6 + $0x80] sm:$0xff]
        %v402 = vld [vmem:[#allocation6 + $0x88] sm:$0xff]
        %v403 = vld [vmem:[#allocation6 + $0x90] sm:$0xff]
        %v404 = vld [vmem:[#allocation6 + $0x98] sm:$0xff]
        %v405 = vld [vmem:[#allocation6 + $0xa0] sm:$0xff]
        %v406 = vld [vmem:[#allocation6 + $0xa8] sm:$0xff]
        %v407 = vld [vmem:[#allocation6 + $0xb0] sm:$0xff]
        %v408 = vld [vmem:[#allocation6 + $0xb8] sm:$0xff]
        %v409 = vld [vmem:[%s2] sm:$0x3f]
        %v411 = vlaneseq
        %v412 = vshrl.u32 %v411, 7
        %v413 = vsub.s32 0, %v412
        %v414 = vrot.slane %v409, %v413
        %v415 = vlaneseq
        %v416 = vshrl.u32 %v415, 7
        %v417 = vsub.s32 1, %v416
        %v418 = vrot.slane %v409, %v417
        %v419 = vlaneseq
        %v420 = vshrl.u32 %v419, 7
        %v421 = vsub.s32 2, %v420
        %v422 = vrot.slane %v409, %v421
        %v423 = vlaneseq
        %v424 = vshrl.u32 %v423, 7
        %v425 = vsub.s32 3, %v424
        %v426 = vrot.slane %v409, %v425
        %v427 = vlaneseq
        %v428 = vshrl.u32 %v427, 7
        %v429 = vsub.s32 4, %v428
        %v430 = vrot.slane %v409, %v429
        %v431 = vlaneseq
        %v432 = vshrl.u32 %v431, 7
        %v433 = vsub.s32 5, %v432
        %v434 = vrot.slane %v409, %v433
        %v443 = vunpack.c.l.b16 %v383
        %v444 = vunpack.c.l.b16 %v384
        %v445 = vpack.c.b16 %v444, %v443
        %v470 = vunpack.c.l.b16 %v385
        %v471 = vunpack.c.h.b16 %v385
        %v472 = vunpack.c.l.b16 %v386
        %v473 = vunpack.c.h.b16 %v386
        %v474 = vunpack.c.l.b16 %v387
        %v475 = vunpack.c.h.b16 %v387
        %v476 = vunpack.c.l.b16 %v388
        %v477 = vunpack.c.h.b16 %v388
        %v478 = vunpack.c.l.b16 %v389
        %v479 = vunpack.c.h.b16 %v389
        %v480 = vunpack.c.l.b16 %v390
        %v481 = vunpack.c.h.b16 %v390
        %v482 = vunpack.c.l.b16 %v391
        %v483 = vunpack.c.h.b16 %v391
        %v484 = vunpack.c.l.b16 %v392
        %v485 = vunpack.c.h.b16 %v392
        %v486 = vunpack.c.l.b16 %v393
        %v487 = vunpack.c.h.b16 %v393
        %v488 = vunpack.c.l.b16 %v394
        %v489 = vunpack.c.h.b16 %v394
        %v490 = vunpack.c.l.b16 %v395
        %v491 = vunpack.c.h.b16 %v395
        %v492 = vunpack.c.l.b16 %v396
        %v493 = vunpack.c.h.b16 %v396
        %v494 = vunpack.c.l.b16 %v397
        %v495 = vunpack.c.h.b16 %v397
        %v496 = vunpack.c.l.b16 %v398
        %v497 = vunpack.c.h.b16 %v398
        %v498 = vunpack.c.l.b16 %v399
        %v499 = vunpack.c.h.b16 %v399
        %v500 = vunpack.c.l.b16 %v400
        %v501 = vunpack.c.h.b16 %v400
        %v502 = vunpack.c.l.b16 %v401
        %v503 = vunpack.c.h.b16 %v401
        %v504 = vunpack.c.l.b16 %v402
        %v505 = vunpack.c.h.b16 %v402
        %v506 = vunpack.c.l.b16 %v403
        %v507 = vunpack.c.h.b16 %v403
        %v508 = vunpack.c.l.b16 %v404
        %v509 = vunpack.c.h.b16 %v404
        %v510 = vunpack.c.l.b16 %v405
        %v511 = vunpack.c.h.b16 %v405
        %v512 = vunpack.c.l.b16 %v406
        %v513 = vunpack.c.h.b16 %v406
        %v514 = vunpack.c.l.b16 %v407
        %v515 = vunpack.c.h.b16 %v407
        %v516 = vunpack.c.l.b16 %v408
        %v517 = vunpack.c.h.b16 %v408
        %v518 = vpack.c.b16 %v476, %v470
        %v519 = vpack.c.b16 %v477, %v471
        %v520 = vpack.c.b16 %v478, %v472
        %v521 = vpack.c.b16 %v479, %v473
        %v522 = vpack.c.b16 %v480, %v474
        %v523 = vpack.c.b16 %v481, %v475
        %v524 = vpack.c.b16 %v488, %v482
        %v525 = vpack.c.b16 %v489, %v483
        %v526 = vpack.c.b16 %v490, %v484
        %v527 = vpack.c.b16 %v491, %v485
        %v528 = vpack.c.b16 %v492, %v486
        %v529 = vpack.c.b16 %v493, %v487
        %v530 = vpack.c.b16 %v500, %v494
        %v531 = vpack.c.b16 %v501, %v495
        %v532 = vpack.c.b16 %v502, %v496
        %v533 = vpack.c.b16 %v503, %v497
        %v534 = vpack.c.b16 %v504, %v498
        %v535 = vpack.c.b16 %v505, %v499
        %v536 = vpack.c.b16 %v512, %v506
        %v537 = vpack.c.b16 %v513, %v507
        %v538 = vpack.c.b16 %v514, %v508
        %v539 = vpack.c.b16 %v515, %v509
        %v540 = vpack.c.b16 %v516, %v510
        %v541 = vpack.c.b16 %v517, %v511
        %vm566 = vcmask 523264
        %v568 = vsel %vm566, %v445, 0
        %570 = vmatprep.subr.bf16.mxu0 %v519
        %571 = vmatpush1.bf16.msra.mxu0 %v518
        %572 = vmatprep.subr.bf16.mxu0 %v525
        %573 = vmatpush1.bf16.msra.mxu0 %v524
        %574 = vmatprep.subr.bf16.mxu0 %v531
        %575 = vmatpush1.bf16.msra.mxu0 %v530
        %576 = vmatprep.subr.bf16.mxu0 %v537
        %577 = vmatpush1.bf16.msra.mxu0 %v536
        %578 = vmatprep.subr.bf16.mxu0 0
        %579 = vmatpush1.bf16.msra.mxu0 0
        %580 = vmatprep.subr.bf16.mxu0 0
        %581 = vmatpush1.bf16.msra.mxu0 0
        %582 = vmatprep.subr.bf16.mxu0 0
        %583 = vmatpush1.bf16.msra.mxu0 0
        %584 = vmatprep.subr.bf16.mxu0 0
        %585 = vmatpush1.bf16.msra.mxu0 0
        %586 = vmatprep.subr.bf16.mxu0 0
        %587 = vmatpush1.bf16.msra.mxu0 0
        %588 = vmatprep.subr.bf16.mxu0 0
        %589 = vmatpush1.bf16.msra.mxu0 0
        %590 = vmatprep.subr.bf16.mxu0 0
        %591 = vmatpush1.bf16.msra.mxu0 0
        %592 = vmatprep.subr.bf16.mxu0 0
        %593 = vmatpush1.bf16.msra.mxu0 0
        %594 = vmatprep.subr.bf16.mxu0 0
        %595 = vmatpush1.bf16.msra.mxu0 0
        %596 = vmatprep.subr.bf16.mxu0 0
        %597 = vmatpush1.bf16.msra.mxu0 0
        %598 = vmatprep.subr.bf16.mxu0 0
        %599 = vmatpush1.bf16.msra.mxu0 0
        %600 = vmatprep.subr.bf16.mxu0 0
        %601 = vmatpush1.bf16.msra.mxu0 0
        %602 = vmatprep.mubr.bf16.mxu0 0
        %603 = vmatmul.mubr.bf16.gmra.mrb[0].mxu0 %v568
        %v604 = vpop.f32.mrb[0].mxu0
        %v605 = vadd.f32 %v414, %v604
        %v606 = vpop.f32.mrb[0].mxu0
        %v607 = vadd.f32 %v418, %v606
        %v608 = vpop.f32.mrb[0].mxu0
        %v609 = vadd.f32 %v414, %v608
        %v610 = vpop.f32.mrb[0].mxu0
        %v611 = vadd.f32 %v418, %v610
        %612 = vdwg.mxu0
        %613 = vmatprep.subr.bf16.mxu0 %v521
        %614 = vmatpush1.bf16.msra.mxu0 %v520
        %615 = vmatprep.subr.bf16.mxu0 %v527
        %616 = vmatpush1.bf16.msra.mxu0 %v526
        %617 = vmatprep.subr.bf16.mxu0 %v533
        %618 = vmatpush1.bf16.msra.mxu0 %v532
        %619 = vmatprep.subr.bf16.mxu0 %v539
        %620 = vmatpush1.bf16.msra.mxu0 %v538
        %621 = vmatprep.subr.bf16.mxu0 0
        %622 = vmatpush1.bf16.msra.mxu0 0
        %623 = vmatprep.subr.bf16.mxu0 0
        %624 = vmatpush1.bf16.msra.mxu0 0
        %625 = vmatprep.subr.bf16.mxu0 0
        %626 = vmatpush1.bf16.msra.mxu0 0
        %627 = vmatprep.subr.bf16.mxu0 0
        %628 = vmatpush1.bf16.msra.mxu0 0
        %629 = vmatprep.subr.bf16.mxu0 0
        %630 = vmatpush1.bf16.msra.mxu0 0
        %631 = vmatprep.subr.bf16.mxu0 0
        %632 = vmatpush1.bf16.msra.mxu0 0
        %633 = vmatprep.subr.bf16.mxu0 0
        %634 = vmatpush1.bf16.msra.mxu0 0
        %635 = vmatprep.subr.bf16.mxu0 0
        %636 = vmatpush1.bf16.msra.mxu0 0
        %637 = vmatprep.subr.bf16.mxu0 0
        %638 = vmatpush1.bf16.msra.mxu0 0
        %639 = vmatprep.subr.bf16.mxu0 0
        %640 = vmatpush1.bf16.msra.mxu0 0
        %641 = vmatprep.subr.bf16.mxu0 0
        %642 = vmatpush1.bf16.msra.mxu0 0
        %643 = vmatprep.subr.bf16.mxu0 0
        %644 = vmatpush1.bf16.msra.mxu0 0
        %645 = vmatprep.mubr.bf16.mxu0 0
        %646 = vmatmul.mubr.bf16.gmra.mrb[0].mxu0 %v568
        %v647 = vpop.f32.mrb[0].mxu0
        %v648 = vadd.f32 %v422, %v647
        %v649 = vpop.f32.mrb[0].mxu0
        %v650 = vadd.f32 %v426, %v649
        %v651 = vpop.f32.mrb[0].mxu0
        %v652 = vadd.f32 %v422, %v651
        %v653 = vpop.f32.mrb[0].mxu0
        %v654 = vadd.f32 %v426, %v653
        %655 = vdwg.mxu0
        %656 = vmatprep.subr.bf16.mxu0 %v523
        %657 = vmatpush1.bf16.msra.mxu0 %v522
        %658 = vmatprep.subr.bf16.mxu0 %v529
        %659 = vmatpush1.bf16.msra.mxu0 %v528
        %660 = vmatprep.subr.bf16.mxu0 %v535
        %661 = vmatpush1.bf16.msra.mxu0 %v534
        %662 = vmatprep.subr.bf16.mxu0 %v541
        %663 = vmatpush1.bf16.msra.mxu0 %v540
        %664 = vmatprep.subr.bf16.mxu0 0
        %665 = vmatpush1.bf16.msra.mxu0 0
        %666 = vmatprep.subr.bf16.mxu0 0
        %667 = vmatpush1.bf16.msra.mxu0 0
        %668 = vmatprep.subr.bf16.mxu0 0
        %669 = vmatpush1.bf16.msra.mxu0 0
        %670 = vmatprep.subr.bf16.mxu0 0
        %671 = vmatpush1.bf16.msra.mxu0 0
        %672 = vmatprep.subr.bf16.mxu0 0
        %673 = vmatpush1.bf16.msra.mxu0 0
        %674 = vmatprep.subr.bf16.mxu0 0
        %675 = vmatpush1.bf16.msra.mxu0 0
        %676 = vmatprep.subr.bf16.mxu0 0
        %677 = vmatpush1.bf16.msra.mxu0 0
        %678 = vmatprep.subr.bf16.mxu0 0
        %679 = vmatpush1.bf16.msra.mxu0 0
        %680 = vmatprep.subr.bf16.mxu0 0
        %681 = vmatpush1.bf16.msra.mxu0 0
        %682 = vmatprep.subr.bf16.mxu0 0
        %683 = vmatpush1.bf16.msra.mxu0 0
        %684 = vmatprep.subr.bf16.mxu0 0
        %685 = vmatpush1.bf16.msra.mxu0 0
        %686 = vmatprep.subr.bf16.mxu0 0
        %687 = vmatpush1.bf16.msra.mxu0 0
        %688 = vmatprep.mubr.bf16.mxu0 0
        %689 = vmatmul.mubr.bf16.gmra.mrb[0].mxu0 %v568
        %v690 = vpop.f32.mrb[0].mxu0
        %v691 = vadd.f32 %v430, %v690
        %v692 = vpop.f32.mrb[0].mxu0
        %v693 = vadd.f32 %v434, %v692
        %v694 = vpop.f32.mrb[0].mxu0
        %v695 = vadd.f32 %v430, %v694
        %v696 = vpop.f32.mrb[0].mxu0
        %v697 = vadd.f32 %v434, %v696
        %698 = vdwg.mxu0
        %v699 = vmax.f32 %v605, 0.0
        %v700 = vmax.f32 %v607, 0.0
        %v701 = vmax.f32 %v648, 0.0
        %v702 = vmax.f32 %v650, 0.0
        %v703 = vmax.f32 %v691, 0.0
        %v704 = vmax.f32 %v693, 0.0
        %v705 = vmax.f32 %v609, 0.0
        %v706 = vmax.f32 %v611, 0.0
        %v707 = vmax.f32 %v652, 0.0
        %v708 = vmax.f32 %v654, 0.0
        %v709 = vmax.f32 %v695, 0.0
        %v710 = vmax.f32 %v697, 0.0
        %711 = vst [vmem:[#allocation2] sm:$0x3] 0.0
        %712 = vst [vmem:[#allocation2 + $0x8] sm:$0x3] 0.0
        %713 = vst [vmem:[#allocation2 + $0x10] sm:$0x3] 0.0
        %714 = vst [vmem:[#allocation2 + $0x18] sm:$0x3] 0.0
        %715 = vst [vmem:[#allocation2 + $0x20] sm:$0x3] 0.0
        %716 = vst [vmem:[#allocation2 + $0x28] sm:$0x3] 0.0
        %717 = vst [vmem:[#allocation2 + $0x60] sm:$0xc] 0.0
        %718 = vst [vmem:[#allocation2 + $0x68] sm:$0xc] 0.0
        %719 = vst [vmem:[#allocation2 + $0x70] sm:$0xc] 0.0
        %720 = vst [vmem:[#allocation2 + $0x78] sm:$0xc] 0.0
        %721 = vst [vmem:[#allocation2 + $0x80] sm:$0xc] 0.0
        %722 = vst [vmem:[#allocation2 + $0x88] sm:$0xc] 0.0
        %vm735 = vcmask 1041408
        %v736 = vrot.slane %v699, 6
        %v737 = vrot.slane %v700, 6
        %v738 = vrot.slane %v701, 6
        %v739 = vrot.slane %v702, 6
        %v740 = vrot.slane %v703, 6
        %v741 = vrot.slane %v704, 6
        %v742 = vrot.slane %v705, 6
        %v743 = vsel %vm735, %v736, %v742
        %v744 = vrot.slane %v706, 6
        %v745 = vsel %vm735, %v737, %v744
        %v746 = vrot.slane %v707, 6
        %v747 = vsel %vm735, %v738, %v746
        %v748 = vrot.slane %v708, 6
        %v749 = vsel %vm735, %v739, %v748
        %v750 = vrot.slane %v709, 6
        %v751 = vsel %vm735, %v740, %v750
        %v752 = vrot.slane %v710, 6
        %v753 = vsel %vm735, %v741, %v752
        %772 = vst [vmem:[#allocation2] sm:$0xfc] %v736
        %773 = vst [vmem:[#allocation2 + $0x8] sm:$0xfc] %v737
        %774 = vst [vmem:[#allocation2 + $0x10] sm:$0xfc] %v738
        %775 = vst [vmem:[#allocation2 + $0x18] sm:$0xfc] %v739
        %776 = vst [vmem:[#allocation2 + $0x20] sm:$0xfc] %v740
        %777 = vst [vmem:[#allocation2 + $0x28] sm:$0xfc] %v741
        %778 = vst [vmem:[#allocation2 + $0x30] sm:$0xff] %v743
        %779 = vst [vmem:[#allocation2 + $0x38] sm:$0xff] %v745
        %780 = vst [vmem:[#allocation2 + $0x40] sm:$0xff] %v747
        %781 = vst [vmem:[#allocation2 + $0x48] sm:$0xff] %v749
        %782 = vst [vmem:[#allocation2 + $0x50] sm:$0xff] %v751
        %783 = vst [vmem:[#allocation2 + $0x58] sm:$0xff] %v753
        %784 = vst [vmem:[#allocation2 + $0x60] sm:$0x3] %v742
        %785 = vst [vmem:[#allocation2 + $0x68] sm:$0x3] %v744
        %786 = vst [vmem:[#allocation2 + $0x70] sm:$0x3] %v746
        %787 = vst [vmem:[#allocation2 + $0x78] sm:$0x3] %v748
        %788 = vst [vmem:[#allocation2 + $0x80] sm:$0x3] %v750
        %789 = vst [vmem:[#allocation2 + $0x88] sm:$0x3] %v752
        %v790 = vld [vmem:[#allocation8] sm:$0xff]
        %v791 = vld [vmem:[#allocation8 + $0x8] sm:$0xff]
        %v792 = vld [vmem:[#allocation8 + $0x10] sm:$0x1]
        %v793 = vld [vmem:[#allocation8 + $0x18] sm:$0x1]
        %v794 = vld [vmem:[#allocation2] sm:$0xff]
        %v795 = vld [vmem:[#allocation2 + $0x8] sm:$0xff]
        %v796 = vld [vmem:[#allocation2 + $0x30] sm:$0xff]
        %v797 = vld [vmem:[#allocation2 + $0x38] sm:$0xff]
        %v798 = vlaneseq
        %v799 = vshrl.u32 %v798, 7
        %v800 = vsub.s32 0, %v799
        %v801 = vrot.slane %v790, %v800
        %v802 = vlaneseq
        %v803 = vshrl.u32 %v802, 7
        %v804 = vsub.s32 0, %v803
        %v805 = vrot.slane %v791, %v804
        %v806 = vmul.f32 %v794, %v801
        %v807 = vmul.f32 %v795, %v805
        %v808 = vmul.f32 %v796, %v801
        %v809 = vmul.f32 %v797, %v805
        %v810 = vld [vmem:[#allocation2 + $0x10] sm:$0xff]
        %v811 = vld [vmem:[#allocation2 + $0x18] sm:$0xff]
        %v812 = vld [vmem:[#allocation2 + $0x40] sm:$0xff]
        %v813 = vld [vmem:[#allocation2 + $0x48] sm:$0xff]
        %v814 = vlaneseq
        %v815 = vshrl.u32 %v814, 7
        %v816 = vsub.s32 1, %v815
        %v817 = vrot.slane %v790, %v816
        %v818 = vlaneseq
        %v819 = vshrl.u32 %v818, 7
        %v820 = vsub.s32 1, %v819
        %v821 = vrot.slane %v791, %v820
        %v822 = vmul.f32 %v810, %v817
        %v823 = vmul.f32 %v811, %v821
        %v824 = vmul.f32 %v812, %v817
        %v825 = vmul.f32 %v813, %v821
        %v826 = vadd.f32 %v806, %v822
        %v827 = vadd.f32 %v807, %v823
        %v828 = vadd.f32 %v808, %v824
        %v829 = vadd.f32 %v809, %v825
        %v830 = vld [vmem:[#allocation2 + $0x20] sm:$0xff]
        %v831 = vld [vmem:[#allocation2 + $0x28] sm:$0xff]
        %v832 = vld [vmem:[#allocation2 + $0x50] sm:$0xff]
        %v833 = vld [vmem:[#allocation2 + $0x58] sm:$0xff]
        %v834 = vlaneseq
        %v835 = vshrl.u32 %v834, 7
        %v836 = vsub.s32 2, %v835
        %v837 = vrot.slane %v790, %v836
        %v838 = vlaneseq
        %v839 = vshrl.u32 %v838, 7
        %v840 = vsub.s32 2, %v839
        %v841 = vrot.slane %v791, %v840
        %v842 = vmul.f32 %v830, %v837
        %v843 = vmul.f32 %v831, %v841
        %v844 = vmul.f32 %v832, %v837
        %v845 = vmul.f32 %v833, %v841
        %v846 = vadd.f32 %v826, %v842
        %v847 = vadd.f32 %v827, %v843
        %v848 = vadd.f32 %v828, %v844
        %v849 = vadd.f32 %v829, %v845
        %v850 = vld [vmem:[#allocation2] sm:$0xfc]
        %v851 = vld [vmem:[#allocation2 + $0x8] sm:$0xfc]
        %v852 = vld [vmem:[#allocation2 + $0x60] sm:$0x3]
        %v853 = vld [vmem:[#allocation2 + $0x68] sm:$0x3]
        %v854 = vlaneseq
        %v855 = vshrl.u32 %v854, 7
        %v856 = vsub.s32 3, %v855
        %v857 = vrot.slane %v790, %v856
        %v858 = vlaneseq
        %v859 = vshrl.u32 %v858, 7
        %v860 = vsub.s32 3, %v859
        %v861 = vrot.slane %v791, %v860
        %v862 = vmul.f32 %v850, %v857
        %v863 = vmul.f32 %v851, %v861
        %v864 = vmul.f32 %v796, %v857
        %v865 = vmul.f32 %v797, %v861
        %v866 = vmul.f32 %v852, %v857
        %v867 = vmul.f32 %v853, %v861
        %vm874 = vcmask 1045504
        %v875 = vrot.slane %v862, 2
        %v876 = vrot.slane %v864, 2
        %v877 = vsel %vm874, %v875, %v876
        %v878 = vrot.slane %v863, 2
        %v879 = vrot.slane %v865, 2
        %v880 = vsel %vm874, %v878, %v879
        %v881 = vrot.slane %v866, 2
        %v882 = vsel %vm874, %v876, %v881
        %v883 = vrot.slane %v867, 2
        %v884 = vsel %vm874, %v879, %v883
        %v889 = vadd.f32 %v846, %v877
        %v890 = vadd.f32 %v847, %v880
        %v891 = vadd.f32 %v848, %v882
        %v892 = vadd.f32 %v849, %v884
        %v893 = vld [vmem:[#allocation2 + $0x10] sm:$0xfc]
        %v894 = vld [vmem:[#allocation2 + $0x18] sm:$0xfc]
        %v895 = vld [vmem:[#allocation2 + $0x70] sm:$0x3]
        %v896 = vld [vmem:[#allocation2 + $0x78] sm:$0x3]
        %v897 = vlaneseq
        %v898 = vshrl.u32 %v897, 7
        %v899 = vsub.s32 4, %v898
        %v900 = vrot.slane %v790, %v899
        %v901 = vlaneseq
        %v902 = vshrl.u32 %v901, 7
        %v903 = vsub.s32 4, %v902
        %v904 = vrot.slane %v791, %v903
        %v905 = vmul.f32 %v893, %v900
        %v906 = vmul.f32 %v894, %v904
        %v907 = vmul.f32 %v812, %v900
        %v908 = vmul.f32 %v813, %v904
        %v909 = vmul.f32 %v895, %v900
        %v910 = vmul.f32 %v896, %v904
        %v917 = vrot.slane %v905, 2
        %v918 = vrot.slane %v907, 2
        %v919 = vsel %vm874, %v917, %v918
        %v920 = vrot.slane %v906, 2
        %v921 = vrot.slane %v908, 2
        %v922 = vsel %vm874, %v920, %v921
        %v923 = vrot.slane %v909, 2
        %v924 = vsel %vm874, %v918, %v923
        %v925 = vrot.slane %v910, 2
        %v926 = vsel %vm874, %v921, %v925
        %v931 = vadd.f32 %v889, %v919
        %v932 = vadd.f32 %v890, %v922
        %v933 = vadd.f32 %v891, %v924
        %v934 = vadd.f32 %v892, %v926
        %v935 = vld [vmem:[#allocation2 + $0x20] sm:$0xfc]
        %v936 = vld [vmem:[#allocation2 + $0x28] sm:$0xfc]
        %v937 = vld [vmem:[#allocation2 + $0x80] sm:$0x3]
        %v938 = vld [vmem:[#allocation2 + $0x88] sm:$0x3]
        %v939 = vlaneseq
        %v940 = vshrl.u32 %v939, 7
        %v941 = vsub.s32 5, %v940
        %v942 = vrot.slane %v790, %v941
        %v943 = vlaneseq
        %v944 = vshrl.u32 %v943, 7
        %v945 = vsub.s32 5, %v944
        %v946 = vrot.slane %v791, %v945
        %v947 = vmul.f32 %v935, %v942
        %v948 = vmul.f32 %v936, %v946
        %v949 = vmul.f32 %v832, %v942
        %v950 = vmul.f32 %v833, %v946
        %v951 = vmul.f32 %v937, %v942
        %v952 = vmul.f32 %v938, %v946
        %v959 = vrot.slane %v947, 2
        %v960 = vrot.slane %v949, 2
        %v961 = vsel %vm874, %v959, %v960
        %v962 = vrot.slane %v948, 2
        %v963 = vrot.slane %v950, 2
        %v964 = vsel %vm874, %v962, %v963
        %v965 = vrot.slane %v951, 2
        %v966 = vsel %vm874, %v960, %v965
        %v967 = vrot.slane %v952, 2
        %v968 = vsel %vm874, %v963, %v967
        %v973 = vadd.f32 %v931, %v961
        %v974 = vadd.f32 %v932, %v964
        %v975 = vadd.f32 %v933, %v966
        %v976 = vadd.f32 %v934, %v968
        %v977 = vld [vmem:[#allocation2] sm:$0xf0]
        %v978 = vld [vmem:[#allocation2 + $0x8] sm:$0xf0]
        %v979 = vld [vmem:[#allocation2 + $0x60] sm:$0xf]
        %v980 = vld [vmem:[#allocation2 + $0x68] sm:$0xf]
        %v981 = vlaneseq
        %v982 = vshrl.u32 %v981, 7
        %v983 = vsub.s32 6, %v982
        %v984 = vrot.slane %v790, %v983
        %v985 = vlaneseq
        %v986 = vshrl.u32 %v985, 7
        %v987 = vsub.s32 6, %v986
        %v988 = vrot.slane %v791, %v987
        %v989 = vmul.f32 %v977, %v984
        %v990 = vmul.f32 %v978, %v988
        %v991 = vmul.f32 %v796, %v984
        %v992 = vmul.f32 %v797, %v988
        %v993 = vmul.f32 %v979, %v984
        %v994 = vmul.f32 %v980, %v988
        %vm1001 = vcmask 1043456
        %v1002 = vrot.slane %v989, 4
        %v1003 = vrot.slane %v991, 4
        %v1004 = vsel %vm1001, %v1002, %v1003
        %v1005 = vrot.slane %v990, 4
        %v1006 = vrot.slane %v992, 4
        %v1007 = vsel %vm1001, %v1005, %v1006
        %v1008 = vrot.slane %v993, 4
        %v1009 = vsel %vm1001, %v1003, %v1008
        %v1010 = vrot.slane %v994, 4
        %v1011 = vsel %vm1001, %v1006, %v1010
        %v1016 = vadd.f32 %v973, %v1004
        %v1017 = vadd.f32 %v974, %v1007
        %v1018 = vadd.f32 %v975, %v1009
        %v1019 = vadd.f32 %v976, %v1011
        %v1020 = vld [vmem:[#allocation2 + $0x10] sm:$0xf0]
        %v1021 = vld [vmem:[#allocation2 + $0x18] sm:$0xf0]
        %v1022 = vld [vmem:[#allocation2 + $0x70] sm:$0xf]
        %v1023 = vld [vmem:[#allocation2 + $0x78] sm:$0xf]
        %v1024 = vlaneseq
        %v1025 = vshrl.u32 %v1024, 7
        %v1026 = vsub.s32 7, %v1025
        %v1027 = vrot.slane %v790, %v1026
        %v1028 = vlaneseq
        %v1029 = vshrl.u32 %v1028, 7
        %v1030 = vsub.s32 7, %v1029
        %v1031 = vrot.slane %v791, %v1030
        %v1032 = vmul.f32 %v1020, %v1027
        %v1033 = vmul.f32 %v1021, %v1031
        %v1034 = vmul.f32 %v812, %v1027
        %v1035 = vmul.f32 %v813, %v1031
        %v1036 = vmul.f32 %v1022, %v1027
        %v1037 = vmul.f32 %v1023, %v1031
        %v1044 = vrot.slane %v1032, 4
        %v1045 = vrot.slane %v1034, 4
        %v1046 = vsel %vm1001, %v1044, %v1045
        %v1047 = vrot.slane %v1033, 4
        %v1048 = vrot.slane %v1035, 4
        %v1049 = vsel %vm1001, %v1047, %v1048
        %v1050 = vrot.slane %v1036, 4
        %v1051 = vsel %vm1001, %v1045, %v1050
        %v1052 = vrot.slane %v1037, 4
        %v1053 = vsel %vm1001, %v1048, %v1052
        %v1058 = vadd.f32 %v1016, %v1046
        %v1059 = vadd.f32 %v1017, %v1049
        %v1060 = vadd.f32 %v1018, %v1051
        %v1061 = vadd.f32 %v1019, %v1053
        %v1062 = vld [vmem:[#allocation2 + $0x20] sm:$0xf0]
        %v1063 = vld [vmem:[#allocation2 + $0x28] sm:$0xf0]
        %v1064 = vld [vmem:[#allocation2 + $0x80] sm:$0xf]
        %v1065 = vld [vmem:[#allocation2 + $0x88] sm:$0xf]
        %v1066 = vlaneseq
        %v1067 = vshrl.u32 %v1066, 7
        %v1068 = vsub.s32 0, %v1067
        %v1069 = vrot.slane %v792, %v1068
        %v1070 = vlaneseq
        %v1071 = vshrl.u32 %v1070, 7
        %v1072 = vsub.s32 0, %v1071
        %v1073 = vrot.slane %v793, %v1072
        %v1074 = vmul.f32 %v1062, %v1069
        %v1075 = vmul.f32 %v1063, %v1073
        %v1076 = vmul.f32 %v832, %v1069
        %v1077 = vmul.f32 %v833, %v1073
        %v1078 = vmul.f32 %v1064, %v1069
        %v1079 = vmul.f32 %v1065, %v1073
        %v1086 = vrot.slane %v1074, 4
        %v1087 = vrot.slane %v1076, 4
        %v1088 = vsel %vm1001, %v1086, %v1087
        %v1089 = vrot.slane %v1075, 4
        %v1090 = vrot.slane %v1077, 4
        %v1091 = vsel %vm1001, %v1089, %v1090
        %v1092 = vrot.slane %v1078, 4
        %v1093 = vsel %vm1001, %v1087, %v1092
        %v1094 = vrot.slane %v1079, 4
        %v1095 = vsel %vm1001, %v1090, %v1094
        %v1100 = vadd.f32 %v1058, %v1088
        %v1101 = vadd.f32 %v1059, %v1091
        %v1102 = vadd.f32 %v1060, %v1093
        %v1103 = vadd.f32 %v1061, %v1095
        %v1104 = vld [vmem:[%s4] sm:$0x3]
        %v1106 = vlaneseq
        %v1107 = vshrl.u32 %v1106, 7
        %v1108 = vsub.s32 0, %v1107
        %v1109 = vrot.slane %v1104, %v1108
        %v1110 = vlaneseq
        %v1111 = vshrl.u32 %v1110, 7
        %v1112 = vsub.s32 1, %v1111
        %v1113 = vrot.slane %v1104, %v1112
        %v1116 = vadd.f32 %v1100, %v1109
        %v1117 = vadd.f32 %v1101, %v1113
        %v1118 = vadd.f32 %v1102, %v1109
        %v1119 = vadd.f32 %v1103, %v1113
        %v1120 = vmax.f32 %v1116, 0.0
        %v1121 = vmax.f32 %v1117, 0.0
        %v1122 = vmax.f32 %v1118, 0.0
        %v1123 = vmax.f32 %v1119, 0.0
        %v1124 = vpack.c.bf16 %v1122, %v1120
        %v1125 = vpack.c.bf16 %v1123, %v1121
        %v1126 = vld [vmem:[#allocation9] sm:$0xf]
        %v1127 = vld [vmem:[#allocation9 + $0x4] sm:$0xf]
        %v1128 = vld [vmem:[#allocation9 + $0x8] sm:$0xf]
        %v1129 = vld [vmem:[#allocation9 + $0xc] sm:$0xf]
        %v1130 = vld [vmem:[#allocation9 + $0x10] sm:$0xf]
        %v1131 = vld [vmem:[#allocation9 + $0x14] sm:$0xf]
        %v1132 = vld [vmem:[#allocation9 + $0x18] sm:$0xf]
        %v1133 = vld [vmem:[#allocation9 + $0x1c] sm:$0xf]
        %v1134 = vld [vmem:[#allocation9 + $0x20] sm:$0xf]
        %v1135 = vld [vmem:[#allocation9 + $0x24] sm:$0xf]
        %v1136 = vld [vmem:[#allocation9 + $0x28] sm:$0xf]
        %v1137 = vld [vmem:[#allocation9 + $0x2c] sm:$0xf]
        %v1138 = vld [vmem:[#allocation9 + $0x30] sm:$0xf]
        %v1139 = vld [vmem:[#allocation9 + $0x34] sm:$0xf]
        %v1140 = vld [vmem:[#allocation9 + $0x38] sm:$0xf]
        %v1141 = vld [vmem:[#allocation9 + $0x3c] sm:$0xf]
        %v1142 = vld [vmem:[#allocation9 + $0x40] sm:$0xf]
        %v1143 = vld [vmem:[#allocation9 + $0x44] sm:$0xf]
        %v1144 = vld [vmem:[#allocation9 + $0x48] sm:$0xf]
        %v1145 = vld [vmem:[#allocation9 + $0x4c] sm:$0xf]
        %v1146 = vld [vmem:[#allocation9 + $0x50] sm:$0xf]
        %v1147 = vld [vmem:[#allocation9 + $0x54] sm:$0xf]
        %v1148 = vld [vmem:[#allocation9 + $0x58] sm:$0xf]
        %v1149 = vld [vmem:[#allocation9 + $0x5c] sm:$0xf]
        %v1150 = vld [vmem:[#allocation9 + $0x60] sm:$0xf]
        %v1151 = vld [vmem:[#allocation9 + $0x64] sm:$0xf]
        %v1152 = vld [vmem:[#allocation9 + $0x68] sm:$0xf]
        %v1153 = vld [vmem:[#allocation9 + $0x6c] sm:$0xf]
        %v1154 = vld [vmem:[#allocation9 + $0x70] sm:$0xf]
        %v1155 = vld [vmem:[#allocation9 + $0x74] sm:$0xf]
        %v1156 = vld [vmem:[#allocation9 + $0x78] sm:$0xf]
        %v1157 = vld [vmem:[#allocation9 + $0x7c] sm:$0xf]
        %v1158 = vld [vmem:[#allocation11] sm:$0xf]
        %v1159 = vld [vmem:[#allocation11 + $0x4] sm:$0xf]
        %v1160 = vld [vmem:[#allocation11 + $0x8] sm:$0xf]
        %v1161 = vld [vmem:[#allocation11 + $0xc] sm:$0xf]
        %v1162 = vld [vmem:[#allocation11 + $0x10] sm:$0xf]
        %v1163 = vld [vmem:[#allocation11 + $0x14] sm:$0xf]
        %v1164 = vld [vmem:[#allocation11 + $0x18] sm:$0xf]
        %v1165 = vld [vmem:[#allocation11 + $0x1c] sm:$0xf]
        %v1174 = vunpack.c.l.b16 %v1158
        %v1175 = vunpack.c.l.b16 %v1159
        %v1176 = vunpack.c.l.b16 %v1160
        %v1177 = vunpack.c.l.b16 %v1161
        %v1178 = vunpack.c.l.b16 %v1162
        %v1179 = vunpack.c.l.b16 %v1163
        %v1180 = vunpack.c.l.b16 %v1164
        %v1181 = vunpack.c.l.b16 %v1165
        %v1182 = vpack.c.b16 %v1175, %v1174
        %v1183 = vpack.c.b16 %v1177, %v1176
        %v1184 = vpack.c.b16 %v1179, %v1178
        %v1185 = vpack.c.b16 %v1181, %v1180
        %1190 = vmatprep.subr.bf16.mxu0 0
        %1191 = vmatpush1.bf16.msra.mxu0 %v1182
        %1192 = vmatprep.subr.bf16.mxu0 0
        %1193 = vmatpush1.bf16.msra.mxu0 %v1183
        %1194 = vmatprep.subr.bf16.mxu0 0
        %1195 = vmatpush1.bf16.msra.mxu0 %v1184
        %1196 = vmatprep.subr.bf16.mxu0 0
        %1197 = vmatpush1.bf16.msra.mxu0 %v1185
        %1198 = vmatprep.subr.bf16.mxu0 0
        %1199 = vmatpush1.bf16.msra.mxu0 0
        %1200 = vmatprep.subr.bf16.mxu0 0
        %1201 = vmatpush1.bf16.msra.mxu0 0
        %1202 = vmatprep.subr.bf16.mxu0 0
        %1203 = vmatpush1.bf16.msra.mxu0 0
        %1204 = vmatprep.subr.bf16.mxu0 0
        %1205 = vmatpush1.bf16.msra.mxu0 0
        %1206 = vmatprep.subr.bf16.mxu0 0
        %1207 = vmatpush1.bf16.msra.mxu0 0
        %1208 = vmatprep.subr.bf16.mxu0 0
        %1209 = vmatpush1.bf16.msra.mxu0 0
        %1210 = vmatprep.subr.bf16.mxu0 0
        %1211 = vmatpush1.bf16.msra.mxu0 0
        %1212 = vmatprep.subr.bf16.mxu0 0
        %1213 = vmatpush1.bf16.msra.mxu0 0
        %1214 = vmatprep.subr.bf16.mxu0 0
        %1215 = vmatpush1.bf16.msra.mxu0 0
        %1216 = vmatprep.subr.bf16.mxu0 0
        %1217 = vmatpush1.bf16.msra.mxu0 0
        %1218 = vmatprep.subr.bf16.mxu0 0
        %1219 = vmatpush1.bf16.msra.mxu0 0
        %1220 = vmatprep.subr.bf16.mxu0 0
        %1221 = vmatpush1.bf16.msra.mxu0 0
        %1222 = vmatprep.mubr.bf16.mxu0 0
        %1223 = vmatmul.mubr.bf16.gmra.mrb[0].mxu0 %v568
        %v1224 = vpop.f32.mrb[0].mxu0
        %v1225 = vadd.f32 0.0, %v1224
        %v1226 = vpop.f32.mrb[0].mxu0
        %v1227 = vpop.f32.mrb[0].mxu0
        %v1228 = vadd.f32 0.0, %v1227
        %v1229 = vpop.f32.mrb[0].mxu0
        %1230 = vdwg.mxu0
        %v1263 = vunpack.c.l.b16 %v1126
        %v1264 = vunpack.c.l.b16 %v1127
        %v1265 = vunpack.c.l.b16 %v1128
        %v1266 = vunpack.c.l.b16 %v1129
        %v1267 = vunpack.c.l.b16 %v1130
        %v1268 = vunpack.c.l.b16 %v1131
        %v1269 = vunpack.c.l.b16 %v1132
        %v1270 = vunpack.c.l.b16 %v1133
        %v1271 = vunpack.c.l.b16 %v1134
        %v1272 = vunpack.c.l.b16 %v1135
        %v1273 = vunpack.c.l.b16 %v1136
        %v1274 = vunpack.c.l.b16 %v1137
        %v1275 = vunpack.c.l.b16 %v1138
        %v1276 = vunpack.c.l.b16 %v1139
        %v1277 = vunpack.c.l.b16 %v1140
        %v1278 = vunpack.c.l.b16 %v1141
        %v1279 = vunpack.c.l.b16 %v1142
        %v1280 = vunpack.c.l.b16 %v1143
        %v1281 = vunpack.c.l.b16 %v1144
        %v1282 = vunpack.c.l.b16 %v1145
        %v1283 = vunpack.c.l.b16 %v1146
        %v1284 = vunpack.c.l.b16 %v1147
        %v1285 = vunpack.c.l.b16 %v1148
        %v1286 = vunpack.c.l.b16 %v1149
        %v1287 = vunpack.c.l.b16 %v1150
        %v1288 = vunpack.c.l.b16 %v1151
        %v1289 = vunpack.c.l.b16 %v1152
        %v1290 = vunpack.c.l.b16 %v1153
        %v1291 = vunpack.c.l.b16 %v1154
        %v1292 = vunpack.c.l.b16 %v1155
        %v1293 = vunpack.c.l.b16 %v1156
        %v1294 = vunpack.c.l.b16 %v1157
        %v1295 = vpack.c.b16 %v1264, %v1263
        %v1296 = vpack.c.b16 %v1266, %v1265
        %v1297 = vpack.c.b16 %v1268, %v1267
        %v1298 = vpack.c.b16 %v1270, %v1269
        %v1299 = vpack.c.b16 %v1272, %v1271
        %v1300 = vpack.c.b16 %v1274, %v1273
        %v1301 = vpack.c.b16 %v1276, %v1275
        %v1302 = vpack.c.b16 %v1278, %v1277
        %v1303 = vpack.c.b16 %v1280, %v1279
        %v1304 = vpack.c.b16 %v1282, %v1281
        %v1305 = vpack.c.b16 %v1284, %v1283
        %v1306 = vpack.c.b16 %v1286, %v1285
        %v1307 = vpack.c.b16 %v1288, %v1287
        %v1308 = vpack.c.b16 %v1290, %v1289
        %v1309 = vpack.c.b16 %v1292, %v1291
        %v1310 = vpack.c.b16 %v1294, %v1293
        %1327 = vmatprep.subr.bf16.mxu0 0
        %1328 = vmatpush1.bf16.msra.mxu0 %v1295
        %1329 = vmatprep.subr.bf16.mxu0 0
        %1330 = vmatpush1.bf16.msra.mxu0 %v1296
        %1331 = vmatprep.subr.bf16.mxu0 0
        %1332 = vmatpush1.bf16.msra.mxu0 %v1297
        %1333 = vmatprep.subr.bf16.mxu0 0
        %1334 = vmatpush1.bf16.msra.mxu0 %v1298
        %1335 = vmatprep.subr.bf16.mxu0 0
        %1336 = vmatpush1.bf16.msra.mxu0 %v1299
        %1337 = vmatprep.subr.bf16.mxu0 0
        %1338 = vmatpush1.bf16.msra.mxu0 %v1300
        %1339 = vmatprep.subr.bf16.mxu0 0
        %1340 = vmatpush1.bf16.msra.mxu0 %v1301
        %1341 = vmatprep.subr.bf16.mxu0 0
        %1342 = vmatpush1.bf16.msra.mxu0 %v1302
        %1343 = vmatprep.subr.bf16.mxu0 0
        %1344 = vmatpush1.bf16.msra.mxu0 %v1303
        %1345 = vmatprep.subr.bf16.mxu0 0
        %1346 = vmatpush1.bf16.msra.mxu0 %v1304
        %1347 = vmatprep.subr.bf16.mxu0 0
        %1348 = vmatpush1.bf16.msra.mxu0 %v1305
        %1349 = vmatprep.subr.bf16.mxu0 0
        %1350 = vmatpush1.bf16.msra.mxu0 %v1306
        %1351 = vmatprep.subr.bf16.mxu0 0
        %1352 = vmatpush1.bf16.msra.mxu0 %v1307
        %1353 = vmatprep.subr.bf16.mxu0 0
        %1354 = vmatpush1.bf16.msra.mxu0 %v1308
        %1355 = vmatprep.subr.bf16.mxu0 0
        %1356 = vmatpush1.bf16.msra.mxu0 %v1309
        %1357 = vmatprep.subr.bf16.mxu0 0
        %1358 = vmatpush1.bf16.msra.mxu0 %v1310
        %1359 = vmatprep.mubr.bf16.mxu0 %v1125
        %1360 = vmatmul.mubr.bf16.gmra.mrb[0].mxu0 %v1124
        %v1361 = vpop.f32.mrb[0].mxu0
        %v1362 = vadd.f32 %v1225, %v1361
        %v1363 = vpop.f32.mrb[0].mxu0
        %v1364 = vpop.f32.mrb[0].mxu0
        %v1365 = vadd.f32 %v1228, %v1364
        %v1366 = vpop.f32.mrb[0].mxu0
        %1367 = vdwg.mxu0
        %v1368 = vld [vmem:[%s7] sm:$0x1]
        %v1370 = vlaneseq
        %v1371 = vshrl.u32 %v1370, 7
        %v1372 = vsub.s32 0, %v1371
        %v1373 = vrot.slane %v1368, %v1372
        %v1375 = vadd.f32 %v1362, %v1373
        %v1376 = vadd.f32 %v1365, %v1373
        %1377 = vst [vmem:[%s381] sm:$0xff] %v1375
        %1378 = vst [vmem:[%s381 + $0x8] sm:$0xff] %v1376
        %s1379 = sand.u32 %s208, 1
        %s1380 = scalar_lea.sflag [#allocation5], %s1379
        %s1381 = sand.u32 %s208, 1
        %s1382 = smul.addr %s1381, 16
        %s1383 = scalar_lea.vmem [#allocation12], %s1382
        // Predicated region
        $region73: #{tpu_custom_call.1} parent=51 // pred_check
          %p1384 = pneg %p218
        $region74: #{tpu_custom_call.1} parent=51 // pred_check_branch
          %1386 = sbr.rel (%p1384) target = $region76
        $region75: #{tpu_custom_call.1} parent=51 // pred_region
          %s1388 = ssub.s32 256, 256
          %1389 = vsyncadd %s1380, %s1388
          %s1390 = smul.addr %s27, 2
          %s1391 = smul.addr %s1390, 128
          %s1392 = scalar_lea.hbm %s8, %s1391
          %s1393 = sshll.u32 %s1383, 4
          %s1394 = int_to_ptr.vmem [resolvable:$true] %s1393
          %1399 = dma.vmem_to_hbm [thread:$0]  %s1394, 256, %s1392, %s1380, 128, 128, 8
        $region76: #{tpu_custom_call.1} parent=51 // pred_fallthru
          _
      $region52: #{tpu_custom_call.1} parent=5 // pred_fallthru
        _
      %p1400 = scmp.le.s32.totalorder 2, %s22
      // Predicated region
      $region77: #{tpu_custom_call.1} parent=5 // pred_check
        %p1401 = pneg %p1400
      $region78: #{tpu_custom_call.1} parent=5 // pred_check_branch
        %1403 = sbr.rel (%p1401) target = $region80
      $region79: #{tpu_custom_call.1} parent=5 // pred_region
        %s1404 = ssub.s32 %s22, 2
        // Predicated region
        $region81: #{tpu_custom_call.1} parent=79 // pred_check
          %p1405 = pneg %p224
        $region82: #{tpu_custom_call.1} parent=79 // pred_check_branch
          %1407 = sbr.rel (%p1405) target = $region84
        $region83: #{tpu_custom_call.1} parent=79 // pred_region
          %s1408 = sand.u32 %s209, 1
          %s1409 = scalar_lea.sflag [#allocation5], %s1408
          %s1410 = sand.u32 %s209, 1
          %s1411 = smul.addr %s1410, 16
          %s1412 = scalar_lea.vmem [#allocation12], %s1411
          %1413 = dma.done %s1409, 256
        $region84: #{tpu_custom_call.1} parent=79 // pred_fallthru
          _
      $region80: #{tpu_custom_call.1} parent=5 // pred_fallthru
        _
    $region6: #{tpu_custom_call.1} parent=1 // loop_footer
      %s26 = sadd.s32 1, %s22
    $region7: #{tpu_custom_call.1} parent=1 // loop_footer_branch
      %21 = sbr.rel target = $region3
    $region8: #{tpu_custom_call.1} parent=1 // loop_exit
      _
    %1414 = vsyncpa [#allocation4], 1
    %s1415 = scalar_lea.sflag [#allocation4], 1
    %1416 = vsyncpa %s1415, 1
    %1417 = vsyncpa [#allocation7], 1
    %1418 = vsyncpa [#allocation10], 1
    %1419 = vsyncpa [#allocation5], 1
    %s1420 = scalar_lea.sflag [#allocation5], 1
    %1421 = vsyncpa %s1420, 1

// kernel: tpu_custom_call.1
$region0: #{tpu_custom_call.1}
  #allocation0 [shape = 'u32[]', space=smem, size = 0x4, offset = 0x4, fixed_abs, tag = 'smem constant byte address 0x4 - core index']
  #allocation1 [shape = 'u32[144,128]{1,0:T(1,128)}', space=vmem, size = 0x12000, scoped, tag = 'internal scratch']
  #allocation2 [shape = 'f32[1,20,768]{2,1,0:T(8,128)}', space=vmem, size = 0x12000, scoped, tag = 'scratch operand']
  %s0 = inlined_call_operand.hbm [shape: bf16[2,16,64], index: 0, kind: input, shape index: {}]
  %s1 = inlined_call_operand.hbm [shape: bf16[64,768], index: 1, kind: input, shape index: {}]
  %s2 = inlined_call_operand.vmem [shape: f32[1,768], index: 2, kind: input, shape index: {}]
  %s3 = inlined_call_operand.hbm [shape: f32[9,256], index: 3, kind: input, shape index: {}]
  %s4 = inlined_call_operand.vmem [shape: f32[1,256], index: 4, kind: input, shape index: {}]
  %s5 = inlined_call_operand.hbm [shape: bf16[256,128], index: 5, kind: input, shape index: {}]
  %s6 = inlined_call_operand.hbm [shape: bf16[64,128], index: 6, kind: input, shape index: {}]
  %s7 = inlined_call_operand.vmem [shape: f32[1,128], index: 7, kind: input, shape index: {}]
  %s8 = inlined_call_operand.hbm [shape: f32[2,16,128], index: 8, kind: output, shape index: {}]
  %s9 = sld [smem:[#allocation0]]
  $region85: #{tpu_custom_call.1} parent=0
    _
  %s11 = ssub.s32 1, %s9
  %s12 = scalar_select 0, %s11, %s9
  $region1: #{tpu_custom_call.1} parent=0
    #allocation3 [shape = 'u8[8192]{0}', space=vmem, size = 0x2000, scoped, tag = 'input window, operand 0']
    #allocation4 [shape = 's32[2]{0}', space=sflag, size = 0x8, scoped, tag = 'scoped memory for tpu_custom_call.1']
    #allocation5 [shape = 's32[2]{0}', space=sflag, size = 0x8, scoped, tag = 'scoped memory for tpu_custom_call.1']
    #allocation6 [shape = 'u8[98304]{0}', space=vmem, size = 0x18000, scoped, tag = 'input window, operand 1, single buffered']
    #allocation7 [shape = 's32[1]{0}', space=sflag, size = 0x4, scoped, tag = 'scoped memory for tpu_custom_call.1']
    #allocation8 [shape = 'u8[16384]{0}', space=vmem, size = 0x4000, scoped, tag = 'input window, operand 3, single buffered']
    #allocation9 [shape = 'u8[65536]{0}', space=vmem, size = 0x10000, scoped, tag = 'input window, operand 5, single buffered']
    #allocation10 [shape = 's32[1]{0}', space=sflag, size = 0x4, scoped, tag = 'scoped memory for tpu_custom_call.1']
    #allocation11 [shape = 'u8[16384]{0}', space=vmem, size = 0x4000, scoped, tag = 'input window, operand 6, single buffered']
    #allocation12 [shape = 'u8[16384]{0}', space=vmem, size = 0x4000, scoped, tag = 'output window, operand 0']
    %13 = vsyncpa [#allocation4], 0
    %s14 = scalar_lea.sflag [#allocation4], 1
    %15 = vsyncpa %s14, 0
    %16 = vsyncpa [#allocation7], 0
    %17 = vsyncpa [#allocation10], 0
    %18 = vsyncpa [#allocation5], 0
    %s19 = scalar_lea.sflag [#allocation5], 1
    %20 = vsyncpa %s19, 0
    loop: start=0, step=1, limit=4
    $region2: #{tpu_custom_call.1} parent=1 // loop_pre_header
      _
    $region3: #{tpu_custom_call.1} parent=1 // loop_header
      %s22 = sphi 0, %s26
      %p23 = scmp.ge.s32.totalorder %s22, 4
      %s32 = sphi 0, %s34
      %s35 = sphi 0, %s32
      %s36 = sphi 0, %s35
      %s52 = sphi 0, %s36
      %s56 = sphi 0, %s56
      %s58 = sphi 0, %s56
      %s59 = sphi 0, %s58
      %s73 = sphi 0, %s59
      %s77 = sphi 0, %s77
      %s79 = sphi 0, %s77
      %s80 = sphi 0, %s79
      %s94 = sphi 0, %s80
      %s98 = sphi 0, %s98
      %s100 = sphi 0, %s98
      %s101 = sphi 0, %s100
      %s115 = sphi 0, %s101
      %s119 = sphi 0, %s119
      %s121 = sphi 0, %s119
      %s122 = sphi 0, %s121
      %s136 = sphi 0, %s122
      %s140 = sphi 0, %s140
      %s142 = sphi 0, %s140
      %s143 = sphi 0, %s142
      %s157 = sphi 0, %s143
      %s161 = sphi 0, %s161
      %s163 = sphi 0, %s161
      %s164 = sphi 0, %s163
      %s178 = sphi 0, %s164
      %s182 = sphi 0, %s182
      %s184 = sphi 0, %s182
      %s185 = sphi 0, %s184
      %s199 = sphi 0, %s185
      %s205 = sphi 0, %s207
      %s208 = sphi 0, %s205
      %s209 = sphi 0, %s208
      %s225 = sphi 0, %s209
    $region4: #{tpu_custom_call.1} parent=1 // loop_header_branch
      %25 = sbr.rel (%p23) target = $region8
    $region5: #{tpu_custom_call.1} parent=1 // loop_body
      %s27 = ssub.s32 %s22, 1
      %s28 = ssub.s32 %s22, 2
      %s29 = sadd.s32 %s22, 1
      %s30 = ssub.s32 %s22, %s29
      %p31 = scmp.eq.s32.totalorder %s30, 0
      %s33 = sadd.s32 %s32, 1
      %s34 = scalar_select %p31, %s32, %s33
      %p37 = pneg %p31
      %p38 = scmp.eq.s32.totalorder %s22, 1
      %p39 = por %p37, %p38
      %p40 = scmp.ne.s32.totalorder %s32, %s35
      %p41 = scmp.eq.s32.totalorder %s22, 0
      %p42 = por %p40, %p41
      %p43 = scmp.ne.s32.totalorder %s32, %s35
      %p44 = scmp.eq.s32.totalorder %s27, 1
      %p45 = por %p43, %p44
      %p46 = scmp.ne.s32.totalorder %s35, %s36
      %p47 = scmp.eq.s32.totalorder %s27, 0
      %p48 = por %p46, %p47
      %p49 = scmp.ne.s32.totalorder %s35, %s36
      %p50 = scmp.eq.s32.totalorder %s28, 1
      %p51 = por %p49, %p50
      %p53 = scmp.ne.s32.totalorder %s36, %s52
      %p54 = scmp.eq.s32.totalorder %s28, 0
      %p55 = por %p53, %p54
      %s57 = sadd.s32 %s56, 1
      %p60 = scmp.eq.s32.totalorder %s22, 1
      %p61 = scmp.ne.s32.totalorder %s56, %s58
      %p62 = scmp.eq.s32.totalorder %s22, 0
      %p63 = por %p61, %p62
      %p64 = scmp.ne.s32.totalorder %s56, %s58
      %p65 = scmp.eq.s32.totalorder %s27, 1
      %p66 = por %p64, %p65
      %p67 = scmp.ne.s32.totalorder %s58, %s59
      %p68 = scmp.eq.s32.totalorder %s27, 0
      %p69 = por %p67, %p68
      %p70 = scmp.ne.s32.totalorder %s58, %s59
      %p71 = scmp.eq.s32.totalorder %s28, 1
      %p72 = por %p70, %p71
      %p74 = scmp.ne.s32.totalorder %s59, %s73
      %p75 = scmp.eq.s32.totalorder %s28, 0
      %p76 = por %p74, %p75
      %s78 = sadd.s32 %s77, 1
      %p81 = scmp.eq.s32.totalorder %s22, 1
      %p82 = scmp.ne.s32.totalorder %s77, %s79
      %p83 = scmp.eq.s32.totalorder %s22, 0
      %p84 = por %p82, %p83
      %p85 = scmp.ne.s32.totalorder %s77, %s79
      %p86 = scmp.eq.s32.totalorder %s27, 1
      %p87 = por %p85, %p86
      %p88 = scmp.ne.s32.totalorder %s79, %s80
      %p89 = scmp.eq.s32.totalorder %s27, 0
      %p90 = por %p88, %p89
      %p91 = scmp.ne.s32.totalorder %s79, %s80
      %p92 = scmp.eq.s32.totalorder %s28, 1
      %p93 = por %p91, %p92
      %p95 = scmp.ne.s32.totalorder %s80, %s94
      %p96 = scmp.eq.s32.totalorder %s28, 0
      %p97 = por %p95, %p96
      %s99 = sadd.s32 %s98, 1
      %p102 = scmp.eq.s32.totalorder %s22, 1
      %p103 = scmp.ne.s32.totalorder %s98, %s100
      %p104 = scmp.eq.s32.totalorder %s22, 0
      %p105 = por %p103, %p104
      %p106 = scmp.ne.s32.totalorder %s98, %s100
      %p107 = scmp.eq.s32.totalorder %s27, 1
      %p108 = por %p106, %p107
      %p109 = scmp.ne.s32.totalorder %s100, %s101
      %p110 = scmp.eq.s32.totalorder %s27, 0
      %p111 = por %p109, %p110
      %p112 = scmp.ne.s32.totalorder %s100, %s101
      %p113 = scmp.eq.s32.totalorder %s28, 1
      %p114 = por %p112, %p113
      %p116 = scmp.ne.s32.totalorder %s101, %s115
      %p117 = scmp.eq.s32.totalorder %s28, 0
      %p118 = por %p116, %p117
      %s120 = sadd.s32 %s119, 1
      %p123 = scmp.eq.s32.totalorder %s22, 1
      %p124 = scmp.ne.s32.totalorder %s119, %s121
      %p125 = scmp.eq.s32.totalorder %s22, 0
      %p126 = por %p124, %p125
      %p127 = scmp.ne.s32.totalorder %s119, %s121
      %p128 = scmp.eq.s32.totalorder %s27, 1
      %p129 = por %p127, %p128
      %p130 = scmp.ne.s32.totalorder %s121, %s122
      %p131 = scmp.eq.s32.totalorder %s27, 0
      %p132 = por %p130, %p131
      %p133 = scmp.ne.s32.totalorder %s121, %s122
      %p134 = scmp.eq.s32.totalorder %s28, 1
      %p135 = por %p133, %p134
      %p137 = scmp.ne.s32.totalorder %s122, %s136
      %p138 = scmp.eq.s32.totalorder %s28, 0
      %p139 = por %p137, %p138
      %s141 = sadd.s32 %s140, 1
      %p144 = scmp.eq.s32.totalorder %s22, 1
      %p145 = scmp.ne.s32.totalorder %s140, %s142
      %p146 = scmp.eq.s32.totalorder %s22, 0
      %p147 = por %p145, %p146
      %p148 = scmp.ne.s32.totalorder %s140, %s142
      %p149 = scmp.eq.s32.totalorder %s27, 1
      %p150 = por %p148, %p149
      %p151 = scmp.ne.s32.totalorder %s142, %s143
      %p152 = scmp.eq.s32.totalorder %s27, 0
      %p153 = por %p151, %p152
      %p154 = scmp.ne.s32.totalorder %s142, %s143
      %p155 = scmp.eq.s32.totalorder %s28, 1
      %p156 = por %p154, %p155
      %p158 = scmp.ne.s32.totalorder %s143, %s157
      %p159 = scmp.eq.s32.totalorder %s28, 0
      %p160 = por %p158, %p159
      %s162 = sadd.s32 %s161, 1
      %p165 = scmp.eq.s32.totalorder %s22, 1
      %p166 = scmp.ne.s32.totalorder %s161, %s163
      %p167 = scmp.eq.s32.totalorder %s22, 0
      %p168 = por %p166, %p167
      %p169 = scmp.ne.s32.totalorder %s161, %s163
      %p170 = scmp.eq.s32.totalorder %s27, 1
      %p171 = por %p169, %p170
      %p172 = scmp.ne.s32.totalorder %s163, %s164
      %p173 = scmp.eq.s32.totalorder %s27, 0
      %p174 = por %p172, %p173
      %p175 = scmp.ne.s32.totalorder %s163, %s164
      %p176 = scmp.eq.s32.totalorder %s28, 1
      %p177 = por %p175, %p176
      %p179 = scmp.ne.s32.totalorder %s164, %s178
      %p180 = scmp.eq.s32.totalorder %s28, 0
      %p181 = por %p179, %p180
      %s183 = sadd.s32 %s182, 1
      %p186 = scmp.eq.s32.totalorder %s22, 1
      %p187 = scmp.ne.s32.totalorder %s182, %s184
      %p188 = scmp.eq.s32.totalorder %s22, 0
      %p189 = por %p187, %p188
      %p190 = scmp.ne.s32.totalorder %s182, %s184
      %p191 = scmp.eq.s32.totalorder %s27, 1
      %p192 = por %p190, %p191
      %p193 = scmp.ne.s32.totalorder %s184, %s185
      %p194 = scmp.eq.s32.totalorder %s27, 0
      %p195 = por %p193, %p194
      %p196 = scmp.ne.s32.totalorder %s184, %s185
      %p197 = scmp.eq.s32.totalorder %s28, 1
      %p198 = por %p196, %p197
      %p200 = scmp.ne.s32.totalorder %s185, %s199
      %p201 = scmp.eq.s32.totalorder %s28, 0
      %p202 = por %p200, %p201
      %s203 = ssub.s32 %s22, %s29
      %p204 = scmp.eq.s32.totalorder %s203, 0
      %s206 = sadd.s32 %s205, 1
      %s207 = scalar_select %p204, %s205, %s206
      %p210 = pneg %p204
      %p211 = scmp.eq.s32.totalorder %s22, 1
      %p212 = por %p210, %p211
      %p213 = scmp.ne.s32.totalorder %s205, %s208
      %p214 = scmp.eq.s32.totalorder %s22, 0
      %p215 = por %p213, %p214
      %p216 = scmp.ne.s32.totalorder %s205, %s208
      %p217 = scmp.eq.s32.totalorder %s27, 1
      %p218 = por %p216, %p217
      %p219 = scmp.ne.s32.totalorder %s208, %s209
      %p220 = scmp.eq.s32.totalorder %s27, 0
      %p221 = por %p219, %p220
      %p222 = scmp.ne.s32.totalorder %s208, %s209
      %p223 = scmp.eq.s32.totalorder %s28, 1
      %p224 = por %p222, %p223
      %p226 = scmp.ne.s32.totalorder %s209, %s225
      %p227 = scmp.eq.s32.totalorder %s28, 0
      %p228 = por %p226, %p227
      %p229 = scmp.le.s32.totalorder 1, %s22
      %p230 = scmp.lt.s32.totalorder %s22, 3
      %p231 = pnand %p229, %p230
      %p232 = pneg %p231
      // Predicated region
      $region9: #{tpu_custom_call.1} parent=5 // pred_check
        _
      $region10: #{tpu_custom_call.1} parent=5 // pred_check_branch
        %234 = sbr.rel (%p231) target = $region12
      $region11: #{tpu_custom_call.1} parent=5 // pred_region
        %s235 = ssub.s32 %s22, 1
        // Predicated region
        $region13: #{tpu_custom_call.1} parent=11 // pred_check
          %p236 = pneg %p69
        $region14: #{tpu_custom_call.1} parent=11 // pred_check_branch
          %238 = sbr.rel (%p236) target = $region16
        $region15: #{tpu_custom_call.1} parent=11 // pred_region
          %s240 = ssub.s32 3072, 3072
          %241 = vsyncadd [#allocation7], %s240
          %s242 = sshll.u32 [#allocation6], 4
          %s243 = int_to_ptr.vmem [resolvable:$true] %s242
          %248 = dma.hbm_to_vmem [thread:$0]  %s1, 3072, %s243, [#allocation7], 384, 384, 24
        $region16: #{tpu_custom_call.1} parent=11 // pred_fallthru
          _
        // Predicated region
        $region17: #{tpu_custom_call.1} parent=11 // pred_check
          %p249 = pneg %p90
        $region18: #{tpu_custom_call.1} parent=11 // pred_check_branch
          %251 = sbr.rel (%p249) target = $region20
        $region19: #{tpu_custom_call.1} parent=11 // pred_region
          _
        $region20: #{tpu_custom_call.1} parent=11 // pred_fallthru
          _
        // Predicated region
        $region21: #{tpu_custom_call.1} parent=11 // pred_check
          %p252 = pneg %p111
        $region22: #{tpu_custom_call.1} parent=11 // pred_check_branch
          %254 = sbr.rel (%p252) target = $region24
        $region23: #{tpu_custom_call.1} parent=11 // pred_region
          %s256 = ssub.s32 512, 512
          %257 = vsyncadd [#allocation7], %s256
          %s258 = sshll.u32 [#allocation8], 4
          %s259 = int_to_ptr.vmem [resolvable:$true] %s258
          %264 = dma.hbm_to_vmem [thread:$0]  %s3, 512, %s259, [#allocation7], 256, 256, 16
        $region24: #{tpu_custom_call.1} parent=11 // pred_fallthru
          _
        // Predicated region
        $region25: #{tpu_custom_call.1} parent=11 // pred_check
          %p265 = pneg %p132
        $region26: #{tpu_custom_call.1} parent=11 // pred_check_branch
          %267 = sbr.rel (%p265) target = $region28
        $region27: #{tpu_custom_call.1} parent=11 // pred_region
          _
        $region28: #{tpu_custom_call.1} parent=11 // pred_fallthru
          _
        // Predicated region
        $region29: #{tpu_custom_call.1} parent=11 // pred_check
          %p268 = pneg %p153
        $region30: #{tpu_custom_call.1} parent=11 // pred_check_branch
          %270 = sbr.rel (%p268) target = $region32
        $region31: #{tpu_custom_call.1} parent=11 // pred_region
          %s272 = ssub.s32 2048, 2048
          %273 = vsyncadd [#allocation10], %s272
          %s274 = sshll.u32 [#allocation9], 4
          %s275 = int_to_ptr.vmem [resolvable:$true] %s274
          %280 = dma.hbm_to_vmem [thread:$0]  %s5, 2048, %s275, [#allocation10], 64, 64, 4
        $region32: #{tpu_custom_call.1} parent=11 // pred_fallthru
          _
        // Predicated region
        $region33: #{tpu_custom_call.1} parent=11 // pred_check
          %p281 = pneg %p174
        $region34: #{tpu_custom_call.1} parent=11 // pred_check_branch
          %283 = sbr.rel (%p281) target = $region36
        $region35: #{tpu_custom_call.1} parent=11 // pred_region
          %s285 = ssub.s32 512, 512
          %286 = vsyncadd [#allocation10], %s285
          %s287 = sshll.u32 [#allocation11], 4
          %s288 = int_to_ptr.vmem [resolvable:$true] %s287
          %293 = dma.hbm_to_vmem [thread:$0]  %s6, 512, %s288, [#allocation10], 64, 64, 4
        $region36: #{tpu_custom_call.1} parent=11 // pred_fallthru
          _
        // Predicated region
        $region37: #{tpu_custom_call.1} parent=11 // pred_check
          %p294 = pneg %p195
        $region38: #{tpu_custom_call.1} parent=11 // pred_check_branch
          %296 = sbr.rel (%p294) target = $region40
        $region39: #{tpu_custom_call.1} parent=11 // pred_region
          _
        $region40: #{tpu_custom_call.1} parent=11 // pred_fallthru
          _
      $region12: #{tpu_custom_call.1} parent=5 // pred_fallthru
        _
      %p297 = scmp.lt.s32.totalorder %s22, 2
      // Predicated region
      $region41: #{tpu_custom_call.1} parent=5 // pred_check
        %p298 = pneg %p297
      $region42: #{tpu_custom_call.1} parent=5 // pred_check_branch
        %300 = sbr.rel (%p298) target = $region44
      $region43: #{tpu_custom_call.1} parent=5 // pred_region
        // Predicated region
        $region45: #{tpu_custom_call.1} parent=43 // pred_check
          %p301 = pneg %p42
        $region46: #{tpu_custom_call.1} parent=43 // pred_check_branch
          %303 = sbr.rel (%p301) target = $region48
        $region47: #{tpu_custom_call.1} parent=43 // pred_region
          %s304 = sand.u32 %s32, 1
          %s305 = scalar_lea.sflag [#allocation4], %s304
          %s306 = sand.u32 %s32, 1
          %s307 = smul.addr %s306, 8
          %s308 = scalar_lea.vmem [#allocation3], %s307
          %s310 = ssub.s32 128, 128
          %311 = vsyncadd %s305, %s310
          %s312 = smul.addr %s22, 2
          %s313 = smul.addr %s312, 64
          %s314 = scalar_lea.hbm %s0, %s313
          %s315 = sshll.u32 %s308, 4
          %s316 = int_to_ptr.vmem [resolvable:$true] %s315
          %321 = dma.hbm_to_vmem [thread:$0]  %s314, 128, %s316, %s305, 64, 64, 4
        $region48: #{tpu_custom_call.1} parent=43 // pred_fallthru
          _
      $region44: #{tpu_custom_call.1} parent=5 // pred_fallthru
        _
      %p322 = scmp.le.s32.totalorder 1, %s22
      %p323 = scmp.lt.s32.totalorder %s22, 3
      %p324 = pnand %p322, %p323
      %p325 = pneg %p324
      // Predicated region
      $region49: #{tpu_custom_call.1} parent=5 // pred_check
        _
      $region50: #{tpu_custom_call.1} parent=5 // pred_check_branch
        %327 = sbr.rel (%p324) target = $region52
      $region51: #{tpu_custom_call.1} parent=5 // pred_region
        %s328 = ssub.s32 %s22, 1
        %s329 = sand.u32 %s35, 1
        %s330 = scalar_lea.sflag [#allocation4], %s329
        %s331 = sand.u32 %s35, 1
        %s332 = smul.addr %s331, 8
        %s333 = scalar_lea.vmem [#allocation3], %s332
        // Predicated region
        $region53: #{tpu_custom_call.1} parent=51 // pred_check
          %p334 = pneg %p48
        $region54: #{tpu_custom_call.1} parent=51 // pred_check_branch
          %336 = sbr.rel (%p334) target = $region56
        $region55: #{tpu_custom_call.1} parent=51 // pred_region
          %337 = dma.done %s330, 128
        $region56: #{tpu_custom_call.1} parent=51 // pred_fallthru
          _
        // Predicated region
        $region57: #{tpu_custom_call.1} parent=51 // pred_check
          %p338 = pneg %p69
        $region58: #{tpu_custom_call.1} parent=51 // pred_check_branch
          %340 = sbr.rel (%p338) target = $region60
        $region59: #{tpu_custom_call.1} parent=51 // pred_region
          %341 = dma.done [#allocation7], 3072
        $region60: #{tpu_custom_call.1} parent=51 // pred_fallthru
          _
        // Predicated region
        $region61: #{tpu_custom_call.1} parent=51 // pred_check
          %p342 = pneg %p111
        $region62: #{tpu_custom_call.1} parent=51 // pred_check_branch
          %344 = sbr.rel (%p342) target = $region64
        $region63: #{tpu_custom_call.1} parent=51 // pred_region
          %345 = dma.done [#allocation7], 512
        $region64: #{tpu_custom_call.1} parent=51 // pred_fallthru
          _
        // Predicated region
        $region65: #{tpu_custom_call.1} parent=51 // pred_check
          %p346 = pneg %p153
        $region66: #{tpu_custom_call.1} parent=51 // pred_check_branch
          %348 = sbr.rel (%p346) target = $region68
        $region67: #{tpu_custom_call.1} parent=51 // pred_region
          %349 = dma.done [#allocation10], 2048
        $region68: #{tpu_custom_call.1} parent=51 // pred_fallthru
          _
        // Predicated region
        $region69: #{tpu_custom_call.1} parent=51 // pred_check
          %p350 = pneg %p174
        $region70: #{tpu_custom_call.1} parent=51 // pred_check_branch
          %352 = sbr.rel (%p350) target = $region72
        $region71: #{tpu_custom_call.1} parent=51 // pred_region
          %353 = dma.done [#allocation10], 512
        $region72: #{tpu_custom_call.1} parent=51 // pred_fallthru
          _
        %s354 = sand.u32 %s35, 1
        %s355 = scalar_lea.sflag [#allocation4], %s354
        %s356 = sand.u32 %s35, 1
        %s357 = smul.addr %s356, 8
        %s358 = scalar_lea.vmem [#allocation3], %s357
        %p359 = pneg %p48
        %p360 = pneg %p45
        %p361 = pneg %p69
        %p362 = pneg %p66
        %p363 = pneg %p90
        %p364 = pneg %p87
        %p365 = pneg %p111
        %p366 = pneg %p108
        %p367 = pneg %p132
        %p368 = pneg %p129
        %p369 = pneg %p153
        %p370 = pneg %p150
        %p371 = pneg %p174
        %p372 = pneg %p171
        %p373 = pneg %p195
        %p374 = pneg %p192
        %p375 = pneg %p221
        %p376 = pneg %p218
        %s377 = sand.u32 %s208, 1
        %s378 = scalar_lea.sflag [#allocation5], %s377
        %s379 = sand.u32 %s208, 1
        %s380 = smul.addr %s379, 16
        %s381 = scalar_lea.vmem [#allocation12], %s380
        %v383 = vld [vmem:[%s333] sm:$0xf]
        %v384 = vld [vmem:[%s333 + $0x4] sm:$0xf]
        %v385 = vld [vmem:[#allocation6] sm:$0xff]
        %v386 = vld [vmem:[#allocation6 + $0x8] sm:$0xff]
        %v387 = vld [vmem:[#allocation6 + $0x10] sm:$0xff]
        %v388 = vld [vmem:[#allocation6 + $0x18] sm:$0xff]
        %v389 = vld [vmem:[#allocation6 + $0x20] sm:$0xff]
        %v390 = vld [vmem:[#allocation6 + $0x28] sm:$0xff]
        %v391 = vld [vmem:[#allocation6 + $0x30] sm:$0xff]
        %v392 = vld [vmem:[#allocation6 + $0x38] sm:$0xff]
        %v393 = vld [vmem:[#allocation6 + $0x40] sm:$0xff]
        %v394 = vld [vmem:[#allocation6 + $0x48] sm:$0xff]
        %v395 = vld [vmem:[#allocation6 + $0x50] sm:$0xff]
        %v396 = vld [vmem:[#allocation6 + $0x58] sm:$0xff]
        %v397 = vld [vmem:[#allocation6 + $0x60] sm:$0xff]
        %v398 = vld [vmem:[#allocation6 + $0x68] sm:$0xff]
        %v399 = vld [vmem:[#allocation6 + $0x70] sm:$0xff]
        %v400 = vld [vmem:[#allocation6 + $0x78] sm:$0xff]
        %v401 = vld [vmem:[#allocation6 + $0x80] sm:$0xff]
        %v402 = vld [vmem:[#allocation6 + $0x88] sm:$0xff]
        %v403 = vld [vmem:[#allocation6 + $0x90] sm:$0xff]
        %v404 = vld [vmem:[#allocation6 + $0x98] sm:$0xff]
        %v405 = vld [vmem:[#allocation6 + $0xa0] sm:$0xff]
        %v406 = vld [vmem:[#allocation6 + $0xa8] sm:$0xff]
        %v407 = vld [vmem:[#allocation6 + $0xb0] sm:$0xff]
        %v408 = vld [vmem:[#allocation6 + $0xb8] sm:$0xff]
        %v409 = vld [vmem:[%s2] sm:$0x3f]
        %v411 = vlaneseq
        %v412 = vshrl.u32 %v411, 7
        %v413 = vsub.s32 0, %v412
        %v414 = vrot.slane %v409, %v413
        %v415 = vlaneseq
        %v416 = vshrl.u32 %v415, 7
        %v417 = vsub.s32 1, %v416
        %v418 = vrot.slane %v409, %v417
        %v419 = vlaneseq
        %v420 = vshrl.u32 %v419, 7
        %v421 = vsub.s32 2, %v420
        %v422 = vrot.slane %v409, %v421
        %v423 = vlaneseq
        %v424 = vshrl.u32 %v423, 7
        %v425 = vsub.s32 3, %v424
        %v426 = vrot.slane %v409, %v425
        %v427 = vlaneseq
        %v428 = vshrl.u32 %v427, 7
        %v429 = vsub.s32 4, %v428
        %v430 = vrot.slane %v409, %v429
        %v431 = vlaneseq
        %v432 = vshrl.u32 %v431, 7
        %v433 = vsub.s32 5, %v432
        %v434 = vrot.slane %v409, %v433
        %v443 = vunpack.c.l.b16 %v383
        %v444 = vunpack.c.l.b16 %v384
        %v445 = vpack.c.b16 %v444, %v443
        %v470 = vunpack.c.l.b16 %v385
        %v471 = vunpack.c.h.b16 %v385
        %v472 = vunpack.c.l.b16 %v386
        %v473 = vunpack.c.h.b16 %v386
        %v474 = vunpack.c.l.b16 %v387
        %v475 = vunpack.c.h.b16 %v387
        %v476 = vunpack.c.l.b16 %v388
        %v477 = vunpack.c.h.b16 %v388
        %v478 = vunpack.c.l.b16 %v389
        %v479 = vunpack.c.h.b16 %v389
        %v480 = vunpack.c.l.b16 %v390
        %v481 = vunpack.c.h.b16 %v390
        %v482 = vunpack.c.l.b16 %v391
        %v483 = vunpack.c.h.b16 %v391
        %v484 = vunpack.c.l.b16 %v392
        %v485 = vunpack.c.h.b16 %v392
        %v486 = vunpack.c.l.b16 %v393
        %v487 = vunpack.c.h.b16 %v393
        %v488 = vunpack.c.l.b16 %v394
        %v489 = vunpack.c.h.b16 %v394
        %v490 = vunpack.c.l.b16 %v395
        %v491 = vunpack.c.h.b16 %v395
        %v492 = vunpack.c.l.b16 %v396
        %v493 = vunpack.c.h.b16 %v396
        %v494 = vunpack.c.l.b16 %v397
        %v495 = vunpack.c.h.b16 %v397
        %v496 = vunpack.c.l.b16 %v398
        %v497 = vunpack.c.h.b16 %v398
        %v498 = vunpack.c.l.b16 %v399
        %v499 = vunpack.c.h.b16 %v399
        %v500 = vunpack.c.l.b16 %v400
        %v501 = vunpack.c.h.b16 %v400
        %v502 = vunpack.c.l.b16 %v401
        %v503 = vunpack.c.h.b16 %v401
        %v504 = vunpack.c.l.b16 %v402
        %v505 = vunpack.c.h.b16 %v402
        %v506 = vunpack.c.l.b16 %v403
        %v507 = vunpack.c.h.b16 %v403
        %v508 = vunpack.c.l.b16 %v404
        %v509 = vunpack.c.h.b16 %v404
        %v510 = vunpack.c.l.b16 %v405
        %v511 = vunpack.c.h.b16 %v405
        %v512 = vunpack.c.l.b16 %v406
        %v513 = vunpack.c.h.b16 %v406
        %v514 = vunpack.c.l.b16 %v407
        %v515 = vunpack.c.h.b16 %v407
        %v516 = vunpack.c.l.b16 %v408
        %v517 = vunpack.c.h.b16 %v408
        %v518 = vpack.c.b16 %v476, %v470
        %v519 = vpack.c.b16 %v477, %v471
        %v520 = vpack.c.b16 %v478, %v472
        %v521 = vpack.c.b16 %v479, %v473
        %v522 = vpack.c.b16 %v480, %v474
        %v523 = vpack.c.b16 %v481, %v475
        %v524 = vpack.c.b16 %v488, %v482
        %v525 = vpack.c.b16 %v489, %v483
        %v526 = vpack.c.b16 %v490, %v484
        %v527 = vpack.c.b16 %v491, %v485
        %v528 = vpack.c.b16 %v492, %v486
        %v529 = vpack.c.b16 %v493, %v487
        %v530 = vpack.c.b16 %v500, %v494
        %v531 = vpack.c.b16 %v501, %v495
        %v532 = vpack.c.b16 %v502, %v496
        %v533 = vpack.c.b16 %v503, %v497
        %v534 = vpack.c.b16 %v504, %v498
        %v535 = vpack.c.b16 %v505, %v499
        %v536 = vpack.c.b16 %v512, %v506
        %v537 = vpack.c.b16 %v513, %v507
        %v538 = vpack.c.b16 %v514, %v508
        %v539 = vpack.c.b16 %v515, %v509
        %v540 = vpack.c.b16 %v516, %v510
        %v541 = vpack.c.b16 %v517, %v511
        %vm566 = vcmask 523264
        %v568 = vsel %vm566, %v445, 0
        %570 = vmatprep.subr.bf16.mxu0 %v519
        %571 = vmatpush1.bf16.msra.mxu0 %v518
        %572 = vmatprep.subr.bf16.mxu0 %v525
        %573 = vmatpush1.bf16.msra.mxu0 %v524
        %574 = vmatprep.subr.bf16.mxu0 %v531
        %575 = vmatpush1.bf16.msra.mxu0 %v530
        %576 = vmatprep.subr.bf16.mxu0 %v537
        %577 = vmatpush1.bf16.msra.mxu0 %v536
        %578 = vmatprep.subr.bf16.mxu0 0
        %579 = vmatpush1.bf16.msra.mxu0 0
        %580 = vmatprep.subr.bf16.mxu0 0
        %581 = vmatpush1.bf16.msra.mxu0 0
        %582 = vmatprep.subr.bf16.mxu0 0
        %583 = vmatpush1.bf16.msra.mxu0 0
        %584 = vmatprep.subr.bf16.mxu0 0
        %585 = vmatpush1.bf16.msra.mxu0 0
        %586 = vmatprep.subr.bf16.mxu0 0
        %587 = vmatpush1.bf16.msra.mxu0 0
        %588 = vmatprep.subr.bf16.mxu0 0
        %589 = vmatpush1.bf16.msra.mxu0 0
        %590 = vmatprep.subr.bf16.mxu0 0
        %591 = vmatpush1.bf16.msra.mxu0 0
        %592 = vmatprep.subr.bf16.mxu0 0
        %593 = vmatpush1.bf16.msra.mxu0 0
        %594 = vmatprep.subr.bf16.mxu0 0
        %595 = vmatpush1.bf16.msra.mxu0 0
        %596 = vmatprep.subr.bf16.mxu0 0
        %597 = vmatpush1.bf16.msra.mxu0 0
        %598 = vmatprep.subr.bf16.mxu0 0
        %599 = vmatpush1.bf16.msra.mxu0 0
        %600 = vmatprep.subr.bf16.mxu0 0
        %601 = vmatpush1.bf16.msra.mxu0 0
        %602 = vmatprep.mubr.bf16.mxu0 0
        %603 = vmatmul.mubr.bf16.gmra.mrb[0].mxu0 %v568
        %v604 = vpop.f32.mrb[0].mxu0
        %v605 = vadd.f32 %v414, %v604
        %v606 = vpop.f32.mrb[0].mxu0
        %v607 = vadd.f32 %v418, %v606
        %v608 = vpop.f32.mrb[0].mxu0
        %v609 = vadd.f32 %v414, %v608
        %v610 = vpop.f32.mrb[0].mxu0
        %v611 = vadd.f32 %v418, %v610
        %612 = vdwg.mxu0
        %613 = vmatprep.subr.bf16.mxu0 %v521
        %614 = vmatpush1.bf16.msra.mxu0 %v520
        %615 = vmatprep.subr.bf16.mxu0 %v527
        %616 = vmatpush1.bf16.msra.mxu0 %v526
        %617 = vmatprep.subr.bf16.mxu0 %v533
        %618 = vmatpush1.bf16.msra.mxu0 %v532
        %619 = vmatprep.subr.bf16.mxu0 %v539
        %620 = vmatpush1.bf16.msra.mxu0 %v538
        %621 = vmatprep.subr.bf16.mxu0 0
        %622 = vmatpush1.bf16.msra.mxu0 0
        %623 = vmatprep.subr.bf16.mxu0 0
        %624 = vmatpush1.bf16.msra.mxu0 0
        %625 = vmatprep.subr.bf16.mxu0 0
        %626 = vmatpush1.bf16.msra.mxu0 0
        %627 = vmatprep.subr.bf16.mxu0 0
        %628 = vmatpush1.bf16.msra.mxu0 0
        %629 = vmatprep.subr.bf16.mxu0 0
        %630 = vmatpush1.bf16.msra.mxu0 0
        %631 = vmatprep.subr.bf16.mxu0 0
        %632 = vmatpush1.bf16.msra.mxu0 0
        %633 = vmatprep.subr.bf16.mxu0 0
        %634 = vmatpush1.bf16.msra.mxu0 0
        %635 = vmatprep.subr.bf16.mxu0 0
        %636 = vmatpush1.bf16.msra.mxu0 0
        %637 = vmatprep.subr.bf16.mxu0 0
        %638 = vmatpush1.bf16.msra.mxu0 0
        %639 = vmatprep.subr.bf16.mxu0 0
        %640 = vmatpush1.bf16.msra.mxu0 0
        %641 = vmatprep.subr.bf16.mxu0 0
        %642 = vmatpush1.bf16.msra.mxu0 0
        %643 = vmatprep.subr.bf16.mxu0 0
        %644 = vmatpush1.bf16.msra.mxu0 0
        %645 = vmatprep.mubr.bf16.mxu0 0
        %646 = vmatmul.mubr.bf16.gmra.mrb[0].mxu0 %v568
        %v647 = vpop.f32.mrb[0].mxu0
        %v648 = vadd.f32 %v422, %v647
        %v649 = vpop.f32.mrb[0].mxu0
        %v650 = vadd.f32 %v426, %v649
        %v651 = vpop.f32.mrb[0].mxu0
        %v652 = vadd.f32 %v422, %v651
        %v653 = vpop.f32.mrb[0].mxu0
        %v654 = vadd.f32 %v426, %v653
        %655 = vdwg.mxu0
        %656 = vmatprep.subr.bf16.mxu0 %v523
        %657 = vmatpush1.bf16.msra.mxu0 %v522
        %658 = vmatprep.subr.bf16.mxu0 %v529
        %659 = vmatpush1.bf16.msra.mxu0 %v528
        %660 = vmatprep.subr.bf16.mxu0 %v535
        %661 = vmatpush1.bf16.msra.mxu0 %v534
        %662 = vmatprep.subr.bf16.mxu0 %v541
        %663 = vmatpush1.bf16.msra.mxu0 %v540
        %664 = vmatprep.subr.bf16.mxu0 0
        %665 = vmatpush1.bf16.msra.mxu0 0
        %666 = vmatprep.subr.bf16.mxu0 0
        %667 = vmatpush1.bf16.msra.mxu0 0
        %668 = vmatprep.subr.bf16.mxu0 0
        %669 = vmatpush1.bf16.msra.mxu0 0
        %670 = vmatprep.subr.bf16.mxu0 0
        %671 = vmatpush1.bf16.msra.mxu0 0
        %672 = vmatprep.subr.bf16.mxu0 0
        %673 = vmatpush1.bf16.msra.mxu0 0
        %674 = vmatprep.subr.bf16.mxu0 0
        %675 = vmatpush1.bf16.msra.mxu0 0
        %676 = vmatprep.subr.bf16.mxu0 0
        %677 = vmatpush1.bf16.msra.mxu0 0
        %678 = vmatprep.subr.bf16.mxu0 0
        %679 = vmatpush1.bf16.msra.mxu0 0
        %680 = vmatprep.subr.bf16.mxu0 0
        %681 = vmatpush1.bf16.msra.mxu0 0
        %682 = vmatprep.subr.bf16.mxu0 0
        %683 = vmatpush1.bf16.msra.mxu0 0
        %684 = vmatprep.subr.bf16.mxu0 0
        %685 = vmatpush1.bf16.msra.mxu0 0
        %686 = vmatprep.subr.bf16.mxu0 0
        %687 = vmatpush1.bf16.msra.mxu0 0
        %688 = vmatprep.mubr.bf16.mxu0 0
        %689 = vmatmul.mubr.bf16.gmra.mrb[0].mxu0 %v568
        %v690 = vpop.f32.mrb[0].mxu0
        %v691 = vadd.f32 %v430, %v690
        %v692 = vpop.f32.mrb[0].mxu0
        %v693 = vadd.f32 %v434, %v692
        %v694 = vpop.f32.mrb[0].mxu0
        %v695 = vadd.f32 %v430, %v694
        %v696 = vpop.f32.mrb[0].mxu0
        %v697 = vadd.f32 %v434, %v696
        %698 = vdwg.mxu0
        %v699 = vmax.f32 %v605, 0.0
        %v700 = vmax.f32 %v607, 0.0
        %v701 = vmax.f32 %v648, 0.0
        %v702 = vmax.f32 %v650, 0.0
        %v703 = vmax.f32 %v691, 0.0
        %v704 = vmax.f32 %v693, 0.0
        %v705 = vmax.f32 %v609, 0.0
        %v706 = vmax.f32 %v611, 0.0
        %v707 = vmax.f32 %v652, 0.0
        %v708 = vmax.f32 %v654, 0.0
        %v709 = vmax.f32 %v695, 0.0
        %v710 = vmax.f32 %v697, 0.0
        %711 = vst [vmem:[#allocation2] sm:$0x3] 0.0
        %712 = vst [vmem:[#allocation2 + $0x8] sm:$0x3] 0.0
        %713 = vst [vmem:[#allocation2 + $0x10] sm:$0x3] 0.0
        %714 = vst [vmem:[#allocation2 + $0x18] sm:$0x3] 0.0
        %715 = vst [vmem:[#allocation2 + $0x20] sm:$0x3] 0.0
        %716 = vst [vmem:[#allocation2 + $0x28] sm:$0x3] 0.0
        %717 = vst [vmem:[#allocation2 + $0x60] sm:$0xc] 0.0
        %718 = vst [vmem:[#allocation2 + $0x68] sm:$0xc] 0.0
        %719 = vst [vmem:[#allocation2 + $0x70] sm:$0xc] 0.0
        %720 = vst [vmem:[#allocation2 + $0x78] sm:$0xc] 0.0
        %721 = vst [vmem:[#allocation2 + $0x80] sm:$0xc] 0.0
        %722 = vst [vmem:[#allocation2 + $0x88] sm:$0xc] 0.0
        %vm735 = vcmask 1041408
        %v736 = vrot.slane %v699, 6
        %v737 = vrot.slane %v700, 6
        %v738 = vrot.slane %v701, 6
        %v739 = vrot.slane %v702, 6
        %v740 = vrot.slane %v703, 6
        %v741 = vrot.slane %v704, 6
        %v742 = vrot.slane %v705, 6
        %v743 = vsel %vm735, %v736, %v742
        %v744 = vrot.slane %v706, 6
        %v745 = vsel %vm735, %v737, %v744
        %v746 = vrot.slane %v707, 6
        %v747 = vsel %vm735, %v738, %v746
        %v748 = vrot.slane %v708, 6
        %v749 = vsel %vm735, %v739, %v748
        %v750 = vrot.slane %v709, 6
        %v751 = vsel %vm735, %v740, %v750
        %v752 = vrot.slane %v710, 6
        %v753 = vsel %vm735, %v741, %v752
        %772 = vst [vmem:[#allocation2] sm:$0xfc] %v736
        %773 = vst [vmem:[#allocation2 + $0x8] sm:$0xfc] %v737
        %774 = vst [vmem:[#allocation2 + $0x10] sm:$0xfc] %v738
        %775 = vst [vmem:[#allocation2 + $0x18] sm:$0xfc] %v739
        %776 = vst [vmem:[#allocation2 + $0x20] sm:$0xfc] %v740
        %777 = vst [vmem:[#allocation2 + $0x28] sm:$0xfc] %v741
        %778 = vst [vmem:[#allocation2 + $0x30] sm:$0xff] %v743
        %779 = vst [vmem:[#allocation2 + $0x38] sm:$0xff] %v745
        %780 = vst [vmem:[#allocation2 + $0x40] sm:$0xff] %v747
        %781 = vst [vmem:[#allocation2 + $0x48] sm:$0xff] %v749
        %782 = vst [vmem:[#allocation2 + $0x50] sm:$0xff] %v751
        %783 = vst [vmem:[#allocation2 + $0x58] sm:$0xff] %v753
        %784 = vst [vmem:[#allocation2 + $0x60] sm:$0x3] %v742
        %785 = vst [vmem:[#allocation2 + $0x68] sm:$0x3] %v744
        %786 = vst [vmem:[#allocation2 + $0x70] sm:$0x3] %v746
        %787 = vst [vmem:[#allocation2 + $0x78] sm:$0x3] %v748
        %788 = vst [vmem:[#allocation2 + $0x80] sm:$0x3] %v750
        %789 = vst [vmem:[#allocation2 + $0x88] sm:$0x3] %v752
        %v790 = vld [vmem:[#allocation8] sm:$0xff]
        %v791 = vld [vmem:[#allocation8 + $0x8] sm:$0xff]
        %v792 = vld [vmem:[#allocation8 + $0x10] sm:$0x1]
        %v793 = vld [vmem:[#allocation8 + $0x18] sm:$0x1]
        %v794 = vld [vmem:[#allocation2] sm:$0xff]
        %v795 = vld [vmem:[#allocation2 + $0x8] sm:$0xff]
        %v796 = vld [vmem:[#allocation2 + $0x30] sm:$0xff]
        %v797 = vld [vmem:[#allocation2 + $0x38] sm:$0xff]
        %v798 = vlaneseq
        %v799 = vshrl.u32 %v798, 7
        %v800 = vsub.s32 0, %v799
        %v801 = vrot.slane %v790, %v800
        %v802 = vlaneseq
        %v803 = vshrl.u32 %v802, 7
        %v804 = vsub.s32 0, %v803
        %v805 = vrot.slane %v791, %v804
        %v806 = vmul.f32 %v794, %v801
        %v807 = vmul.f32 %v795, %v805
        %v808 = vmul.f32 %v796, %v801
        %v809 = vmul.f32 %v797, %v805
        %v810 = vld [vmem:[#allocation2 + $0x10] sm:$0xff]
        %v811 = vld [vmem:[#allocation2 + $0x18] sm:$0xff]
        %v812 = vld [vmem:[#allocation2 + $0x40] sm:$0xff]
        %v813 = vld [vmem:[#allocation2 + $0x48] sm:$0xff]
        %v814 = vlaneseq
        %v815 = vshrl.u32 %v814, 7
        %v816 = vsub.s32 1, %v815
        %v817 = vrot.slane %v790, %v816
        %v818 = vlaneseq
        %v819 = vshrl.u32 %v818, 7
        %v820 = vsub.s32 1, %v819
        %v821 = vrot.slane %v791, %v820
        %v822 = vmul.f32 %v810, %v817
        %v823 = vmul.f32 %v811, %v821
        %v824 = vmul.f32 %v812, %v817
        %v825 = vmul.f32 %v813, %v821
        %v826 = vadd.f32 %v806, %v822
        %v827 = vadd.f32 %v807, %v823
        %v828 = vadd.f32 %v808, %v824
        %v829 = vadd.f32 %v809, %v825
        %v830 = vld [vmem:[#allocation2 + $0x20] sm:$0xff]
        %v831 = vld [vmem:[#allocation2 + $0x28] sm:$0xff]
        %v832 = vld [vmem:[#allocation2 + $0x50] sm:$0xff]
        %v833 = vld [vmem:[#allocation2 + $0x58] sm:$0xff]
        %v834 = vlaneseq
        %v835 = vshrl.u32 %v834, 7
        %v836 = vsub.s32 2, %v835
        %v837 = vrot.slane %v790, %v836
        %v838 = vlaneseq
        %v839 = vshrl.u32 %v838, 7
        %v840 = vsub.s32 2, %v839
        %v841 = vrot.slane %v791, %v840
        %v842 = vmul.f32 %v830, %v837
        %v843 = vmul.f32 %v831, %v841
        %v844 = vmul.f32 %v832, %v837
        %v845 = vmul.f32 %v833, %v841
        %v846 = vadd.f32 %v826, %v842
        %v847 = vadd.f32 %v827, %v843
        %v848 = vadd.f32 %v828, %v844
        %v849 = vadd.f32 %v829, %v845
        %v850 = vld [vmem:[#allocation2] sm:$0xfc]
        %v851 = vld [vmem:[#allocation2 + $0x8] sm:$0xfc]
        %v852 = vld [vmem:[#allocation2 + $0x60] sm:$0x3]
        %v853 = vld [vmem:[#allocation2 + $0x68] sm:$0x3]
        %v854 = vlaneseq
        %v855 = vshrl.u32 %v854, 7
        %v856 = vsub.s32 3, %v855
        %v857 = vrot.slane %v790, %v856
        %v858 = vlaneseq
        %v859 = vshrl.u32 %v858, 7
        %v860 = vsub.s32 3, %v859
        %v861 = vrot.slane %v791, %v860
        %v862 = vmul.f32 %v850, %v857
        %v863 = vmul.f32 %v851, %v861
        %v864 = vmul.f32 %v796, %v857
        %v865 = vmul.f32 %v797, %v861
        %v866 = vmul.f32 %v852, %v857
        %v867 = vmul.f32 %v853, %v861
        %vm874 = vcmask 1045504
        %v875 = vrot.slane %v862, 2
        %v876 = vrot.slane %v864, 2
        %v877 = vsel %vm874, %v875, %v876
        %v878 = vrot.slane %v863, 2
        %v879 = vrot.slane %v865, 2
        %v880 = vsel %vm874, %v878, %v879
        %v881 = vrot.slane %v866, 2
        %v882 = vsel %vm874, %v876, %v881
        %v883 = vrot.slane %v867, 2
        %v884 = vsel %vm874, %v879, %v883
        %v889 = vadd.f32 %v846, %v877
        %v890 = vadd.f32 %v847, %v880
        %v891 = vadd.f32 %v848, %v882
        %v892 = vadd.f32 %v849, %v884
        %v893 = vld [vmem:[#allocation2 + $0x10] sm:$0xfc]
        %v894 = vld [vmem:[#allocation2 + $0x18] sm:$0xfc]
        %v895 = vld [vmem:[#allocation2 + $0x70] sm:$0x3]
        %v896 = vld [vmem:[#allocation2 + $0x78] sm:$0x3]
        %v897 = vlaneseq
        %v898 = vshrl.u32 %v897, 7
        %v899 = vsub.s32 4, %v898
        %v900 = vrot.slane %v790, %v899
        %v901 = vlaneseq
        %v902 = vshrl.u32 %v901, 7
        %v903 = vsub.s32 4, %v902
        %v904 = vrot.slane %v791, %v903
        %v905 = vmul.f32 %v893, %v900
        %v906 = vmul.f32 %v894, %v904
        %v907 = vmul.f32 %v812, %v900
        %v908 = vmul.f32 %v813, %v904
        %v909 = vmul.f32 %v895, %v900
        %v910 = vmul.f32 %v896, %v904
        %v917 = vrot.slane %v905, 2
        %v918 = vrot.slane %v907, 2
        %v919 = vsel %vm874, %v917, %v918
        %v920 = vrot.slane %v906, 2
        %v921 = vrot.slane %v908, 2
        %v922 = vsel %vm874, %v920, %v921
        %v923 = vrot.slane %v909, 2
        %v924 = vsel %vm874, %v918, %v923
        %v925 = vrot.slane %v910, 2
        %v926 = vsel %vm874, %v921, %v925
        %v931 = vadd.f32 %v889, %v919
        %v932 = vadd.f32 %v890, %v922
        %v933 = vadd.f32 %v891, %v924
        %v934 = vadd.f32 %v892, %v926
        %v935 = vld [vmem:[#allocation2 + $0x20] sm:$0xfc]
        %v936 = vld [vmem:[#allocation2 + $0x28] sm:$0xfc]
        %v937 = vld [vmem:[#allocation2 + $0x80] sm:$0x3]
        %v938 = vld [vmem:[#allocation2 + $0x88] sm:$0x3]
        %v939 = vlaneseq
        %v940 = vshrl.u32 %v939, 7
        %v941 = vsub.s32 5, %v940
        %v942 = vrot.slane %v790, %v941
        %v943 = vlaneseq
        %v944 = vshrl.u32 %v943, 7
        %v945 = vsub.s32 5, %v944
        %v946 = vrot.slane %v791, %v945
        %v947 = vmul.f32 %v935, %v942
        %v948 = vmul.f32 %v936, %v946
        %v949 = vmul.f32 %v832, %v942
        %v950 = vmul.f32 %v833, %v946
        %v951 = vmul.f32 %v937, %v942
        %v952 = vmul.f32 %v938, %v946
        %v959 = vrot.slane %v947, 2
        %v960 = vrot.slane %v949, 2
        %v961 = vsel %vm874, %v959, %v960
        %v962 = vrot.slane %v948, 2
        %v963 = vrot.slane %v950, 2
        %v964 = vsel %vm874, %v962, %v963
        %v965 = vrot.slane %v951, 2
        %v966 = vsel %vm874, %v960, %v965
        %v967 = vrot.slane %v952, 2
        %v968 = vsel %vm874, %v963, %v967
        %v973 = vadd.f32 %v931, %v961
        %v974 = vadd.f32 %v932, %v964
        %v975 = vadd.f32 %v933, %v966
        %v976 = vadd.f32 %v934, %v968
        %v977 = vld [vmem:[#allocation2] sm:$0xf0]
        %v978 = vld [vmem:[#allocation2 + $0x8] sm:$0xf0]
        %v979 = vld [vmem:[#allocation2 + $0x60] sm:$0xf]
        %v980 = vld [vmem:[#allocation2 + $0x68] sm:$0xf]
        %v981 = vlaneseq
        %v982 = vshrl.u32 %v981, 7
        %v983 = vsub.s32 6, %v982
        %v984 = vrot.slane %v790, %v983
        %v985 = vlaneseq
        %v986 = vshrl.u32 %v985, 7
        %v987 = vsub.s32 6, %v986
        %v988 = vrot.slane %v791, %v987
        %v989 = vmul.f32 %v977, %v984
        %v990 = vmul.f32 %v978, %v988
        %v991 = vmul.f32 %v796, %v984
        %v992 = vmul.f32 %v797, %v988
        %v993 = vmul.f32 %v979, %v984
        %v994 = vmul.f32 %v980, %v988
        %vm1001 = vcmask 1043456
        %v1002 = vrot.slane %v989, 4
        %v1003 = vrot.slane %v991, 4
        %v1004 = vsel %vm1001, %v1002, %v1003
        %v1005 = vrot.slane %v990, 4
        %v1006 = vrot.slane %v992, 4
        %v1007 = vsel %vm1001, %v1005, %v1006
        %v1008 = vrot.slane %v993, 4
        %v1009 = vsel %vm1001, %v1003, %v1008
        %v1010 = vrot.slane %v994, 4
        %v1011 = vsel %vm1001, %v1006, %v1010
        %v1016 = vadd.f32 %v973, %v1004
        %v1017 = vadd.f32 %v974, %v1007
        %v1018 = vadd.f32 %v975, %v1009
        %v1019 = vadd.f32 %v976, %v1011
        %v1020 = vld [vmem:[#allocation2 + $0x10] sm:$0xf0]
        %v1021 = vld [vmem:[#allocation2 + $0x18] sm:$0xf0]
        %v1022 = vld [vmem:[#allocation2 + $0x70] sm:$0xf]
        %v1023 = vld [vmem:[#allocation2 + $0x78] sm:$0xf]
        %v1024 = vlaneseq
        %v1025 = vshrl.u32 %v1024, 7
        %v1026 = vsub.s32 7, %v1025
        %v1027 = vrot.slane %v790, %v1026
        %v1028 = vlaneseq
        %v1029 = vshrl.u32 %v1028, 7
        %v1030 = vsub.s32 7, %v1029
        %v1031 = vrot.slane %v791, %v1030
        %v1032 = vmul.f32 %v1020, %v1027
        %v1033 = vmul.f32 %v1021, %v1031
        %v1034 = vmul.f32 %v812, %v1027
        %v1035 = vmul.f32 %v813, %v1031
        %v1036 = vmul.f32 %v1022, %v1027
        %v1037 = vmul.f32 %v1023, %v1031
        %v1044 = vrot.slane %v1032, 4
        %v1045 = vrot.slane %v1034, 4
        %v1046 = vsel %vm1001, %v1044, %v1045
        %v1047 = vrot.slane %v1033, 4
        %v1048 = vrot.slane %v1035, 4
        %v1049 = vsel %vm1001, %v1047, %v1048
        %v1050 = vrot.slane %v1036, 4
        %v1051 = vsel %vm1001, %v1045, %v1050
        %v1052 = vrot.slane %v1037, 4
        %v1053 = vsel %vm1001, %v1048, %v1052
        %v1058 = vadd.f32 %v1016, %v1046
        %v1059 = vadd.f32 %v1017, %v1049
        %v1060 = vadd.f32 %v1018, %v1051
        %v1061 = vadd.f32 %v1019, %v1053
        %v1062 = vld [vmem:[#allocation2 + $0x20] sm:$0xf0]
        %v1063 = vld [vmem:[#allocation2 + $0x28] sm:$0xf0]
        %v1064 = vld [vmem:[#allocation2 + $0x80] sm:$0xf]
        %v1065 = vld [vmem:[#allocation2 + $0x88] sm:$0xf]
        %v1066 = vlaneseq
        %v1067 = vshrl.u32 %v1066, 7
        %v1068 = vsub.s32 0, %v1067
        %v1069 = vrot.slane %v792, %v1068
        %v1070 = vlaneseq
        %v1071 = vshrl.u32 %v1070, 7
        %v1072 = vsub.s32 0, %v1071
        %v1073 = vrot.slane %v793, %v1072
        %v1074 = vmul.f32 %v1062, %v1069
        %v1075 = vmul.f32 %v1063, %v1073
        %v1076 = vmul.f32 %v832, %v1069
        %v1077 = vmul.f32 %v833, %v1073
        %v1078 = vmul.f32 %v1064, %v1069
        %v1079 = vmul.f32 %v1065, %v1073
        %v1086 = vrot.slane %v1074, 4
        %v1087 = vrot.slane %v1076, 4
        %v1088 = vsel %vm1001, %v1086, %v1087
        %v1089 = vrot.slane %v1075, 4
        %v1090 = vrot.slane %v1077, 4
        %v1091 = vsel %vm1001, %v1089, %v1090
        %v1092 = vrot.slane %v1078, 4
        %v1093 = vsel %vm1001, %v1087, %v1092
        %v1094 = vrot.slane %v1079, 4
        %v1095 = vsel %vm1001, %v1090, %v1094
        %v1100 = vadd.f32 %v1058, %v1088
        %v1101 = vadd.f32 %v1059, %v1091
        %v1102 = vadd.f32 %v1060, %v1093
        %v1103 = vadd.f32 %v1061, %v1095
        %v1104 = vld [vmem:[%s4] sm:$0x3]
        %v1106 = vlaneseq
        %v1107 = vshrl.u32 %v1106, 7
        %v1108 = vsub.s32 0, %v1107
        %v1109 = vrot.slane %v1104, %v1108
        %v1110 = vlaneseq
        %v1111 = vshrl.u32 %v1110, 7
        %v1112 = vsub.s32 1, %v1111
        %v1113 = vrot.slane %v1104, %v1112
        %v1116 = vadd.f32 %v1100, %v1109
        %v1117 = vadd.f32 %v1101, %v1113
        %v1118 = vadd.f32 %v1102, %v1109
        %v1119 = vadd.f32 %v1103, %v1113
        %v1120 = vmax.f32 %v1116, 0.0
        %v1121 = vmax.f32 %v1117, 0.0
        %v1122 = vmax.f32 %v1118, 0.0
        %v1123 = vmax.f32 %v1119, 0.0
        %v1124 = vpack.c.bf16 %v1122, %v1120
        %v1125 = vpack.c.bf16 %v1123, %v1121
        %v1126 = vld [vmem:[#allocation9] sm:$0xf]
        %v1127 = vld [vmem:[#allocation9 + $0x4] sm:$0xf]
        %v1128 = vld [vmem:[#allocation9 + $0x8] sm:$0xf]
        %v1129 = vld [vmem:[#allocation9 + $0xc] sm:$0xf]
        %v1130 = vld [vmem:[#allocation9 + $0x10] sm:$0xf]
        %v1131 = vld [vmem:[#allocation9 + $0x14] sm:$0xf]
        %v1132 = vld [vmem:[#allocation9 + $0x18] sm:$0xf]
        %v1133 = vld [vmem:[#allocation9 + $0x1c] sm:$0xf]
        %v1134 = vld [vmem:[#allocation9 + $0x20] sm:$0xf]
        %v1135 = vld [vmem:[#allocation9 + $0x24] sm:$0xf]
        %v1136 = vld [vmem:[#allocation9 + $0x28] sm:$0xf]
        %v1137 = vld [vmem:[#allocation9 + $0x2c] sm:$0xf]
        %v1138 = vld [vmem:[#allocation9 + $0x30] sm:$0xf]
        %v1139 = vld [vmem:[#allocation9 + $0x34] sm:$0xf]
        %v1140 = vld [vmem:[#allocation9 + $0x38] sm:$0xf]
        %v1141 = vld [vmem:[#allocation9 + $0x3c] sm:$0xf]
        %v1142 = vld [vmem:[#allocation9 + $0x40] sm:$0xf]
        %v1143 = vld [vmem:[#allocation9 + $0x44] sm:$0xf]
        %v1144 = vld [vmem:[#allocation9 + $0x48] sm:$0xf]
        %v1145 = vld [vmem:[#allocation9 + $0x4c] sm:$0xf]
        %v1146 = vld [vmem:[#allocation9 + $0x50] sm:$0xf]
        %v1147 = vld [vmem:[#allocation9 + $0x54] sm:$0xf]
        %v1148 = vld [vmem:[#allocation9 + $0x58] sm:$0xf]
        %v1149 = vld [vmem:[#allocation9 + $0x5c] sm:$0xf]
        %v1150 = vld [vmem:[#allocation9 + $0x60] sm:$0xf]
        %v1151 = vld [vmem:[#allocation9 + $0x64] sm:$0xf]
        %v1152 = vld [vmem:[#allocation9 + $0x68] sm:$0xf]
        %v1153 = vld [vmem:[#allocation9 + $0x6c] sm:$0xf]
        %v1154 = vld [vmem:[#allocation9 + $0x70] sm:$0xf]
        %v1155 = vld [vmem:[#allocation9 + $0x74] sm:$0xf]
        %v1156 = vld [vmem:[#allocation9 + $0x78] sm:$0xf]
        %v1157 = vld [vmem:[#allocation9 + $0x7c] sm:$0xf]
        %v1158 = vld [vmem:[#allocation11] sm:$0xf]
        %v1159 = vld [vmem:[#allocation11 + $0x4] sm:$0xf]
        %v1160 = vld [vmem:[#allocation11 + $0x8] sm:$0xf]
        %v1161 = vld [vmem:[#allocation11 + $0xc] sm:$0xf]
        %v1162 = vld [vmem:[#allocation11 + $0x10] sm:$0xf]
        %v1163 = vld [vmem:[#allocation11 + $0x14] sm:$0xf]
        %v1164 = vld [vmem:[#allocation11 + $0x18] sm:$0xf]
        %v1165 = vld [vmem:[#allocation11 + $0x1c] sm:$0xf]
        %v1174 = vunpack.c.l.b16 %v1158
        %v1175 = vunpack.c.l.b16 %v1159
        %v1176 = vunpack.c.l.b16 %v1160
        %v1177 = vunpack.c.l.b16 %v1161
        %v1178 = vunpack.c.l.b16 %v1162
        %v1179 = vunpack.c.l.b16 %v1163
        %v1180 = vunpack.c.l.b16 %v1164
        %v1181 = vunpack.c.l.b16 %v1165
        %v1182 = vpack.c.b16 %v1175, %v1174
        %v1183 = vpack.c.b16 %v1177, %v1176
        %v1184 = vpack.c.b16 %v1179, %v1178
        %v1185 = vpack.c.b16 %v1181, %v1180
        %1190 = vmatprep.subr.bf16.mxu0 0
        %1191 = vmatpush1.bf16.msra.mxu0 %v1182
        %1192 = vmatprep.subr.bf16.mxu0 0
        %1193 = vmatpush1.bf16.msra.mxu0 %v1183
        %1194 = vmatprep.subr.bf16.mxu0 0
        %1195 = vmatpush1.bf16.msra.mxu0 %v1184
        %1196 = vmatprep.subr.bf16.mxu0 0
        %1197 = vmatpush1.bf16.msra.mxu0 %v1185
        %1198 = vmatprep.subr.bf16.mxu0 0
        %1199 = vmatpush1.bf16.msra.mxu0 0
        %1200 = vmatprep.subr.bf16.mxu0 0
        %1201 = vmatpush1.bf16.msra.mxu0 0
        %1202 = vmatprep.subr.bf16.mxu0 0
        %1203 = vmatpush1.bf16.msra.mxu0 0
        %1204 = vmatprep.subr.bf16.mxu0 0
        %1205 = vmatpush1.bf16.msra.mxu0 0
        %1206 = vmatprep.subr.bf16.mxu0 0
        %1207 = vmatpush1.bf16.msra.mxu0 0
        %1208 = vmatprep.subr.bf16.mxu0 0
        %1209 = vmatpush1.bf16.msra.mxu0 0
        %1210 = vmatprep.subr.bf16.mxu0 0
        %1211 = vmatpush1.bf16.msra.mxu0 0
        %1212 = vmatprep.subr.bf16.mxu0 0
        %1213 = vmatpush1.bf16.msra.mxu0 0
        %1214 = vmatprep.subr.bf16.mxu0 0
        %1215 = vmatpush1.bf16.msra.mxu0 0
        %1216 = vmatprep.subr.bf16.mxu0 0
        %1217 = vmatpush1.bf16.msra.mxu0 0
        %1218 = vmatprep.subr.bf16.mxu0 0
        %1219 = vmatpush1.bf16.msra.mxu0 0
        %1220 = vmatprep.subr.bf16.mxu0 0
        %1221 = vmatpush1.bf16.msra.mxu0 0
        %1222 = vmatprep.mubr.bf16.mxu0 0
        %1223 = vmatmul.mubr.bf16.gmra.mrb[0].mxu0 %v568
        %v1224 = vpop.f32.mrb[0].mxu0
        %v1225 = vadd.f32 0.0, %v1224
        %v1226 = vpop.f32.mrb[0].mxu0
        %v1227 = vpop.f32.mrb[0].mxu0
        %v1228 = vadd.f32 0.0, %v1227
        %v1229 = vpop.f32.mrb[0].mxu0
        %1230 = vdwg.mxu0
        %v1263 = vunpack.c.l.b16 %v1126
        %v1264 = vunpack.c.l.b16 %v1127
        %v1265 = vunpack.c.l.b16 %v1128
        %v1266 = vunpack.c.l.b16 %v1129
        %v1267 = vunpack.c.l.b16 %v1130
        %v1268 = vunpack.c.l.b16 %v1131
        %v1269 = vunpack.c.l.b16 %v1132
        %v1270 = vunpack.c.l.b16 %v1133
        %v1271 = vunpack.c.l.b16 %v1134
        %v1272 = vunpack.c.l.b16 %v1135
        %v1273 = vunpack.c.l.b16 %v1136
        %v1274 = vunpack.c.l.b16 %v1137
        %v1275 = vunpack.c.l.b16 %v1138
        %v1276 = vunpack.c.l.b16 %v1139
        %v1277 = vunpack.c.l.b16 %v1140
        %v1278 = vunpack.c.l.b16 %v1141
        %v1279 = vunpack.c.l.b16 %v1142
        %v1280 = vunpack.c.l.b16 %v1143
        %v1281 = vunpack.c.l.b16 %v1144
        %v1282 = vunpack.c.l.b16 %v1145
        %v1283 = vunpack.c.l.b16 %v1146
        %v1284 = vunpack.c.l.b16 %v1147
        %v1285 = vunpack.c.l.b16 %v1148
        %v1286 = vunpack.c.l.b16 %v1149
        %v1287 = vunpack.c.l.b16 %v1150
        %v1288 = vunpack.c.l.b16 %v1151
        %v1289 = vunpack.c.l.b16 %v1152
        %v1290 = vunpack.c.l.b16 %v1153
        %v1291 = vunpack.c.l.b16 %v1154
        %v1292 = vunpack.c.l.b16 %v1155
        %v1293 = vunpack.c.l.b16 %v1156
        %v1294 = vunpack.c.l.b16 %v1157
        %v1295 = vpack.c.b16 %v1264, %v1263
        %v1296 = vpack.c.b16 %v1266, %v1265
        %v1297 = vpack.c.b16 %v1268, %v1267
        %v1298 = vpack.c.b16 %v1270, %v1269
        %v1299 = vpack.c.b16 %v1272, %v1271
        %v1300 = vpack.c.b16 %v1274, %v1273
        %v1301 = vpack.c.b16 %v1276, %v1275
        %v1302 = vpack.c.b16 %v1278, %v1277
        %v1303 = vpack.c.b16 %v1280, %v1279
        %v1304 = vpack.c.b16 %v1282, %v1281
        %v1305 = vpack.c.b16 %v1284, %v1283
        %v1306 = vpack.c.b16 %v1286, %v1285
        %v1307 = vpack.c.b16 %v1288, %v1287
        %v1308 = vpack.c.b16 %v1290, %v1289
        %v1309 = vpack.c.b16 %v1292, %v1291
        %v1310 = vpack.c.b16 %v1294, %v1293
        %1327 = vmatprep.subr.bf16.mxu0 0
        %1328 = vmatpush1.bf16.msra.mxu0 %v1295
        %1329 = vmatprep.subr.bf16.mxu0 0
        %1330 = vmatpush1.bf16.msra.mxu0 %v1296
        %1331 = vmatprep.subr.bf16.mxu0 0
        %1332 = vmatpush1.bf16.msra.mxu0 %v1297
        %1333 = vmatprep.subr.bf16.mxu0 0
        %1334 = vmatpush1.bf16.msra.mxu0 %v1298
        %1335 = vmatprep.subr.bf16.mxu0 0
        %1336 = vmatpush1.bf16.msra.mxu0 %v1299
        %1337 = vmatprep.subr.bf16.mxu0 0
        %1338 = vmatpush1.bf16.msra.mxu0 %v1300
        %1339 = vmatprep.subr.bf16.mxu0 0
        %1340 = vmatpush1.bf16.msra.mxu0 %v1301
        %1341 = vmatprep.subr.bf16.mxu0 0
        %1342 = vmatpush1.bf16.msra.mxu0 %v1302
        %1343 = vmatprep.subr.bf16.mxu0 0
        %1344 = vmatpush1.bf16.msra.mxu0 %v1303
        %1345 = vmatprep.subr.bf16.mxu0 0
        %1346 = vmatpush1.bf16.msra.mxu0 %v1304
        %1347 = vmatprep.subr.bf16.mxu0 0
        %1348 = vmatpush1.bf16.msra.mxu0 %v1305
        %1349 = vmatprep.subr.bf16.mxu0 0
        %1350 = vmatpush1.bf16.msra.mxu0 %v1306
        %1351 = vmatprep.subr.bf16.mxu0 0
        %1352 = vmatpush1.bf16.msra.mxu0 %v1307
        %1353 = vmatprep.subr.bf16.mxu0 0
        %1354 = vmatpush1.bf16.msra.mxu0 %v1308
        %1355 = vmatprep.subr.bf16.mxu0 0
        %1356 = vmatpush1.bf16.msra.mxu0 %v1309
        %1357 = vmatprep.subr.bf16.mxu0 0
        %1358 = vmatpush1.bf16.msra.mxu0 %v1310
        %1359 = vmatprep.mubr.bf16.mxu0 %v1125
        %1360 = vmatmul.mubr.bf16.gmra.mrb[0].mxu0 %v1124
        %v1361 = vpop.f32.mrb[0].mxu0
        %v1362 = vadd.f32 %v1225, %v1361
        %v1363 = vpop.f32.mrb[0].mxu0
        %v1364 = vpop.f32.mrb[0].mxu0
        %v1365 = vadd.f32 %v1228, %v1364
        %v1366 = vpop.f32.mrb[0].mxu0
        %1367 = vdwg.mxu0
        %v1368 = vld [vmem:[%s7] sm:$0x1]
        %v1370 = vlaneseq
        %v1371 = vshrl.u32 %v1370, 7
        %v1372 = vsub.s32 0, %v1371
        %v1373 = vrot.slane %v1368, %v1372
        %v1375 = vadd.f32 %v1362, %v1373
        %v1376 = vadd.f32 %v1365, %v1373
        %1377 = vst [vmem:[%s381] sm:$0xff] %v1375
        %1378 = vst [vmem:[%s381 + $0x8] sm:$0xff] %v1376
        %s1379 = sand.u32 %s208, 1
        %s1380 = scalar_lea.sflag [#allocation5], %s1379
        %s1381 = sand.u32 %s208, 1
        %s1382 = smul.addr %s1381, 16
        %s1383 = scalar_lea.vmem [#allocation12], %s1382
        // Predicated region
        $region73: #{tpu_custom_call.1} parent=51 // pred_check
          %p1384 = pneg %p218
        $region74: #{tpu_custom_call.1} parent=51 // pred_check_branch
          %1386 = sbr.rel (%p1384) target = $region76
        $region75: #{tpu_custom_call.1} parent=51 // pred_region
          %s1388 = ssub.s32 256, 256
          %1389 = vsyncadd %s1380, %s1388
          %s1390 = smul.addr %s27, 2
          %s1391 = smul.addr %s1390, 128
          %s1392 = scalar_lea.hbm %s8, %s1391
          %s1393 = sshll.u32 %s1383, 4
          %s1394 = int_to_ptr.vmem [resolvable:$true] %s1393
          %1399 = dma.vmem_to_hbm [thread:$0]  %s1394, 256, %s1392, %s1380, 128, 128, 8
        $region76: #{tpu_custom_call.1} parent=51 // pred_fallthru
          _
      $region52: #{tpu_custom_call.1} parent=5 // pred_fallthru
        _
      %p1400 = scmp.le.s32.totalorder 2, %s22
      // Predicated region
      $region77: #{tpu_custom_call.1} parent=5 // pred_check
        %p1401 = pneg %p1400
      $region78: #{tpu_custom_call.1} parent=5 // pred_check_branch
        %1403 = sbr.rel (%p1401) target = $region80
      $region79: #{tpu_custom_call.1} parent=5 // pred_region
        %s1404 = ssub.s32 %s22, 2
        // Predicated region
        $region81: #{tpu_custom_call.1} parent=79 // pred_check
          %p1405 = pneg %p224
        $region82: #{tpu_custom_call.1} parent=79 // pred_check_branch
          %1407 = sbr.rel (%p1405) target = $region84
        $region83: #{tpu_custom_call.1} parent=79 // pred_region
          %s1408 = sand.u32 %s209, 1
          %s1409 = scalar_lea.sflag [#allocation5], %s1408
          %s1410 = sand.u32 %s209, 1
          %s1411 = smul.addr %s1410, 16
          %s1412 = scalar_lea.vmem [#allocation12], %s1411
          %1413 = dma.done %s1409, 256
        $region84: #{tpu_custom_call.1} parent=79 // pred_fallthru
          _
      $region80: #{tpu_custom_call.1} parent=5 // pred_fallthru
        _
    $region6: #{tpu_custom_call.1} parent=1 // loop_footer
      %s26 = sadd.s32 1, %s22
    $region7: #{tpu_custom_call.1} parent=1 // loop_footer_branch
      %21 = sbr.rel target = $region3
    $region8: #{tpu_custom_call.1} parent=1 // loop_exit
      _
    %1414 = vsyncpa [#allocation4], 1
    %s1415 = scalar_lea.sflag [#allocation4], 1
    %1416 = vsyncpa %s1415, 1
    %1417 = vsyncpa [#allocation7], 1
    %1418 = vsyncpa [#allocation10], 1
    %1419 = vsyncpa [#allocation5], 1
    %s1420 = scalar_lea.sflag [#allocation5], 1
    %1421 = vsyncpa %s1420, 1

</llo_original>
